<compile_context>
chip_gen: v7x
topology: tpu7x:2x2x1
jax: 0.10.0
libtpu: 0.0.40
codegen_flags: <defaults>
</compile_context>

<pallas_src>
import math
import functools

import jax
import jax.numpy as jnp
from jax.experimental import pallas as pl
from jax.experimental.pallas import tpu as pltpu


_VMEM_LIMIT = 48 * 1024 * 1024  # conservative for v7x (64 MiB physical VMEM/TC)


# ----------------------------------------------------------------------------
# Small helpers
# ----------------------------------------------------------------------------

def _tile(dim, target, align):
    """Largest block size <= target that is either the full dim or a multiple of
    `align` that evenly divides dim (keeps every block full -> safe accumulation)."""
    if dim <= target:
        return dim
    t = (target // align) * align
    while t >= align:
        if dim % t == 0:
            return t
        t -= align
    return dim


def _to_bf16(x):
    return x if x.dtype == jnp.bfloat16 else x.astype(jnp.bfloat16)


_SQRT1_2 = 1.0 / math.sqrt(2.0)


def _erf_poly(x):
    # TODO(synk): exact lax.erf lowering inside Mosaic is not guaranteed; use the
    # Abramowitz & Stegun 7.1.26 rational approximation (|err| < 1.5e-7 ~ f32
    # exact), built from exp / mul / add / select (VPU) plus one EUP reciprocal.
    p = 0.3275911
    a1, a2, a3, a4, a5 = (0.254829592, -0.284496736, 1.421413741,
                          -1.453152027, 1.061405429)
    ax = jnp.abs(x)
    t = pl.reciprocal(1.0 + p * ax, approx=True)      # EUP slot, hides under MXU
    poly = ((((a5 * t + a4) * t + a3) * t + a2) * t + a1) * t
    e = 1.0 - poly * jnp.exp(-ax * ax)
    return jnp.where(x < 0.0, -e, e)


def _gelu_exact(x):
    return 0.5 * x * (1.0 + _erf_poly(x * _SQRT1_2))


# ----------------------------------------------------------------------------
# Pallas kernels
# ----------------------------------------------------------------------------

def _linear_kernel(x_ref, w_ref, b_ref, o_ref, acc_ref, *, activation):
    """Tiled y = act(x @ w + b). bf16 MXU inputs, f32 accumulate, f32 epilogue."""
    @pl.when(pl.program_id(2) == 0)
    def _():
        acc_ref[...] = jnp.zeros_like(acc_ref)

    acc_ref[...] += jnp.dot(_to_bf16(x_ref[...]), _to_bf16(w_ref[...]),
                            preferred_element_type=jnp.float32)

    @pl.when(pl.program_id(2) == pl.num_programs(2) - 1)
    def _():
        y = acc_ref[...] + b_ref[...]
        if activation == "relu":
            y = jnp.maximum(y, 0.0)
        elif activation == "gelu":
            y = _gelu_exact(y)
        o_ref[...] = y.astype(o_ref.dtype)


def linear_pallas(x, w, b, activation=None, out_dtype=jnp.float32):
    """x: [M, K], w: [K, N] (bf16 or f32), b: [N] f32 -> [M, N] out_dtype."""
    M, K = x.shape
    N = w.shape[1]
    # Pad a ragged wide output dim (e.g. the vocab head) to a multiple of 128 so
    # tn stays small and fixed instead of one huge full-N tile.
    n_pad = 0
    if N > 128 and N % 128 != 0:
        n_pad = (-N) % 128
        w = jnp.pad(w, ((0, 0), (0, n_pad)))
        b = jnp.pad(b, ((0, n_pad),))
    Np = N + n_pad
    tm = _tile(M, 256, 8)
    tn = _tile(Np, 256, 128)
    tk = _tile(K, 512, 128)
    grid = (M // tm, Np // tn, K // tk)
    out = pl.pallas_call(
        functools.partial(_linear_kernel, activation=activation),
        out_shape=jax.ShapeDtypeStruct((M, Np), out_dtype),
        grid_spec=pltpu.PrefetchScalarGridSpec(
            num_scalar_prefetch=0,
            grid=grid,
            in_specs=[
                pl.BlockSpec((tm, tk), lambda i, j, k: (i, k)),
                pl.BlockSpec((tk, tn), lambda i, j, k: (k, j)),
                pl.BlockSpec((1, tn), lambda i, j, k: (0, j)),
            ],
            out_specs=pl.BlockSpec((tm, tn), lambda i, j, k: (i, j)),
            scratch_shapes=[pltpu.VMEM((tm, tn), jnp.float32)],
        ),
        compiler_params=pltpu.CompilerParams(
            dimension_semantics=("parallel", "parallel", "arbitrary"),
            vmem_limit_bytes=_VMEM_LIMIT),
    )(x, w, b.reshape(1, Np))
    return out[:, :N] if n_pad else out


def _linear_ln_kernel(x_ref, w_ref, b_ref, r_ref, g_ref, bt_ref, o_ref, acc_ref,
                      *, eps):
    """Tiled out = LayerNorm(residual + x @ w + b), LN fused into last-k epilogue."""
    @pl.when(pl.program_id(1) == 0)
    def _():
        acc_ref[...] = jnp.zeros_like(acc_ref)

    acc_ref[...] += jnp.dot(_to_bf16(x_ref[...]), _to_bf16(w_ref[...]),
                            preferred_element_type=jnp.float32)

    @pl.when(pl.program_id(1) == pl.num_programs(1) - 1)
    def _():
        y = acc_ref[...] + b_ref[...] + r_ref[...].astype(jnp.float32)
        mu = jnp.mean(y, axis=-1, keepdims=True)
        yc = y - mu
        var = jnp.mean(yc * yc, axis=-1, keepdims=True)
        o_ref[...] = (yc * jax.lax.rsqrt(var + eps) * g_ref[...]
                      + bt_ref[...]).astype(o_ref.dtype)


def linear_ln_pallas(x, w, b, residual, gamma, beta, eps=1e-5,
                     out_dtype=jnp.bfloat16):
    """out = LN(residual + x @ w + b).  Requires N (== hidden) in one output tile."""
    M, K = x.shape
    N = w.shape[1]
    tm = _tile(M, 256, 8)
    tk = _tile(K, 512, 128)
    grid = (M // tm, K // tk)
    return pl.pallas_call(
        functools.partial(_linear_ln_kernel, eps=eps),
        out_shape=jax.ShapeDtypeStruct((M, N), out_dtype),
        grid_spec=pltpu.PrefetchScalarGridSpec(
            num_scalar_prefetch=0,
            grid=grid,
            in_specs=[
                pl.BlockSpec((tm, tk), lambda i, k: (i, k)),
                pl.BlockSpec((tk, N), lambda i, k: (k, 0)),
                pl.BlockSpec((1, N), lambda i, k: (0, 0)),
                pl.BlockSpec((tm, N), lambda i, k: (i, 0)),
                pl.BlockSpec((1, N), lambda i, k: (0, 0)),
                pl.BlockSpec((1, N), lambda i, k: (0, 0)),
            ],
            out_specs=pl.BlockSpec((tm, N), lambda i, k: (i, 0)),
            scratch_shapes=[pltpu.VMEM((tm, N), jnp.float32)],
        ),
        compiler_params=pltpu.CompilerParams(
            dimension_semantics=("parallel", "arbitrary"),
            vmem_limit_bytes=_VMEM_LIMIT),
    )(x, w, b.reshape(1, N), residual, gamma.reshape(1, N), beta.reshape(1, N))


def _layernorm_kernel(x_ref, g_ref, b_ref, o_ref, *, eps):
    x = x_ref[...].astype(jnp.float32)
    mu = jnp.mean(x, axis=-1, keepdims=True)
    xc = x - mu
    var = jnp.mean(xc * xc, axis=-1, keepdims=True)
    o_ref[...] = (xc * jax.lax.rsqrt(var + eps) * g_ref[...]
                  + b_ref[...]).astype(o_ref.dtype)


def _add_layernorm_kernel(x_ref, r_ref, g_ref, b_ref, o_ref, *, eps):
    x = x_ref[...].astype(jnp.float32) + r_ref[...].astype(jnp.float32)
    mu = jnp.mean(x, axis=-1, keepdims=True)
    xc = x - mu
    var = jnp.mean(xc * xc, axis=-1, keepdims=True)
    o_ref[...] = (xc * jax.lax.rsqrt(var + eps) * g_ref[...]
                  + b_ref[...]).astype(o_ref.dtype)


def layernorm_pallas(x, gamma, beta, residual=None, eps=1e-5,
                     out_dtype=jnp.float32):
    """LayerNorm over the last dim of [M, H]; optionally LN(x + residual)."""
    M, H = x.shape
    tm = _tile(M, 512, 8)
    grid = (M // tm,)
    row_spec = pl.BlockSpec((tm, H), lambda i: (i, 0))
    vec_spec = pl.BlockSpec((1, H), lambda i: (0, 0))
    if residual is None:
        kernel = functools.partial(_layernorm_kernel, eps=eps)
        in_specs = [row_spec, vec_spec, vec_spec]
        args = (x, gamma.reshape(1, H), beta.reshape(1, H))
    else:
        kernel = functools.partial(_add_layernorm_kernel, eps=eps)
        in_specs = [row_spec, row_spec, vec_spec, vec_spec]
        args = (x, residual, gamma.reshape(1, H), beta.reshape(1, H))
    return pl.pallas_call(
        kernel,
        out_shape=jax.ShapeDtypeStruct((M, H), out_dtype),
        grid=grid,
        in_specs=in_specs,
        out_specs=row_spec,
        compiler_params=pltpu.CompilerParams(
            dimension_semantics=("parallel",),
            vmem_limit_bytes=_VMEM_LIMIT),
    )(*args)


def _mha_kernel(q_ref, k_ref, v_ref, m_ref, o_ref, *, num_heads, head_dim, scale):
    """One (batch, query-tile) step: all heads computed, one lane-dense store.

    The head loop is a short static Python loop (num_heads is small); per-head
    [tq, S] scores keep vreg pressure bounded by the query tiling, and the
    per-head outputs are concatenated so o_ref is written once, lane-dense.
    """
    mask = m_ref[...].astype(jnp.float32)                      # [1, Sk] additive
    outs = []
    for h in range(num_heads):
        lo = h * head_dim
        hi = lo + head_dim
        q = q_ref[:, lo:hi]                                    # [tq, D] bf16
        k = k_ref[:, lo:hi]                                    # [Sk, D] bf16
        v = v_ref[:, lo:hi]                                    # [Sk, D] bf16
        s = jax.lax.dot_general(q, k, (((1,), (1,)), ((), ())),
                                preferred_element_type=jnp.float32) * scale
        s = s + mask
        mx = jnp.max(s, axis=-1, keepdims=True)
        p = jnp.exp(s - mx)
        l = jnp.sum(p, axis=-1, keepdims=True)
        p = p * pl.reciprocal(l, approx=True)                  # EUP slot
        outs.append(jnp.dot(p.astype(jnp.bfloat16), v,
                            preferred_element_type=jnp.float32))
    o_ref[...] = jnp.concatenate(outs, axis=-1).astype(o_ref.dtype)


def mha_core_pallas(qkv, key_mask_add, num_heads, out_dtype=jnp.bfloat16):
    """qkv: [B, S, 3H] (bf16, heads packed along H); key_mask_add: [B, 1, S].

    Q/K/V are sliced out of the fused qkv tensor with column-offset BlockSpecs
    (no separate q/k/v HBM arrays).  Grid = (batch, query-tile)."""
    B, S, H3 = qkv.shape
    H = H3 // 3
    D = H // num_heads
    scale = 1.0 / math.sqrt(D)
    tq = _tile(S, 128, 8)
    kernel = functools.partial(_mha_kernel, num_heads=num_heads, head_dim=D,
                               scale=scale)
    o_spec = pl.BlockSpec((None, tq, H), lambda b, qi: (b, qi, 0))
    m_spec = pl.BlockSpec((None, 1, S), lambda b, qi: (b, 0, 0))
    if H % 128 == 0:
        # Column-sliced views of the same fused [B, S, 3H] array: Q block 0,
        # K block 1, V block 2 along the last axis.
        q_spec = pl.BlockSpec((None, tq, H), lambda b, qi: (b, qi, 0))
        k_spec = pl.BlockSpec((None, S, H), lambda b, qi: (b, 0, 1))
        v_spec = pl.BlockSpec((None, S, H), lambda b, qi: (b, 0, 2))
        args = (qkv, qkv, qkv, key_mask_add)
    else:
        # TODO(synk): small-H fallback (H not 128-aligned) materializes q/k/v
        # splits in HBM; only used for toy hidden sizes.
        q = qkv[:, :, :H]
        k = qkv[:, :, H:2 * H]
        v = qkv[:, :, 2 * H:]
        q_spec = pl.BlockSpec((None, tq, H), lambda b, qi: (b, qi, 0))
        k_spec = pl.BlockSpec((None, S, H), lambda b, qi: (b, 0, 0))
        v_spec = pl.BlockSpec((None, S, H), lambda b, qi: (b, 0, 0))
        args = (q, k, v, key_mask_add)
    return pl.pallas_call(
        kernel,
        out_shape=jax.ShapeDtypeStruct((B, S, H), out_dtype),
        grid=(B, S // tq),
        in_specs=[q_spec, k_spec, v_spec, m_spec],
        out_specs=o_spec,
        compiler_params=pltpu.CompilerParams(
            dimension_semantics=("parallel", "parallel"),
            vmem_limit_bytes=_VMEM_LIMIT),
    )(*args)


# ----------------------------------------------------------------------------
# Model building blocks (glue around the Pallas kernels)
# ----------------------------------------------------------------------------

def transformer_encoder_layer(x, p, num_heads, key_mask_add):
    """PyTorch TransformerEncoderLayer (post-norm, gelu), dropout = eval identity."""
    B, S, H = x.shape
    M = B * S
    x_flat = x.reshape(M, H)                                       # bf16

    # Self-attention: fused QKV projection, attention reads the fused tensor.
    sa = p["self_attn"]
    qkv = linear_pallas(x_flat, sa["w_qkv"], sa["b_qkv"],
                        out_dtype=jnp.bfloat16)                    # [M, 3H] bf16
    attn = mha_core_pallas(qkv.reshape(B, S, 3 * H), key_mask_add, num_heads)
    attn = attn.reshape(M, H)                                      # bf16

    fuse_ln = H <= 2048   # N == H must fit a single output tile
    if fuse_ln:
        # x1 = LN(x + out_proj(attn)); LN fused into the out-proj epilogue.
        x1 = linear_ln_pallas(attn, sa["wo"], sa["bo"], x_flat,
                              p["norm1_g"], p["norm1_b"], out_dtype=jnp.bfloat16)
        # FFN: GELU fused into matmul-1; LN + residual fused into matmul-2.
        h = linear_pallas(x1, p["w1"], p["b1"], activation="gelu",
                          out_dtype=jnp.bfloat16)                  # [M, 4H] bf16
        x2 = linear_ln_pallas(h, p["w2"], p["b2"], x1,
                              p["norm2_g"], p["norm2_b"], out_dtype=jnp.bfloat16)
    else:
        o = linear_pallas(attn, sa["wo"], sa["bo"], out_dtype=jnp.bfloat16)
        x1 = layernorm_pallas(o, p["norm1_g"], p["norm1_b"], residual=x_flat,
                              out_dtype=jnp.bfloat16)
        h = linear_pallas(x1, p["w1"], p["b1"], activation="gelu",
                          out_dtype=jnp.bfloat16)
        ff = linear_pallas(h, p["w2"], p["b2"], out_dtype=jnp.bfloat16)
        x2 = layernorm_pallas(ff, p["norm2_g"], p["norm2_b"], residual=x1,
                              out_dtype=jnp.bfloat16)
    return x2.reshape(B, S, H)


def enhanced_bert4rec_forward(params, cfg, input_ids, movie_genres, movie_years,
                              user_ids, user_genders, user_ages, user_occupations,
                              timestamps=None, return_all_heads=False):
    B, S = input_ids.shape
    H = cfg["hidden_size"]
    M = B * S

    # Item + positional embeddings (f32 glue).
    item_embeds = params["item_emb"][input_ids]                    # [B, S, H]
    seq = item_embeds + params["pos_emb"][:, :S, :]

    # Temporal embeddings.
    if timestamps is not None:
        days = jnp.clip((timestamps % (365 * 24 * 3600)) // (24 * 3600), 0, 365)
        t_emb = params["ts_emb"][days]                             # [B, S, Te]
        t_proj = linear_pallas(t_emb.reshape(M, -1),
                               params["temporal_w"], params["temporal_b"])
        seq = seq + t_proj.reshape(B, S, H)

    # Movie metadata: mean genre embedding + year embedding -> projection.
    g_emb = params["genre_emb"][movie_genres].mean(axis=2)         # [B, S, Ge]
    year_idx = jnp.clip(movie_years - cfg["min_year"], 0,
                        params["year_emb"].shape[0] - 1)
    y_emb = params["year_emb"][year_idx]                           # [B, S, Te]
    movie_meta = jnp.concatenate([g_emb, y_emb], axis=-1)
    movie_meta_proj = linear_pallas(movie_meta.reshape(M, -1),
                                    params["movie_w"], params["movie_b"])

    # User metadata -> projection.
    user_meta = jnp.concatenate([
        params["user_emb"][user_ids], params["gender_emb"][user_genders],
        params["age_emb"][user_ages], params["occ_emb"][user_occupations]], axis=-1)
    user_meta_proj = linear_pallas(user_meta, params["user_w"], params["user_b"])

    enhanced = seq + movie_meta_proj.reshape(B, S, H)

    # Cross-attention (query = sequence, key/value = user vector broadcast over S).
    # All keys/values are identical per batch row -> softmax is uniform -> the
    # attention output equals out_proj(v_proj(user_meta_proj)) at every position:
    # mathematically identical to the full MHA, at ~1/(B*S) of the cost.
    ca = params["cross_attn"]
    v_user = linear_pallas(user_meta_proj, ca["w_qkv"][:, 2 * H:],
                           ca["b_qkv"][2 * H:])
    attended = linear_pallas(v_user, ca["wo"], ca["bo"])           # [B, H]
    combined = enhanced + attended[:, None, :]                     # dropout = identity

    # Transformer encoder with additive key padding mask; bf16 activations.
    key_mask_add = jnp.where(input_ids == cfg["pad_token"], -1e30, 0.0
                             ).astype(jnp.float32)[:, None, :]
    h = combined.astype(jnp.bfloat16)
    for layer in params["layers"]:
        h = transformer_encoder_layer(h, layer, cfg["num_heads"], key_mask_add)

    # Final LayerNorm in f32.
    h_flat = layernorm_pallas(h.reshape(M, H),
                              params["final_ln_g"], params["final_ln_b"],
                              out_dtype=jnp.float32)
    h = h_flat.reshape(B, S, H)

    outputs = {}
    vocab = params["item_head_w"].shape[1]
    outputs["item_logits"] = linear_pallas(
        h_flat, params["item_head_w"], params["item_head_b"],
        out_dtype=jnp.float32).reshape(B, S, vocab)

    if return_all_heads:
        r = linear_pallas(h_flat, params["rating_w1"], params["rating_b1"],
                          activation="relu", out_dtype=jnp.bfloat16)
        r = linear_pallas(r, params["rating_w2"], params["rating_b2"],
                          out_dtype=jnp.float32).reshape(B, S, 5)
        outputs["rating_logits"] = r
        outputs["user_pref_logits"] = linear_pallas(
            h_flat, params["upref_w"], params["upref_b"],
            out_dtype=jnp.float32).reshape(B, S, -1)
        outputs["hidden_states"] = h
    return outputs


# ----------------------------------------------------------------------------
# Deterministic parameter init (Xavier-uniform like the module's _init_weights)
# Matmul weights stored bf16; biases, LN params and embeddings stay f32.
# ----------------------------------------------------------------------------

def init_params(key, cfg):
    H = cfg["hidden_size"]
    Ge = cfg["genre_embed_size"]
    Ue = cfg["user_embed_size"]
    Te = cfg["temporal_embed_size"]
    vocab = cfg["num_items"] + 2
    n_year = cfg["max_year"] - cfg["min_year"] + 1

    keys = iter(jax.random.split(key, 128))

    def xav(shape):
        limit = math.sqrt(6.0 / (shape[0] + shape[1]))
        return jax.random.uniform(next(keys), shape, jnp.float32, -limit, limit)

    def linear(in_dim, out_dim):
        return (xav((in_dim, out_dim)).astype(jnp.bfloat16),
                jnp.zeros((out_dim,), jnp.float32))

    p = {}
    p["item_emb"] = xav((vocab, H)).at[cfg["pad_token"]].set(0.0)   # padding_idx=0
    p["genre_emb"] = xav((cfg["num_genres"], Ge))
    p["year_emb"] = xav((n_year, Te))
    p["user_emb"] = xav((cfg["num_users"], Ue))
    p["gender_emb"] = xav((3, 16))
    p["age_emb"] = xav((8, 16))
    p["occ_emb"] = xav((cfg["num_occupations"], 32))
    p["ts_emb"] = xav((366, Te))

    # Sinusoidal positional encoding (buffer, not learned).
    pos = jnp.arange(cfg["max_seq_len"], dtype=jnp.float32)[:, None]
    div = jnp.exp(jnp.arange(0, H, 2, dtype=jnp.float32) * (-math.log(10000.0) / H))
    pe = jnp.zeros((cfg["max_seq_len"], H), jnp.float32)
    pe = pe.at[:, 0::2].set(jnp.sin(pos * div))
    pe = pe.at[:, 1::2].set(jnp.cos(pos * div))
    p["pos_emb"] = pe[None]

    p["temporal_w"], p["temporal_b"] = linear(Te, H)
    p["movie_w"], p["movie_b"] = linear(Ge + Te, H)
    p["user_w"], p["user_b"] = linear(Ue + 16 + 16 + 32, H)

    def mha_params():
        limit = math.sqrt(6.0 / (H + 3 * H))
        w_qkv = jax.random.uniform(next(keys), (H, 3 * H), jnp.float32,
                                   -limit, limit).astype(jnp.bfloat16)
        wo, bo = linear(H, H)
        return {"w_qkv": w_qkv, "b_qkv": jnp.zeros((3 * H,), jnp.float32),
                "wo": wo, "bo": bo}

    p["cross_attn"] = mha_params()

    layers = []
    for _ in range(cfg["num_layers"]):
        w1, b1 = linear(H, 4 * H)
        w2, b2 = linear(4 * H, H)
        layers.append({
            "self_attn": mha_params(),
            "w1": w1, "b1": b1, "w2": w2, "b2": b2,
            "norm1_g": jnp.ones((H,), jnp.float32),
            "norm1_b": jnp.zeros((H,), jnp.float32),
            "norm2_g": jnp.ones((H,), jnp.float32),
            "norm2_b": jnp.zeros((H,), jnp.float32),
        })
    p["layers"] = layers

    p["final_ln_g"] = jnp.ones((H,), jnp.float32)
    p["final_ln_b"] = jnp.zeros((H,), jnp.float32)
    p["item_head_w"], p["item_head_b"] = linear(H, vocab)
    p["rating_w1"], p["rating_b1"] = linear(H, H // 2)
    p["rating_w2"], p["rating_b2"] = linear(H // 2, 5)
    p["upref_w"], p["upref_b"] = linear(H, Ue)
    return p


# ----------------------------------------------------------------------------
# Demo
# ----------------------------------------------------------------------------

if __name__ == "__main__":
    cfg = dict(
        num_items=50, num_genres=10, num_users=20, num_occupations=7,
        hidden_size=128, num_heads=4, num_layers=2, max_seq_len=16,
        min_year=1930, max_year=2000,
        genre_embed_size=16, user_embed_size=32, temporal_embed_size=16,
        pad_token=0,
    )
    B, S, MAX_GENRES = 2, 8, 3

    root = jax.random.PRNGKey(0)
    k_param, k_in = jax.random.split(root)
    params = init_params(k_param, cfg)

    ks = jax.random.split(k_in, 8)
    input_ids = jax.random.randint(ks[0], (B, S), 1, cfg["num_items"] + 1)
    input_ids = input_ids.at[0, -2:].set(0)                     # some padding
    movie_genres = jax.random.randint(ks[1], (B, S, MAX_GENRES), 0, cfg["num_genres"])
    movie_years = jax.random.randint(ks[2], (B, S), cfg["min_year"], cfg["max_year"] + 1)
    user_ids = jax.random.randint(ks[3], (B,), 0, cfg["num_users"])
    user_genders = jax.random.randint(ks[4], (B,), 0, 3)
    user_ages = jax.random.randint(ks[5], (B,), 0, 8)
    user_occupations = jax.random.randint(ks[6], (B,), 0, cfg["num_occupations"])
    timestamps = jax.random.randint(ks[7], (B, S), 946684800, 978307200)

    fwd = jax.jit(lambda prm, *args: enhanced_bert4rec_forward(
        prm, cfg, *args, return_all_heads=True))

    out = fwd(params, input_ids, movie_genres, movie_years, user_ids,
              user_genders, user_ages, user_occupations, timestamps)
    jax.block_until_ready(out)

    assert out["item_logits"].shape == (B, S, cfg["num_items"] + 2)
    assert out["rating_logits"].shape == (B, S, 5)
    assert out["user_pref_logits"].shape == (B, S, cfg["user_embed_size"])
    assert out["hidden_states"].shape == (B, S, cfg["hidden_size"])
    assert bool(jnp.all(jnp.isfinite(out["item_logits"])))
    assert bool(jnp.all(jnp.isfinite(out["rating_logits"])))
    assert bool(jnp.all(jnp.isfinite(out["hidden_states"])))

    print("KERNEL_OK")
</pallas_src>

<mosaic_0001>
module attributes {stable_mosaic.version = 11 : i64} {
  func.func @_linear_kernel(%arg0: i32, %arg1: i32, %arg2: i32, %arg3: memref<16x16xf32, #tpu.memory_space<vmem>>, %arg4: memref<16x128xbf16, #tpu.memory_space<vmem>>, %arg5: memref<1x128xf32, #tpu.memory_space<vmem>>, %arg6: memref<16x128xf32, #tpu.memory_space<vmem>>, %arg7: memref<16x128xf32, #tpu.memory_space<vmem>>) attributes {dimension_semantics = [#tpu.dimension_semantics<parallel>, #tpu.dimension_semantics<parallel>, #tpu.dimension_semantics<arbitrary>], iteration_bounds = array<i64: 1, 1, 1>, scalar_prefetch = 0 : i64, scratch_operands = 1 : i64, tpu.core_type = #tpu.core_type<tc>, window_params = [{transform_indices = @transform_0, window_bounds = array<i64: 16, 16>}, {transform_indices = @transform_1, window_bounds = array<i64: 16, 128>}, {transform_indices = @transform_2, window_bounds = array<i64: 1, 128>}, {transform_indices = @transform_3, window_bounds = array<i64: 16, 128>}]} {
    %c0_i32 = arith.constant 0 : i32
    %0 = arith.cmpi eq, %arg2, %c0_i32 : i32
    %1 = arith.extui %0 : i1 to i32
    %c0_i32_0 = arith.constant 0 : i32
    %2 = arith.cmpi ne, %1, %c0_i32_0 : i32
    scf.if %2 {
      %cst_10 = arith.constant 0.000000e+00 : f32
      %13 = vector.broadcast %cst_10 : f32 to vector<16x128xf32>
      %c0_11 = arith.constant 0 : index
      %c0_12 = arith.constant 0 : index
      %14 = vector.load %arg7[%c0_11, %c0_12] : memref<16x128xf32, #tpu.memory_space<vmem>>, vector<16x128xf32>
      tpu.vector_store %arg7[%c0_11, %c0_12], %13 {strides = array<i32>} : memref<16x128xf32, #tpu.memory_space<vmem>>, vector<16x128xf32>,
    } else {
    }
    %c0 = arith.constant 0 : index
    %c0_1 = arith.constant 0 : index
    %3 = vector.load %arg7[%c0, %c0_1] : memref<16x128xf32, #tpu.memory_space<vmem>>, vector<16x128xf32>
    %c0_2 = arith.constant 0 : index
    %c0_3 = arith.constant 0 : index
    %4 = vector.load %arg3[%c0_2, %c0_3] : memref<16x16xf32, #tpu.memory_space<vmem>>, vector<16x16xf32>
    %5 = arith.truncf %4 : vector<16x16xf32> to vector<16x16xbf16>
    %c0_4 = arith.constant 0 : index
    %c0_5 = arith.constant 0 : index
    %6 = vector.load %arg4[%c0_4, %c0_5] : memref<16x128xbf16, #tpu.memory_space<vmem>>, vector<16x128xbf16>
    %cst = arith.constant dense<0.000000e+00> : vector<16x128xf32>
    %7 = tpu.matmul %5, %6, %cst {dimension_numbers = #tpu.dot_dimension_numbers<[1], [0], [0], [1], [0, 0, 1, 1], [], []>} : vector<16x16xbf16>, vector<16x128xbf16>, vector<16x128xf32> -> vector<16x128xf32>
    %8 = arith.addf %3, %7 : vector<16x128xf32>
    %c0_6 = arith.constant 0 : index
    %c0_7 = arith.constant 0 : index
    %9 = vector.load %arg7[%c0_6, %c0_7] : memref<16x128xf32, #tpu.memory_space<vmem>>, vector<16x128xf32>
    tpu.vector_store %arg7[%c0_6, %c0_7], %8 {strides = array<i32>} : memref<16x128xf32, #tpu.memory_space<vmem>>, vector<16x128xf32>,
    %c0_i32_8 = arith.constant 0 : i32
    %10 = arith.cmpi eq, %arg2, %c0_i32_8 : i32
    %11 = arith.extui %10 : i1 to i32
    %c0_i32_9 = arith.constant 0 : i32
    %12 = arith.cmpi ne, %11, %c0_i32_9 : i32
    scf.if %12 {
      %c0_10 = arith.constant 0 : index
      %c0_11 = arith.constant 0 : index
      %13 = vector.load %arg7[%c0_10, %c0_11] : memref<16x128xf32, #tpu.memory_space<vmem>>, vector<16x128xf32>
      %c0_12 = arith.constant 0 : index
      %c0_13 = arith.constant 0 : index
      %14 = vector.load %arg5[%c0_12, %c0_13] : memref<1x128xf32, #tpu.memory_space<vmem>>, vector<1x128xf32>
      %15 = vector.broadcast %14 : vector<1x128xf32> to vector<16x128xf32>
      %16 = arith.addf %13, %15 : vector<16x128xf32>
      %c0_14 = arith.constant 0 : index
      %c0_15 = arith.constant 0 : index
      %17 = vector.load %arg6[%c0_14, %c0_15] : memref<16x128xf32, #tpu.memory_space<vmem>>, vector<16x128xf32>
      tpu.vector_store %arg6[%c0_14, %c0_15], %16 {strides = array<i32>} : memref<16x128xf32, #tpu.memory_space<vmem>>, vector<16x128xf32>,
    } else {
    }
    return
  }
  func.func @transform_0(%arg0: i32, %arg1: i32, %arg2: i32) -> (i32, i32) {
    %c0_i32 = arith.constant 0 : i32
    return %arg0, %arg2 : i32, i32
  }
  func.func @transform_1(%arg0: i32, %arg1: i32, %arg2: i32) -> (i32, i32) {
    %c0_i32 = arith.constant 0 : i32
    return %arg2, %arg1 : i32, i32
  }
  func.func @transform_2(%arg0: i32, %arg1: i32, %arg2: i32) -> (i32, i32) {
    %c0_i32 = arith.constant 0 : i32
    %c0_i32_0 = arith.constant 0 : i32
    return %c0_i32, %arg1 : i32, i32
  }
  func.func @transform_3(%arg0: i32, %arg1: i32, %arg2: i32) -> (i32, i32) {
    %c0_i32 = arith.constant 0 : i32
    return %arg0, %arg1 : i32, i32
  }
}

module attributes {stable_mosaic.version = 11 : i64} {
  func.func @_linear_kernel(%arg0: i32, %arg1: i32, %arg2: i32, %arg3: memref<16x32xf32, #tpu.memory_space<vmem>>, %arg4: memref<32x128xbf16, #tpu.memory_space<vmem>>, %arg5: memref<1x128xf32, #tpu.memory_space<vmem>>, %arg6: memref<16x128xf32, #tpu.memory_space<vmem>>, %arg7: memref<16x128xf32, #tpu.memory_space<vmem>>) attributes {dimension_semantics = [#tpu.dimension_semantics<parallel>, #tpu.dimension_semantics<parallel>, #tpu.dimension_semantics<arbitrary>], iteration_bounds = array<i64: 1, 1, 1>, scalar_prefetch = 0 : i64, scratch_operands = 1 : i64, tpu.core_type = #tpu.core_type<tc>, window_params = [{transform_indices = @transform_0, window_bounds = array<i64: 16, 32>}, {transform_indices = @transform_1, window_bounds = array<i64: 32, 128>}, {transform_indices = @transform_2, window_bounds = array<i64: 1, 128>}, {transform_indices = @transform_3, window_bounds = array<i64: 16, 128>}]} {
    %c0_i32 = arith.constant 0 : i32
    %0 = arith.cmpi eq, %arg2, %c0_i32 : i32
    %1 = arith.extui %0 : i1 to i32
    %c0_i32_0 = arith.constant 0 : i32
    %2 = arith.cmpi ne, %1, %c0_i32_0 : i32
    scf.if %2 {
      %cst_10 = arith.constant 0.000000e+00 : f32
      %13 = vector.broadcast %cst_10 : f32 to vector<16x128xf32>
      %c0_11 = arith.constant 0 : index
      %c0_12 = arith.constant 0 : index
      %14 = vector.load %arg7[%c0_11, %c0_12] : memref<16x128xf32, #tpu.memory_space<vmem>>, vector<16x128xf32>
      tpu.vector_store %arg7[%c0_11, %c0_12], %13 {strides = array<i32>} : memref<16x128xf32, #tpu.memory_space<vmem>>, vector<16x128xf32>,
    } else {
    }
    %c0 = arith.constant 0 : index
    %c0_1 = arith.constant 0 : index
    %3 = vector.load %arg7[%c0, %c0_1] : memref<16x128xf32, #tpu.memory_space<vmem>>, vector<16x128xf32>
    %c0_2 = arith.constant 0 : index
    %c0_3 = arith.constant 0 : index
    %4 = vector.load %arg3[%c0_2, %c0_3] : memref<16x32xf32, #tpu.memory_space<vmem>>, vector<16x32xf32>
    %5 = arith.truncf %4 : vector<16x32xf32> to vector<16x32xbf16>
    %c0_4 = arith.constant 0 : index
    %c0_5 = arith.constant 0 : index
    %6 = vector.load %arg4[%c0_4, %c0_5] : memref<32x128xbf16, #tpu.memory_space<vmem>>, vector<32x128xbf16>
    %cst = arith.constant dense<0.000000e+00> : vector<16x128xf32>
    %7 = tpu.matmul %5, %6, %cst {dimension_numbers = #tpu.dot_dimension_numbers<[1], [0], [0], [1], [0, 0, 1, 1], [], []>} : vector<16x32xbf16>, vector<32x128xbf16>, vector<16x128xf32> -> vector<16x128xf32>
    %8 = arith.addf %3, %7 : vector<16x128xf32>
    %c0_6 = arith.constant 0 : index
    %c0_7 = arith.constant 0 : index
    %9 = vector.load %arg7[%c0_6, %c0_7] : memref<16x128xf32, #tpu.memory_space<vmem>>, vector<16x128xf32>
    tpu.vector_store %arg7[%c0_6, %c0_7], %8 {strides = array<i32>} : memref<16x128xf32, #tpu.memory_space<vmem>>, vector<16x128xf32>,
    %c0_i32_8 = arith.constant 0 : i32
    %10 = arith.cmpi eq, %arg2, %c0_i32_8 : i32
    %11 = arith.extui %10 : i1 to i32
    %c0_i32_9 = arith.constant 0 : i32
    %12 = arith.cmpi ne, %11, %c0_i32_9 : i32
    scf.if %12 {
      %c0_10 = arith.constant 0 : index
      %c0_11 = arith.constant 0 : index
      %13 = vector.load %arg7[%c0_10, %c0_11] : memref<16x128xf32, #tpu.memory_space<vmem>>, vector<16x128xf32>
      %c0_12 = arith.constant 0 : index
      %c0_13 = arith.constant 0 : index
      %14 = vector.load %arg5[%c0_12, %c0_13] : memref<1x128xf32, #tpu.memory_space<vmem>>, vector<1x128xf32>
      %15 = vector.broadcast %14 : vector<1x128xf32> to vector<16x128xf32>
      %16 = arith.addf %13, %15 : vector<16x128xf32>
      %c0_14 = arith.constant 0 : index
      %c0_15 = arith.constant 0 : index
      %17 = vector.load %arg6[%c0_14, %c0_15] : memref<16x128xf32, #tpu.memory_space<vmem>>, vector<16x128xf32>
      tpu.vector_store %arg6[%c0_14, %c0_15], %16 {strides = array<i32>} : memref<16x128xf32, #tpu.memory_space<vmem>>, vector<16x128xf32>,
    } else {
    }
    return
  }
  func.func @transform_0(%arg0: i32, %arg1: i32, %arg2: i32) -> (i32, i32) {
    %c0_i32 = arith.constant 0 : i32
    return %arg0, %arg2 : i32, i32
  }
  func.func @transform_1(%arg0: i32, %arg1: i32, %arg2: i32) -> (i32, i32) {
    %c0_i32 = arith.constant 0 : i32
    return %arg2, %arg1 : i32, i32
  }
  func.func @transform_2(%arg0: i32, %arg1: i32, %arg2: i32) -> (i32, i32) {
    %c0_i32 = arith.constant 0 : i32
    %c0_i32_0 = arith.constant 0 : i32
    return %c0_i32, %arg1 : i32, i32
  }
  func.func @transform_3(%arg0: i32, %arg1: i32, %arg2: i32) -> (i32, i32) {
    %c0_i32 = arith.constant 0 : i32
    return %arg0, %arg1 : i32, i32
  }
}

module attributes {stable_mosaic.version = 11 : i64} {
  func.func @_linear_kernel(%arg0: i32, %arg1: i32, %arg2: i32, %arg3: memref<2x96xf32, #tpu.memory_space<vmem>>, %arg4: memref<96x128xbf16, #tpu.memory_space<vmem>>, %arg5: memref<1x128xf32, #tpu.memory_space<vmem>>, %arg6: memref<2x128xf32, #tpu.memory_space<vmem>>, %arg7: memref<2x128xf32, #tpu.memory_space<vmem>>) attributes {dimension_semantics = [#tpu.dimension_semantics<parallel>, #tpu.dimension_semantics<parallel>, #tpu.dimension_semantics<arbitrary>], iteration_bounds = array<i64: 1, 1, 1>, scalar_prefetch = 0 : i64, scratch_operands = 1 : i64, tpu.core_type = #tpu.core_type<tc>, window_params = [{transform_indices = @transform_0, window_bounds = array<i64: 2, 96>}, {transform_indices = @transform_1, window_bounds = array<i64: 96, 128>}, {transform_indices = @transform_2, window_bounds = array<i64: 1, 128>}, {transform_indices = @transform_3, window_bounds = array<i64: 2, 128>}]} {
    %c0_i32 = arith.constant 0 : i32
    %0 = arith.cmpi eq, %arg2, %c0_i32 : i32
    %1 = arith.extui %0 : i1 to i32
    %c0_i32_0 = arith.constant 0 : i32
    %2 = arith.cmpi ne, %1, %c0_i32_0 : i32
    scf.if %2 {
      %cst_10 = arith.constant 0.000000e+00 : f32
      %13 = vector.broadcast %cst_10 : f32 to vector<2x128xf32>
      %c0_11 = arith.constant 0 : index
      %c0_12 = arith.constant 0 : index
      %14 = vector.load %arg7[%c0_11, %c0_12] : memref<2x128xf32, #tpu.memory_space<vmem>>, vector<2x128xf32>
      tpu.vector_store %arg7[%c0_11, %c0_12], %13 {strides = array<i32>} : memref<2x128xf32, #tpu.memory_space<vmem>>, vector<2x128xf32>,
    } else {
    }
    %c0 = arith.constant 0 : index
    %c0_1 = arith.constant 0 : index
    %3 = vector.load %arg7[%c0, %c0_1] : memref<2x128xf32, #tpu.memory_space<vmem>>, vector<2x128xf32>
    %c0_2 = arith.constant 0 : index
    %c0_3 = arith.constant 0 : index
    %4 = vector.load %arg3[%c0_2, %c0_3] : memref<2x96xf32, #tpu.memory_space<vmem>>, vector<2x96xf32>
    %5 = arith.truncf %4 : vector<2x96xf32> to vector<2x96xbf16>
    %c0_4 = arith.constant 0 : index
    %c0_5 = arith.constant 0 : index
    %6 = vector.load %arg4[%c0_4, %c0_5] : memref<96x128xbf16, #tpu.memory_space<vmem>>, vector<96x128xbf16>
    %cst = arith.constant dense<0.000000e+00> : vector<2x128xf32>
    %7 = tpu.matmul %5, %6, %cst {dimension_numbers = #tpu.dot_dimension_numbers<[1], [0], [0], [1], [0, 0, 1, 1], [], []>} : vector<2x96xbf16>, vector<96x128xbf16>, vector<2x128xf32> -> vector<2x128xf32>
    %8 = arith.addf %3, %7 : vector<2x128xf32>
    %c0_6 = arith.constant 0 : index
    %c0_7 = arith.constant 0 : index
    %9 = vector.load %arg7[%c0_6, %c0_7] : memref<2x128xf32, #tpu.memory_space<vmem>>, vector<2x128xf32>
    tpu.vector_store %arg7[%c0_6, %c0_7], %8 {strides = array<i32>} : memref<2x128xf32, #tpu.memory_space<vmem>>, vector<2x128xf32>,
    %c0_i32_8 = arith.constant 0 : i32
    %10 = arith.cmpi eq, %arg2, %c0_i32_8 : i32
    %11 = arith.extui %10 : i1 to i32
    %c0_i32_9 = arith.constant 0 : i32
    %12 = arith.cmpi ne, %11, %c0_i32_9 : i32
    scf.if %12 {
      %c0_10 = arith.constant 0 : index
      %c0_11 = arith.constant 0 : index
      %13 = vector.load %arg7[%c0_10, %c0_11] : memref<2x128xf32, #tpu.memory_space<vmem>>, vector<2x128xf32>
      %c0_12 = arith.constant 0 : index
      %c0_13 = arith.constant 0 : index
      %14 = vector.load %arg5[%c0_12, %c0_13] : memref<1x128xf32, #tpu.memory_space<vmem>>, vector<1x128xf32>
      %15 = vector.broadcast %14 : vector<1x128xf32> to vector<2x128xf32>
      %16 = arith.addf %13, %15 : vector<2x128xf32>
      %c0_14 = arith.constant 0 : index
      %c0_15 = arith.constant 0 : index
      %17 = vector.load %arg6[%c0_14, %c0_15] : memref<2x128xf32, #tpu.memory_space<vmem>>, vector<2x128xf32>
      tpu.vector_store %arg6[%c0_14, %c0_15], %16 {strides = array<i32>} : memref<2x128xf32, #tpu.memory_space<vmem>>, vector<2x128xf32>,
    } else {
    }
    return
  }
  func.func @transform_0(%arg0: i32, %arg1: i32, %arg2: i32) -> (i32, i32) {
    %c0_i32 = arith.constant 0 : i32
    return %arg0, %arg2 : i32, i32
  }
  func.func @transform_1(%arg0: i32, %arg1: i32, %arg2: i32) -> (i32, i32) {
    %c0_i32 = arith.constant 0 : i32
    return %arg2, %arg1 : i32, i32
  }
  func.func @transform_2(%arg0: i32, %arg1: i32, %arg2: i32) -> (i32, i32) {
    %c0_i32 = arith.constant 0 : i32
    %c0_i32_0 = arith.constant 0 : i32
    return %c0_i32, %arg1 : i32, i32
  }
  func.func @transform_3(%arg0: i32, %arg1: i32, %arg2: i32) -> (i32, i32) {
    %c0_i32 = arith.constant 0 : i32
    return %arg0, %arg1 : i32, i32
  }
}

module attributes {stable_mosaic.version = 11 : i64} {
  func.func @_linear_kernel(%arg0: i32, %arg1: i32, %arg2: i32, %arg3: memref<2x128xf32, #tpu.memory_space<vmem>>, %arg4: memref<128x128xbf16, #tpu.memory_space<vmem>>, %arg5: memref<1x128xf32, #tpu.memory_space<vmem>>, %arg6: memref<2x128xf32, #tpu.memory_space<vmem>>, %arg7: memref<2x128xf32, #tpu.memory_space<vmem>>) attributes {dimension_semantics = [#tpu.dimension_semantics<parallel>, #tpu.dimension_semantics<parallel>, #tpu.dimension_semantics<arbitrary>], iteration_bounds = array<i64: 1, 1, 1>, scalar_prefetch = 0 : i64, scratch_operands = 1 : i64, tpu.core_type = #tpu.core_type<tc>, window_params = [{transform_indices = @transform_0, window_bounds = array<i64: 2, 128>}, {transform_indices = @transform_1, window_bounds = array<i64: 128, 128>}, {transform_indices = @transform_2, window_bounds = array<i64: 1, 128>}, {transform_indices = @transform_3, window_bounds = array<i64: 2, 128>}]} {
    %c0_i32 = arith.constant 0 : i32
    %0 = arith.cmpi eq, %arg2, %c0_i32 : i32
    %1 = arith.extui %0 : i1 to i32
    %c0_i32_0 = arith.constant 0 : i32
    %2 = arith.cmpi ne, %1, %c0_i32_0 : i32
    scf.if %2 {
      %cst_10 = arith.constant 0.000000e+00 : f32
      %13 = vector.broadcast %cst_10 : f32 to vector<2x128xf32>
      %c0_11 = arith.constant 0 : index
      %c0_12 = arith.constant 0 : index
      %14 = vector.load %arg7[%c0_11, %c0_12] : memref<2x128xf32, #tpu.memory_space<vmem>>, vector<2x128xf32>
      tpu.vector_store %arg7[%c0_11, %c0_12], %13 {strides = array<i32>} : memref<2x128xf32, #tpu.memory_space<vmem>>, vector<2x128xf32>,
    } else {
    }
    %c0 = arith.constant 0 : index
    %c0_1 = arith.constant 0 : index
    %3 = vector.load %arg7[%c0, %c0_1] : memref<2x128xf32, #tpu.memory_space<vmem>>, vector<2x128xf32>
    %c0_2 = arith.constant 0 : index
    %c0_3 = arith.constant 0 : index
    %4 = vector.load %arg3[%c0_2, %c0_3] : memref<2x128xf32, #tpu.memory_space<vmem>>, vector<2x128xf32>
    %5 = arith.truncf %4 : vector<2x128xf32> to vector<2x128xbf16>
    %c0_4 = arith.constant 0 : index
    %c0_5 = arith.constant 0 : index
    %6 = vector.load %arg4[%c0_4, %c0_5] : memref<128x128xbf16, #tpu.memory_space<vmem>>, vector<128x128xbf16>
    %cst = arith.constant dense<0.000000e+00> : vector<2x128xf32>
    %7 = tpu.matmul %5, %6, %cst {dimension_numbers = #tpu.dot_dimension_numbers<[1], [0], [0], [1], [0, 0, 1, 1], [], []>} : vector<2x128xbf16>, vector<128x128xbf16>, vector<2x128xf32> -> vector<2x128xf32>
    %8 = arith.addf %3, %7 : vector<2x128xf32>
    %c0_6 = arith.constant 0 : index
    %c0_7 = arith.constant 0 : index
    %9 = vector.load %arg7[%c0_6, %c0_7] : memref<2x128xf32, #tpu.memory_space<vmem>>, vector<2x128xf32>
    tpu.vector_store %arg7[%c0_6, %c0_7], %8 {strides = array<i32>} : memref<2x128xf32, #tpu.memory_space<vmem>>, vector<2x128xf32>,
    %c0_i32_8 = arith.constant 0 : i32
    %10 = arith.cmpi eq, %arg2, %c0_i32_8 : i32
    %11 = arith.extui %10 : i1 to i32
    %c0_i32_9 = arith.constant 0 : i32
    %12 = arith.cmpi ne, %11, %c0_i32_9 : i32
    scf.if %12 {
      %c0_10 = arith.constant 0 : index
      %c0_11 = arith.constant 0 : index
      %13 = vector.load %arg7[%c0_10, %c0_11] : memref<2x128xf32, #tpu.memory_space<vmem>>, vector<2x128xf32>
      %c0_12 = arith.constant 0 : index
      %c0_13 = arith.constant 0 : index
      %14 = vector.load %arg5[%c0_12, %c0_13] : memref<1x128xf32, #tpu.memory_space<vmem>>, vector<1x128xf32>
      %15 = vector.broadcast %14 : vector<1x128xf32> to vector<2x128xf32>
      %16 = arith.addf %13, %15 : vector<2x128xf32>
      %c0_14 = arith.constant 0 : index
      %c0_15 = arith.constant 0 : index
      %17 = vector.load %arg6[%c0_14, %c0_15] : memref<2x128xf32, #tpu.memory_space<vmem>>, vector<2x128xf32>
      tpu.vector_store %arg6[%c0_14, %c0_15], %16 {strides = array<i32>} : memref<2x128xf32, #tpu.memory_space<vmem>>, vector<2x128xf32>,
    } else {
    }
    return
  }
  func.func @transform_0(%arg0: i32, %arg1: i32, %arg2: i32) -> (i32, i32) {
    %c0_i32 = arith.constant 0 : i32
    return %arg0, %arg2 : i32, i32
  }
  func.func @transform_1(%arg0: i32, %arg1: i32, %arg2: i32) -> (i32, i32) {
    %c0_i32 = arith.constant 0 : i32
    return %arg2, %arg1 : i32, i32
  }
  func.func @transform_2(%arg0: i32, %arg1: i32, %arg2: i32) -> (i32, i32) {
    %c0_i32 = arith.constant 0 : i32
    %c0_i32_0 = arith.constant 0 : i32
    return %c0_i32, %arg1 : i32, i32
  }
  func.func @transform_3(%arg0: i32, %arg1: i32, %arg2: i32) -> (i32, i32) {
    %c0_i32 = arith.constant 0 : i32
    return %arg0, %arg1 : i32, i32
  }
}

module attributes {stable_mosaic.version = 11 : i64} {
  func.func @_linear_kernel(%arg0: i32, %arg1: i32, %arg2: i32, %arg3: memref<16x128xbf16, #tpu.memory_space<vmem>>, %arg4: memref<128x128xbf16, #tpu.memory_space<vmem>>, %arg5: memref<1x128xf32, #tpu.memory_space<vmem>>, %arg6: memref<16x128xbf16, #tpu.memory_space<vmem>>, %arg7: memref<16x128xf32, #tpu.memory_space<vmem>>) attributes {dimension_semantics = [#tpu.dimension_semantics<parallel>, #tpu.dimension_semantics<parallel>, #tpu.dimension_semantics<arbitrary>], iteration_bounds = array<i64: 1, 3, 1>, scalar_prefetch = 0 : i64, scratch_operands = 1 : i64, tpu.core_type = #tpu.core_type<tc>, window_params = [{transform_indices = @transform_0, window_bounds = array<i64: 16, 128>}, {transform_indices = @transform_1, window_bounds = array<i64: 128, 128>}, {transform_indices = @transform_2, window_bounds = array<i64: 1, 128>}, {transform_indices = @transform_3, window_bounds = array<i64: 16, 128>}]} {
    %c0_i32 = arith.constant 0 : i32
    %0 = arith.cmpi eq, %arg2, %c0_i32 : i32
    %1 = arith.extui %0 : i1 to i32
    %c0_i32_0 = arith.constant 0 : i32
    %2 = arith.cmpi ne, %1, %c0_i32_0 : i32
    scf.if %2 {
      %cst_10 = arith.constant 0.000000e+00 : f32
      %12 = vector.broadcast %cst_10 : f32 to vector<16x128xf32>
      %c0_11 = arith.constant 0 : index
      %c0_12 = arith.constant 0 : index
      %13 = vector.load %arg7[%c0_11, %c0_12] : memref<16x128xf32, #tpu.memory_space<vmem>>, vector<16x128xf32>
      tpu.vector_store %arg7[%c0_11, %c0_12], %12 {strides = array<i32>} : memref<16x128xf32, #tpu.memory_space<vmem>>, vector<16x128xf32>,
    } else {
    }
    %c0 = arith.constant 0 : index
    %c0_1 = arith.constant 0 : index
    %3 = vector.load %arg7[%c0, %c0_1] : memref<16x128xf32, #tpu.memory_space<vmem>>, vector<16x128xf32>
    %c0_2 = arith.constant 0 : index
    %c0_3 = arith.constant 0 : index
    %4 = vector.load %arg3[%c0_2, %c0_3] : memref<16x128xbf16, #tpu.memory_space<vmem>>, vector<16x128xbf16>
    %c0_4 = arith.constant 0 : index
    %c0_5 = arith.constant 0 : index
    %5 = vector.load %arg4[%c0_4, %c0_5] : memref<128x128xbf16, #tpu.memory_space<vmem>>, vector<128x128xbf16>
    %cst = arith.constant dense<0.000000e+00> : vector<16x128xf32>
    %6 = tpu.matmul %4, %5, %cst {dimension_numbers = #tpu.dot_dimension_numbers<[1], [0], [0], [1], [0, 0, 1, 1], [], []>} : vector<16x128xbf16>, vector<128x128xbf16>, vector<16x128xf32> -> vector<16x128xf32>
    %7 = arith.addf %3, %6 : vector<16x128xf32>
    %c0_6 = arith.constant 0 : index
    %c0_7 = arith.constant 0 : index
    %8 = vector.load %arg7[%c0_6, %c0_7] : memref<16x128xf32, #tpu.memory_space<vmem>>, vector<16x128xf32>
    tpu.vector_store %arg7[%c0_6, %c0_7], %7 {strides = array<i32>} : memref<16x128xf32, #tpu.memory_space<vmem>>, vector<16x128xf32>,
    %c0_i32_8 = arith.constant 0 : i32
    %9 = arith.cmpi eq, %arg2, %c0_i32_8 : i32
    %10 = arith.extui %9 : i1 to i32
    %c0_i32_9 = arith.constant 0 : i32
    %11 = arith.cmpi ne, %10, %c0_i32_9 : i32
    scf.if %11 {
      %c0_10 = arith.constant 0 : index
      %c0_11 = arith.constant 0 : index
      %12 = vector.load %arg7[%c0_10, %c0_11] : memref<16x128xf32, #tpu.memory_space<vmem>>, vector<16x128xf32>
      %c0_12 = arith.constant 0 : index
      %c0_13 = arith.constant 0 : index
      %13 = vector.load %arg5[%c0_12, %c0_13] : memref<1x128xf32, #tpu.memory_space<vmem>>, vector<1x128xf32>
      %14 = vector.broadcast %13 : vector<1x128xf32> to vector<16x128xf32>
      %15 = arith.addf %12, %14 : vector<16x128xf32>
      %16 = arith.truncf %15 : vector<16x128xf32> to vector<16x128xbf16>
      %c0_14 = arith.constant 0 : index
      %c0_15 = arith.constant 0 : index
      %17 = vector.load %arg6[%c0_14, %c0_15] : memref<16x128xbf16, #tpu.memory_space<vmem>>, vector<16x128xbf16>
      tpu.vector_store %arg6[%c0_14, %c0_15], %16 {strides = array<i32>} : memref<16x128xbf16, #tpu.memory_space<vmem>>, vector<16x128xbf16>,
    } else {
    }
    return
  }
  func.func @transform_0(%arg0: i32, %arg1: i32, %arg2: i32) -> (i32, i32) {
    %c0_i32 = arith.constant 0 : i32
    return %arg0, %arg2 : i32, i32
  }
  func.func @transform_1(%arg0: i32, %arg1: i32, %arg2: i32) -> (i32, i32) {
    %c0_i32 = arith.constant 0 : i32
    return %arg2, %arg1 : i32, i32
  }
  func.func @transform_2(%arg0: i32, %arg1: i32, %arg2: i32) -> (i32, i32) {
    %c0_i32 = arith.constant 0 : i32
    %c0_i32_0 = arith.constant 0 : i32
    return %c0_i32, %arg1 : i32, i32
  }
  func.func @transform_3(%arg0: i32, %arg1: i32, %arg2: i32) -> (i32, i32) {
    %c0_i32 = arith.constant 0 : i32
    return %arg0, %arg1 : i32, i32
  }
}

module attributes {stable_mosaic.version = 11 : i64} {
  func.func @_linear_ln_kernel(%arg0: i32, %arg1: i32, %arg2: memref<16x128xbf16, #tpu.memory_space<vmem>>, %arg3: memref<128x128xbf16, #tpu.memory_space<vmem>>, %arg4: memref<1x128xf32, #tpu.memory_space<vmem>>, %arg5: memref<16x128xbf16, #tpu.memory_space<vmem>>, %arg6: memref<1x128xf32, #tpu.memory_space<vmem>>, %arg7: memref<1x128xf32, #tpu.memory_space<vmem>>, %arg8: memref<16x128xbf16, #tpu.memory_space<vmem>>, %arg9: memref<16x128xf32, #tpu.memory_space<vmem>>) attributes {dimension_semantics = [#tpu.dimension_semantics<parallel>, #tpu.dimension_semantics<arbitrary>], iteration_bounds = array<i64: 1, 1>, scalar_prefetch = 0 : i64, scratch_operands = 1 : i64, tpu.core_type = #tpu.core_type<tc>, window_params = [{transform_indices = @transform_0, window_bounds = array<i64: 16, 128>}, {transform_indices = @transform_1, window_bounds = array<i64: 128, 128>}, {pipeline_mode = #tpu.pipeline_mode<synchronous>, transform_indices = @transform_2, window_bounds = array<i64: 1, 128>}, {transform_indices = @transform_3, window_bounds = array<i64: 16, 128>}, {pipeline_mode = #tpu.pipeline_mode<synchronous>, transform_indices = @transform_4, window_bounds = array<i64: 1, 128>}, {pipeline_mode = #tpu.pipeline_mode<synchronous>, transform_indices = @transform_5, window_bounds = array<i64: 1, 128>}, {transform_indices = @transform_6, window_bounds = array<i64: 16, 128>}]} {
    %c0_i32 = arith.constant 0 : i32
    %0 = arith.cmpi eq, %arg1, %c0_i32 : i32
    %1 = arith.extui %0 : i1 to i32
    %c0_i32_0 = arith.constant 0 : i32
    %2 = arith.cmpi ne, %1, %c0_i32_0 : i32
    scf.if %2 {
      %cst_10 = arith.constant 0.000000e+00 : f32
      %12 = vector.broadcast %cst_10 : f32 to vector<16x128xf32>
      %c0_11 = arith.constant 0 : index
      %c0_12 = arith.constant 0 : index
      %13 = vector.load %arg9[%c0_11, %c0_12] : memref<16x128xf32, #tpu.memory_space<vmem>>, vector<16x128xf32>
      tpu.vector_store %arg9[%c0_11, %c0_12], %12 {strides = array<i32>} : memref<16x128xf32, #tpu.memory_space<vmem>>, vector<16x128xf32>,
    } else {
    }
    %c0 = arith.constant 0 : index
    %c0_1 = arith.constant 0 : index
    %3 = vector.load %arg9[%c0, %c0_1] : memref<16x128xf32, #tpu.memory_space<vmem>>, vector<16x128xf32>
    %c0_2 = arith.constant 0 : index
    %c0_3 = arith.constant 0 : index
    %4 = vector.load %arg2[%c0_2, %c0_3] : memref<16x128xbf16, #tpu.memory_space<vmem>>, vector<16x128xbf16>
    %c0_4 = arith.constant 0 : index
    %c0_5 = arith.constant 0 : index
    %5 = vector.load %arg3[%c0_4, %c0_5] : memref<128x128xbf16, #tpu.memory_space<vmem>>, vector<128x128xbf16>
    %cst = arith.constant dense<0.000000e+00> : vector<16x128xf32>
    %6 = tpu.matmul %4, %5, %cst {dimension_numbers = #tpu.dot_dimension_numbers<[1], [0], [0], [1], [0, 0, 1, 1], [], []>} : vector<16x128xbf16>, vector<128x128xbf16>, vector<16x128xf32> -> vector<16x128xf32>
    %7 = arith.addf %3, %6 : vector<16x128xf32>
    %c0_6 = arith.constant 0 : index
    %c0_7 = arith.constant 0 : index
    %8 = vector.load %arg9[%c0_6, %c0_7] : memref<16x128xf32, #tpu.memory_space<vmem>>, vector<16x128xf32>
    tpu.vector_store %arg9[%c0_6, %c0_7], %7 {strides = array<i32>} : memref<16x128xf32, #tpu.memory_space<vmem>>, vector<16x128xf32>,
    %c0_i32_8 = arith.constant 0 : i32
    %9 = arith.cmpi eq, %arg1, %c0_i32_8 : i32
    %10 = arith.extui %9 : i1 to i32
    %c0_i32_9 = arith.constant 0 : i32
    %11 = arith.cmpi ne, %10, %c0_i32_9 : i32
    scf.if %11 {
      %c0_10 = arith.constant 0 : index
      %c0_11 = arith.constant 0 : index
      %12 = vector.load %arg9[%c0_10, %c0_11] : memref<16x128xf32, #tpu.memory_space<vmem>>, vector<16x128xf32>
      %c0_12 = arith.constant 0 : index
      %c0_13 = arith.constant 0 : index
      %13 = vector.load %arg4[%c0_12, %c0_13] : memref<1x128xf32, #tpu.memory_space<vmem>>, vector<1x128xf32>
      %14 = vector.broadcast %13 : vector<1x128xf32> to vector<16x128xf32>
      %15 = arith.addf %12, %14 : vector<16x128xf32>
      %c0_14 = arith.constant 0 : index
      %c0_15 = arith.constant 0 : index
      %16 = vector.load %arg5[%c0_14, %c0_15] : memref<16x128xbf16, #tpu.memory_space<vmem>>, vector<16x128xbf16>
      %17 = arith.extf %16 : vector<16x128xbf16> to vector<16x128xf32>
      %18 = arith.addf %15, %17 : vector<16x128xf32>
      %cst_16 = arith.constant dense<0.000000e+00> : vector<16xf32>
      %19 = vector.multi_reduction <add>, %18, %cst_16 [1] : vector<16x128xf32> to vector<16xf32>
      %20 = vector.shape_cast %19 : vector<16xf32> to vector<16x1xf32>
      %cst_17 = arith.constant 1.280000e+02 : f32
      %21 = vector.broadcast %cst_17 : f32 to vector<16x1xf32>
      %22 = arith.divf %20, %21 : vector<16x1xf32>
      %23 = vector.broadcast %22 : vector<16x1xf32> to vector<16x128xf32>
      %24 = arith.subf %18, %23 : vector<16x128xf32>
      %25 = arith.mulf %24, %24 : vector<16x128xf32>
      %cst_18 = arith.constant dense<0.000000e+00> : vector<16xf32>
      %26 = vector.multi_reduction <add>, %25, %cst_18 [1] : vector<16x128xf32> to vector<16xf32>
      %27 = vector.shape_cast %26 : vector<16xf32> to vector<16x1xf32>
      %cst_19 = arith.constant 1.280000e+02 : f32
      %28 = vector.broadcast %cst_19 : f32 to vector<16x1xf32>
      %29 = arith.divf %27, %28 : vector<16x1xf32>
      %cst_20 = arith.constant 9.99999974E-6 : f32
      %30 = vector.broadcast %cst_20 : f32 to vector<16x1xf32>
      %31 = arith.addf %29, %30 : vector<16x1xf32>
      %32 = math.rsqrt %31 : vector<16x1xf32>
      %33 = vector.broadcast %32 : vector<16x1xf32> to vector<16x128xf32>
      %34 = arith.mulf %24, %33 : vector<16x128xf32>
      %c0_21 = arith.constant 0 : index
      %c0_22 = arith.constant 0 : index
      %35 = vector.load %arg6[%c0_21, %c0_22] : memref<1x128xf32, #tpu.memory_space<vmem>>, vector<1x128xf32>
      %36 = vector.broadcast %35 : vector<1x128xf32> to vector<16x128xf32>
      %37 = arith.mulf %34, %36 : vector<16x128xf32>
      %c0_23 = arith.constant 0 : index
      %c0_24 = arith.constant 0 : index
      %38 = vector.load %arg7[%c0_23, %c0_24] : memref<1x128xf32, #tpu.memory_space<vmem>>, vector<1x128xf32>
      %39 = vector.broadcast %38 : vector<1x128xf32> to vector<16x128xf32>
      %40 = arith.addf %37, %39 : vector<16x128xf32>
      %41 = arith.truncf %40 : vector<16x128xf32> to vector<16x128xbf16>
      %c0_25 = arith.constant 0 : index
      %c0_26 = arith.constant 0 : index
      %42 = vector.load %arg8[%c0_25, %c0_26] : memref<16x128xbf16, #tpu.memory_space<vmem>>, vector<16x128xbf16>
      tpu.vector_store %arg8[%c0_25, %c0_26], %41 {strides = array<i32>} : memref<16x128xbf16, #tpu.memory_space<vmem>>, vector<16x128xbf16>,
    } else {
    }
    return
  }
  func.func @transform_0(%arg0: i32, %arg1: i32) -> (i32, i32) {
    %c0_i32 = arith.constant 0 : i32
    return %arg0, %arg1 : i32, i32
  }
  func.func @transform_1(%arg0: i32, %arg1: i32) -> (i32, i32) {
    %c0_i32 = arith.constant 0 : i32
    %c0_i32_0 = arith.constant 0 : i32
    return %arg1, %c0_i32 : i32, i32
  }
  func.func @transform_2(%arg0: i32, %arg1: i32) -> (i32, i32) {
    %c0_i32 = arith.constant 0 : i32
    %c0_i32_0 = arith.constant 0 : i32
    %c0_i32_1 = arith.constant 0 : i32
    return %c0_i32, %c0_i32_0 : i32, i32
  }
  func.func @transform_3(%arg0: i32, %arg1: i32) -> (i32, i32) {
    %c0_i32 = arith.constant 0 : i32
    %c0_i32_0 = arith.constant 0 : i32
    return %arg0, %c0_i32 : i32, i32
  }
  func.func @transform_4(%arg0: i32, %arg1: i32) -> (i32, i32) {
    %c0_i32 = arith.constant 0 : i32
    %c0_i32_0 = arith.constant 0 : i32
    %c0_i32_1 = arith.constant 0 : i32
    return %c0_i32, %c0_i32_0 : i32, i32
  }
  func.func @transform_5(%arg0: i32, %arg1: i32) -> (i32, i32) {
    %c0_i32 = arith.constant 0 : i32
    %c0_i32_0 = arith.constant 0 : i32
    %c0_i32_1 = arith.constant 0 : i32
    return %c0_i32, %c0_i32_0 : i32, i32
  }
  func.func @transform_6(%arg0: i32, %arg1: i32) -> (i32, i32) {
    %c0_i32 = arith.constant 0 : i32
    %c0_i32_0 = arith.constant 0 : i32
    return %arg0, %c0_i32 : i32, i32
  }
}

module attributes {stable_mosaic.version = 11 : i64} {
  func.func @_linear_kernel(%arg0: i32, %arg1: i32, %arg2: i32, %arg3: memref<16x128xbf16, #tpu.memory_space<vmem>>, %arg4: memref<128x256xbf16, #tpu.memory_space<vmem>>, %arg5: memref<1x256xf32, #tpu.memory_space<vmem>>, %arg6: memref<16x256xbf16, #tpu.memory_space<vmem>>, %arg7: memref<16x256xf32, #tpu.memory_space<vmem>>) attributes {dimension_semantics = [#tpu.dimension_semantics<parallel>, #tpu.dimension_semantics<parallel>, #tpu.dimension_semantics<arbitrary>], iteration_bounds = array<i64: 1, 2, 1>, scalar_prefetch = 0 : i64, scratch_operands = 1 : i64, tpu.core_type = #tpu.core_type<tc>, window_params = [{transform_indices = @transform_0, window_bounds = array<i64: 16, 128>}, {transform_indices = @transform_1, window_bounds = array<i64: 128, 256>}, {transform_indices = @transform_2, window_bounds = array<i64: 1, 256>}, {transform_indices = @transform_3, window_bounds = array<i64: 16, 256>}]} {
    %c0_i32 = arith.constant 0 : i32
    %0 = arith.cmpi eq, %arg2, %c0_i32 : i32
    %1 = arith.extui %0 : i1 to i32
    %c0_i32_0 = arith.constant 0 : i32
    %2 = arith.cmpi ne, %1, %c0_i32_0 : i32
    scf.if %2 {
      %cst_10 = arith.constant 0.000000e+00 : f32
      %12 = vector.broadcast %cst_10 : f32 to vector<16x256xf32>
      %c0_11 = arith.constant 0 : index
      %c0_12 = arith.constant 0 : index
      %13 = vector.load %arg7[%c0_11, %c0_12] : memref<16x256xf32, #tpu.memory_space<vmem>>, vector<16x256xf32>
      tpu.vector_store %arg7[%c0_11, %c0_12], %12 {strides = array<i32>} : memref<16x256xf32, #tpu.memory_space<vmem>>, vector<16x256xf32>,
    } else {
    }
    %c0 = arith.constant 0 : index
    %c0_1 = arith.constant 0 : index
    %3 = vector.load %arg7[%c0, %c0_1] : memref<16x256xf32, #tpu.memory_space<vmem>>, vector<16x256xf32>
    %c0_2 = arith.constant 0 : index
    %c0_3 = arith.constant 0 : index
    %4 = vector.load %arg3[%c0_2, %c0_3] : memref<16x128xbf16, #tpu.memory_space<vmem>>, vector<16x128xbf16>
    %c0_4 = arith.constant 0 : index
    %c0_5 = arith.constant 0 : index
    %5 = vector.load %arg4[%c0_4, %c0_5] : memref<128x256xbf16, #tpu.memory_space<vmem>>, vector<128x256xbf16>
    %cst = arith.constant dense<0.000000e+00> : vector<16x256xf32>
    %6 = tpu.matmul %4, %5, %cst {dimension_numbers = #tpu.dot_dimension_numbers<[1], [0], [0], [1], [0, 0, 1, 1], [], []>} : vector<16x128xbf16>, vector<128x256xbf16>, vector<16x256xf32> -> vector<16x256xf32>
    %7 = arith.addf %3, %6 : vector<16x256xf32>
    %c0_6 = arith.constant 0 : index
    %c0_7 = arith.constant 0 : index
    %8 = vector.load %arg7[%c0_6, %c0_7] : memref<16x256xf32, #tpu.memory_space<vmem>>, vector<16x256xf32>
    tpu.vector_store %arg7[%c0_6, %c0_7], %7 {strides = array<i32>} : memref<16x256xf32, #tpu.memory_space<vmem>>, vector<16x256xf32>,
    %c0_i32_8 = arith.constant 0 : i32
    %9 = arith.cmpi eq, %arg2, %c0_i32_8 : i32
    %10 = arith.extui %9 : i1 to i32
    %c0_i32_9 = arith.constant 0 : i32
    %11 = arith.cmpi ne, %10, %c0_i32_9 : i32
    scf.if %11 {
      %c0_10 = arith.constant 0 : index
      %c0_11 = arith.constant 0 : index
      %12 = vector.load %arg7[%c0_10, %c0_11] : memref<16x256xf32, #tpu.memory_space<vmem>>, vector<16x256xf32>
      %c0_12 = arith.constant 0 : index
      %c0_13 = arith.constant 0 : index
      %13 = vector.load %arg5[%c0_12, %c0_13] : memref<1x256xf32, #tpu.memory_space<vmem>>, vector<1x256xf32>
      %14 = vector.broadcast %13 : vector<1x256xf32> to vector<16x256xf32>
      %15 = arith.addf %12, %14 : vector<16x256xf32>
      %cst_14 = arith.constant 5.000000e-01 : f32
      %16 = vector.broadcast %cst_14 : f32 to vector<16x256xf32>
      %17 = arith.mulf %16, %15 : vector<16x256xf32>
      %cst_15 = arith.constant 0.707106769 : f32
      %18 = vector.broadcast %cst_15 : f32 to vector<16x256xf32>
      %19 = arith.mulf %15, %18 : vector<16x256xf32>
      %20 = math.absf %19 : vector<16x256xf32>
      %cst_16 = arith.constant 0.327591091 : f32
      %21 = vector.broadcast %cst_16 : f32 to vector<16x256xf32>
      %22 = arith.mulf %21, %20 : vector<16x256xf32>
      %cst_17 = arith.constant 1.000000e+00 : f32
      %23 = vector.broadcast %cst_17 : f32 to vector<16x256xf32>
      %24 = arith.addf %23, %22 : vector<16x256xf32>
      %25 = tpu.reciprocal %24 {approx = true} : vector<16x256xf32> -> vector<16x256xf32>
      %cst_18 = arith.constant 1.06140542 : f32
      %26 = vector.broadcast %cst_18 : f32 to vector<16x256xf32>
      %27 = arith.mulf %26, %25 : vector<16x256xf32>
      %cst_19 = arith.constant -1.45315206 : f32
      %28 = vector.broadcast %cst_19 : f32 to vector<16x256xf32>
      %29 = arith.addf %27, %28 : vector<16x256xf32>
      %30 = arith.mulf %29, %25 : vector<16x256xf32>
      %cst_20 = arith.constant 1.42141378 : f32
      %31 = vector.broadcast %cst_20 : f32 to vector<16x256xf32>
      %32 = arith.addf %30, %31 : vector<16x256xf32>
      %33 = arith.mulf %32, %25 : vector<16x256xf32>
      %cst_21 = arith.constant -0.284496725 : f32
      %34 = vector.broadcast %cst_21 : f32 to vector<16x256xf32>
      %35 = arith.addf %33, %34 : vector<16x256xf32>
      %36 = arith.mulf %35, %25 : vector<16x256xf32>
      %cst_22 = arith.constant 0.254829586 : f32
      %37 = vector.broadcast %cst_22 : f32 to vector<16x256xf32>
      %38 = arith.addf %36, %37 : vector<16x256xf32>
      %39 = arith.mulf %38, %25 : vector<16x256xf32>
      %cst_23 = arith.constant 0.000000e+00 : f32
      %40 = vector.broadcast %cst_23 : f32 to vector<16x256xf32>
      %41 = arith.subf %40, %20 : vector<16x256xf32>
      %42 = arith.mulf %41, %20 : vector<16x256xf32>
      %43 = math.exp %42 : vector<16x256xf32>
      %44 = arith.mulf %39, %43 : vector<16x256xf32>
      %cst_24 = arith.constant 1.000000e+00 : f32
      %45 = vector.broadcast %cst_24 : f32 to vector<16x256xf32>
      %46 = arith.subf %45, %44 : vector<16x256xf32>
      %cst_25 = arith.constant 0.000000e+00 : f32
      %47 = vector.broadcast %cst_25 : f32 to vector<16x256xf32>
      %48 = arith.cmpf olt, %19, %47 : vector<16x256xf32>
      %cst_26 = arith.constant 0.000000e+00 : f32
      %49 = vector.broadcast %cst_26 : f32 to vector<16x256xf32>
      %50 = arith.subf %49, %46 : vector<16x256xf32>
      %51 = arith.select %48, %50, %46 : vector<16x256xi1>, vector<16x256xf32>
      %cst_27 = arith.constant 1.000000e+00 : f32
      %52 = vector.broadcast %cst_27 : f32 to vector<16x256xf32>
      %53 = arith.addf %52, %51 : vector<16x256xf32>
      %54 = arith.mulf %17, %53 : vector<16x256xf32>
      %55 = arith.truncf %54 : vector<16x256xf32> to vector<16x256xbf16>
      %c0_28 = arith.constant 0 : index
      %c0_29 = arith.constant 0 : index
      %56 = vector.load %arg6[%c0_28, %c0_29] : memref<16x256xbf16, #tpu.memory_space<vmem>>, vector<16x256xbf16>
      tpu.vector_store %arg6[%c0_28, %c0_29], %55 {strides = array<i32>} : memref<16x256xbf16, #tpu.memory_space<vmem>>, vector<16x256xbf16>,
    } else {
    }
    return
  }
  func.func @transform_0(%arg0: i32, %arg1: i32, %arg2: i32) -> (i32, i32) {
    %c0_i32 = arith.constant 0 : i32
    return %arg0, %arg2 : i32, i32
  }
  func.func @transform_1(%arg0: i32, %arg1: i32, %arg2: i32) -> (i32, i32) {
    %c0_i32 = arith.constant 0 : i32
    return %arg2, %arg1 : i32, i32
  }
  func.func @transform_2(%arg0: i32, %arg1: i32, %arg2: i32) -> (i32, i32) {
    %c0_i32 = arith.constant 0 : i32
    %c0_i32_0 = arith.constant 0 : i32
    return %c0_i32, %arg1 : i32, i32
  }
  func.func @transform_3(%arg0: i32, %arg1: i32, %arg2: i32) -> (i32, i32) {
    %c0_i32 = arith.constant 0 : i32
    return %arg0, %arg1 : i32, i32
  }
}

module attributes {stable_mosaic.version = 11 : i64} {
  func.func @_mha_kernel(%arg0: i32, %arg1: i32, %arg2: memref<1x8x128xbf16, #tpu.memory_space<vmem>>, %arg3: memref<1x8x128xbf16, #tpu.memory_space<vmem>>, %arg4: memref<1x8x128xbf16, #tpu.memory_space<vmem>>, %arg5: memref<1x1x8xf32, #tpu.memory_space<vmem>>, %arg6: memref<1x8x128xbf16, #tpu.memory_space<vmem>>) attributes {dimension_semantics = [#tpu.dimension_semantics<parallel>, #tpu.dimension_semantics<parallel>], iteration_bounds = array<i64: 2, 1>, scalar_prefetch = 0 : i64, scratch_operands = 0 : i64, tpu.core_type = #tpu.core_type<tc>, window_params = [{transform_indices = @transform_0, window_bounds = array<i64: 1, 8, 128>}, {transform_indices = @transform_1, window_bounds = array<i64: 1, 8, 128>}, {transform_indices = @transform_2, window_bounds = array<i64: 1, 8, 128>}, {transform_indices = @transform_3, window_bounds = array<i64: 1, 1, 8>}, {transform_indices = @transform_4, window_bounds = array<i64: 1, 8, 128>}]} {
    %c0 = arith.constant 0 : index
    %c0_0 = arith.constant 0 : index
    %c0_1 = arith.constant 0 : index
    %0 = vector.load %arg5[%c0, %c0_0, %c0_1] : memref<1x1x8xf32, #tpu.memory_space<vmem>>, vector<1x1x8xf32>
    %1 = vector.shape_cast %0 : vector<1x1x8xf32> to vector<1x8xf32>
    %c0_2 = arith.constant 0 : index
    %c0_3 = arith.constant 0 : index
    %c0_4 = arith.constant 0 : index
    %2 = vector.load %arg2[%c0_2, %c0_3, %c0_4] : memref<1x8x128xbf16, #tpu.memory_space<vmem>>, vector<1x8x32xbf16>
    %3 = vector.shape_cast %2 : vector<1x8x32xbf16> to vector<8x32xbf16>
    %c0_5 = arith.constant 0 : index
    %c0_6 = arith.constant 0 : index
    %c0_7 = arith.constant 0 : index
    %4 = vector.load %arg3[%c0_5, %c0_6, %c0_7] : memref<1x8x128xbf16, #tpu.memory_space<vmem>>, vector<1x8x32xbf16>
    %5 = vector.shape_cast %4 : vector<1x8x32xbf16> to vector<8x32xbf16>
    %c0_8 = arith.constant 0 : index
    %c0_9 = arith.constant 0 : index
    %c0_10 = arith.constant 0 : index
    %6 = vector.load %arg4[%c0_8, %c0_9, %c0_10] : memref<1x8x128xbf16, #tpu.memory_space<vmem>>, vector<1x8x32xbf16>
    %7 = vector.shape_cast %6 : vector<1x8x32xbf16> to vector<8x32xbf16>
    %cst = arith.constant dense<0.000000e+00> : vector<8x8xf32>
    %8 = tpu.matmul %3, %5, %cst {dimension_numbers = #tpu.dot_dimension_numbers<[1], [1], [0], [0], [0, 0, 1, 0], [], []>} : vector<8x32xbf16>, vector<8x32xbf16>, vector<8x8xf32> -> vector<8x8xf32>
    %cst_11 = arith.constant 0.176776692 : f32
    %9 = vector.broadcast %cst_11 : f32 to vector<8x8xf32>
    %10 = arith.mulf %8, %9 : vector<8x8xf32>
    %11 = vector.broadcast %1 : vector<1x8xf32> to vector<8x8xf32>
    %12 = arith.addf %10, %11 : vector<8x8xf32>
    %cst_12 = arith.constant dense<0xFF800000> : vector<8xf32>
    %13 = vector.multi_reduction <maximumf>, %12, %cst_12 [1] : vector<8x8xf32> to vector<8xf32>
    %14 = vector.shape_cast %13 : vector<8xf32> to vector<8x1xf32>
    %15 = vector.broadcast %14 : vector<8x1xf32> to vector<8x8xf32>
    %16 = arith.subf %12, %15 : vector<8x8xf32>
    %17 = math.exp %16 : vector<8x8xf32>
    %cst_13 = arith.constant dense<0.000000e+00> : vector<8xf32>
    %18 = vector.multi_reduction <add>, %17, %cst_13 [1] : vector<8x8xf32> to vector<8xf32>
    %19 = vector.shape_cast %18 : vector<8xf32> to vector<8x1xf32>
    %20 = tpu.reciprocal %19 {approx = true} : vector<8x1xf32> -> vector<8x1xf32>
    %21 = vector.broadcast %20 : vector<8x1xf32> to vector<8x8xf32>
    %22 = arith.mulf %17, %21 : vector<8x8xf32>
    %23 = arith.truncf %22 : vector<8x8xf32> to vector<8x8xbf16>
    %cst_14 = arith.constant dense<0.000000e+00> : vector<8x32xf32>
    %24 = tpu.matmul %23, %7, %cst_14 {dimension_numbers = #tpu.dot_dimension_numbers<[1], [0], [0], [1], [0, 0, 1, 1], [], []>} : vector<8x8xbf16>, vector<8x32xbf16>, vector<8x32xf32> -> vector<8x32xf32>
    %c0_15 = arith.constant 0 : index
    %c0_16 = arith.constant 0 : index
    %c32 = arith.constant 32 : index
    %25 = vector.load %arg2[%c0_15, %c0_16, %c32] : memref<1x8x128xbf16, #tpu.memory_space<vmem>>, vector<1x8x32xbf16>
    %26 = vector.shape_cast %25 : vector<1x8x32xbf16> to vector<8x32xbf16>
    %c0_17 = arith.constant 0 : index
    %c0_18 = arith.constant 0 : index
    %c32_19 = arith.constant 32 : index
    %27 = vector.load %arg3[%c0_17, %c0_18, %c32_19] : memref<1x8x128xbf16, #tpu.memory_space<vmem>>, vector<1x8x32xbf16>
    %28 = vector.shape_cast %27 : vector<1x8x32xbf16> to vector<8x32xbf16>
    %c0_20 = arith.constant 0 : index
    %c0_21 = arith.constant 0 : index
    %c32_22 = arith.constant 32 : index
    %29 = vector.load %arg4[%c0_20, %c0_21, %c32_22] : memref<1x8x128xbf16, #tpu.memory_space<vmem>>, vector<1x8x32xbf16>
    %30 = vector.shape_cast %29 : vector<1x8x32xbf16> to vector<8x32xbf16>
    %cst_23 = arith.constant dense<0.000000e+00> : vector<8x8xf32>
    %31 = tpu.matmul %26, %28, %cst_23 {dimension_numbers = #tpu.dot_dimension_numbers<[1], [1], [0], [0], [0, 0, 1, 0], [], []>} : vector<8x32xbf16>, vector<8x32xbf16>, vector<8x8xf32> -> vector<8x8xf32>
    %cst_24 = arith.constant 0.176776692 : f32
    %32 = vector.broadcast %cst_24 : f32 to vector<8x8xf32>
    %33 = arith.mulf %31, %32 : vector<8x8xf32>
    %34 = vector.broadcast %1 : vector<1x8xf32> to vector<8x8xf32>
    %35 = arith.addf %33, %34 : vector<8x8xf32>
    %cst_25 = arith.constant dense<0xFF800000> : vector<8xf32>
    %36 = vector.multi_reduction <maximumf>, %35, %cst_25 [1] : vector<8x8xf32> to vector<8xf32>
    %37 = vector.shape_cast %36 : vector<8xf32> to vector<8x1xf32>
    %38 = vector.broadcast %37 : vector<8x1xf32> to vector<8x8xf32>
    %39 = arith.subf %35, %38 : vector<8x8xf32>
    %40 = math.exp %39 : vector<8x8xf32>
    %cst_26 = arith.constant dense<0.000000e+00> : vector<8xf32>
    %41 = vector.multi_reduction <add>, %40, %cst_26 [1] : vector<8x8xf32> to vector<8xf32>
    %42 = vector.shape_cast %41 : vector<8xf32> to vector<8x1xf32>
    %43 = tpu.reciprocal %42 {approx = true} : vector<8x1xf32> -> vector<8x1xf32>
    %44 = vector.broadcast %43 : vector<8x1xf32> to vector<8x8xf32>
    %45 = arith.mulf %40, %44 : vector<8x8xf32>
    %46 = arith.truncf %45 : vector<8x8xf32> to vector<8x8xbf16>
    %cst_27 = arith.constant dense<0.000000e+00> : vector<8x32xf32>
    %47 = tpu.matmul %46, %30, %cst_27 {dimension_numbers = #tpu.dot_dimension_numbers<[1], [0], [0], [1], [0, 0, 1, 1], [], []>} : vector<8x8xbf16>, vector<8x32xbf16>, vector<8x32xf32> -> vector<8x32xf32>
    %c0_28 = arith.constant 0 : index
    %c0_29 = arith.constant 0 : index
    %c64 = arith.constant 64 : index
    %48 = vector.load %arg2[%c0_28, %c0_29, %c64] : memref<1x8x128xbf16, #tpu.memory_space<vmem>>, vector<1x8x32xbf16>
    %49 = vector.shape_cast %48 : vector<1x8x32xbf16> to vector<8x32xbf16>
    %c0_30 = arith.constant 0 : index
    %c0_31 = arith.constant 0 : index
    %c64_32 = arith.constant 64 : index
    %50 = vector.load %arg3[%c0_30, %c0_31, %c64_32] : memref<1x8x128xbf16, #tpu.memory_space<vmem>>, vector<1x8x32xbf16>
    %51 = vector.shape_cast %50 : vector<1x8x32xbf16> to vector<8x32xbf16>
    %c0_33 = arith.constant 0 : index
    %c0_34 = arith.constant 0 : index
    %c64_35 = arith.constant 64 : index
    %52 = vector.load %arg4[%c0_33, %c0_34, %c64_35] : memref<1x8x128xbf16, #tpu.memory_space<vmem>>, vector<1x8x32xbf16>
    %53 = vector.shape_cast %52 : vector<1x8x32xbf16> to vector<8x32xbf16>
    %cst_36 = arith.constant dense<0.000000e+00> : vector<8x8xf32>
    %54 = tpu.matmul %49, %51, %cst_36 {dimension_numbers = #tpu.dot_dimension_numbers<[1], [1], [0], [0], [0, 0, 1, 0], [], []>} : vector<8x32xbf16>, vector<8x32xbf16>, vector<8x8xf32> -> vector<8x8xf32>
    %cst_37 = arith.constant 0.176776692 : f32
    %55 = vector.broadcast %cst_37 : f32 to vector<8x8xf32>
    %56 = arith.mulf %54, %55 : vector<8x8xf32>
    %57 = vector.broadcast %1 : vector<1x8xf32> to vector<8x8xf32>
    %58 = arith.addf %56, %57 : vector<8x8xf32>
    %cst_38 = arith.constant dense<0xFF800000> : vector<8xf32>
    %59 = vector.multi_reduction <maximumf>, %58, %cst_38 [1] : vector<8x8xf32> to vector<8xf32>
    %60 = vector.shape_cast %59 : vector<8xf32> to vector<8x1xf32>
    %61 = vector.broadcast %60 : vector<8x1xf32> to vector<8x8xf32>
    %62 = arith.subf %58, %61 : vector<8x8xf32>
    %63 = math.exp %62 : vector<8x8xf32>
    %cst_39 = arith.constant dense<0.000000e+00> : vector<8xf32>
    %64 = vector.multi_reduction <add>, %63, %cst_39 [1] : vector<8x8xf32> to vector<8xf32>
    %65 = vector.shape_cast %64 : vector<8xf32> to vector<8x1xf32>
    %66 = tpu.reciprocal %65 {approx = true} : vector<8x1xf32> -> vector<8x1xf32>
    %67 = vector.broadcast %66 : vector<8x1xf32> to vector<8x8xf32>
    %68 = arith.mulf %63, %67 : vector<8x8xf32>
    %69 = arith.truncf %68 : vector<8x8xf32> to vector<8x8xbf16>
    %cst_40 = arith.constant dense<0.000000e+00> : vector<8x32xf32>
    %70 = tpu.matmul %69, %53, %cst_40 {dimension_numbers = #tpu.dot_dimension_numbers<[1], [0], [0], [1], [0, 0, 1, 1], [], []>} : vector<8x8xbf16>, vector<8x32xbf16>, vector<8x32xf32> -> vector<8x32xf32>
    %c0_41 = arith.constant 0 : index
    %c0_42 = arith.constant 0 : index
    %c96 = arith.constant 96 : index
    %71 = vector.load %arg2[%c0_41, %c0_42, %c96] : memref<1x8x128xbf16, #tpu.memory_space<vmem>>, vector<1x8x32xbf16>
    %72 = vector.shape_cast %71 : vector<1x8x32xbf16> to vector<8x32xbf16>
    %c0_43 = arith.constant 0 : index
    %c0_44 = arith.constant 0 : index
    %c96_45 = arith.constant 96 : index
    %73 = vector.load %arg3[%c0_43, %c0_44, %c96_45] : memref<1x8x128xbf16, #tpu.memory_space<vmem>>, vector<1x8x32xbf16>
    %74 = vector.shape_cast %73 : vector<1x8x32xbf16> to vector<8x32xbf16>
    %c0_46 = arith.constant 0 : index
    %c0_47 = arith.constant 0 : index
    %c96_48 = arith.constant 96 : index
    %75 = vector.load %arg4[%c0_46, %c0_47, %c96_48] : memref<1x8x128xbf16, #tpu.memory_space<vmem>>, vector<1x8x32xbf16>
    %76 = vector.shape_cast %75 : vector<1x8x32xbf16> to vector<8x32xbf16>
    %cst_49 = arith.constant dense<0.000000e+00> : vector<8x8xf32>
    %77 = tpu.matmul %72, %74, %cst_49 {dimension_numbers = #tpu.dot_dimension_numbers<[1], [1], [0], [0], [0, 0, 1, 0], [], []>} : vector<8x32xbf16>, vector<8x32xbf16>, vector<8x8xf32> -> vector<8x8xf32>
    %cst_50 = arith.constant 0.176776692 : f32
    %78 = vector.broadcast %cst_50 : f32 to vector<8x8xf32>
    %79 = arith.mulf %77, %78 : vector<8x8xf32>
    %80 = vector.broadcast %1 : vector<1x8xf32> to vector<8x8xf32>
    %81 = arith.addf %79, %80 : vector<8x8xf32>
    %cst_51 = arith.constant dense<0xFF800000> : vector<8xf32>
    %82 = vector.multi_reduction <maximumf>, %81, %cst_51 [1] : vector<8x8xf32> to vector<8xf32>
    %83 = vector.shape_cast %82 : vector<8xf32> to vector<8x1xf32>
    %84 = vector.broadcast %83 : vector<8x1xf32> to vector<8x8xf32>
    %85 = arith.subf %81, %84 : vector<8x8xf32>
    %86 = math.exp %85 : vector<8x8xf32>
    %cst_52 = arith.constant dense<0.000000e+00> : vector<8xf32>
    %87 = vector.multi_reduction <add>, %86, %cst_52 [1] : vector<8x8xf32> to vector<8xf32>
    %88 = vector.shape_cast %87 : vector<8xf32> to vector<8x1xf32>
    %89 = tpu.reciprocal %88 {approx = true} : vector<8x1xf32> -> vector<8x1xf32>
    %90 = vector.broadcast %89 : vector<8x1xf32> to vector<8x8xf32>
    %91 = arith.mulf %86, %90 : vector<8x8xf32>
    %92 = arith.truncf %91 : vector<8x8xf32> to vector<8x8xbf16>
    %cst_53 = arith.constant dense<0.000000e+00> : vector<8x32xf32>
    %93 = tpu.matmul %92, %76, %cst_53 {dimension_numbers = #tpu.dot_dimension_numbers<[1], [0], [0], [1], [0, 0, 1, 1], [], []>} : vector<8x8xbf16>, vector<8x32xbf16>, vector<8x32xf32> -> vector<8x32xf32>
    %94 = tpu.concatenate %24, %47, %70, %93 in 1 : vector<8x32xf32>, vector<8x32xf32>, vector<8x32xf32>, vector<8x32xf32> -> vector<8x128xf32>
    %95 = arith.truncf %94 : vector<8x128xf32> to vector<8x128xbf16>
    %c0_54 = arith.constant 0 : index
    %c0_55 = arith.constant 0 : index
    %c0_56 = arith.constant 0 : index
    %96 = vector.load %arg6[%c0_54, %c0_55, %c0_56] : memref<1x8x128xbf16, #tpu.memory_space<vmem>>, vector<1x8x128xbf16>
    %97 = vector.shape_cast %96 : vector<1x8x128xbf16> to vector<8x128xbf16>
    %98 = vector.shape_cast %95 : vector<8x128xbf16> to vector<1x8x128xbf16>
    tpu.vector_store %arg6[%c0_54, %c0_55, %c0_56], %98 {strides = array<i32>} : memref<1x8x128xbf16, #tpu.memory_space<vmem>>, vector<1x8x128xbf16>,
    return
  }
  func.func @transform_0(%arg0: i32, %arg1: i32) -> (i32, i32, i32) {
    %c0_i32 = arith.constant 0 : i32
    %c0_i32_0 = arith.constant 0 : i32
    return %arg0, %arg1, %c0_i32 : i32, i32, i32
  }
  func.func @transform_1(%arg0: i32, %arg1: i32) -> (i32, i32, i32) {
    %c0_i32 = arith.constant 0 : i32
    %c1_i32 = arith.constant 1 : i32
    %c0_i32_0 = arith.constant 0 : i32
    return %arg0, %c0_i32, %c1_i32 : i32, i32, i32
  }
  func.func @transform_2(%arg0: i32, %arg1: i32) -> (i32, i32, i32) {
    %c0_i32 = arith.constant 0 : i32
    %c2_i32 = arith.constant 2 : i32
    %c0_i32_0 = arith.constant 0 : i32
    return %arg0, %c0_i32, %c2_i32 : i32, i32, i32
  }
  func.func @transform_3(%arg0: i32, %arg1: i32) -> (i32, i32, i32) {
    %c0_i32 = arith.constant 0 : i32
    %c0_i32_0 = arith.constant 0 : i32
    %c0_i32_1 = arith.constant 0 : i32
    return %arg0, %c0_i32, %c0_i32_0 : i32, i32, i32
  }
  func.func @transform_4(%arg0: i32, %arg1: i32) -> (i32, i32, i32) {
    %c0_i32 = arith.constant 0 : i32
    %c0_i32_0 = arith.constant 0 : i32
    return %arg0, %arg1, %c0_i32 : i32, i32, i32
  }
}

module attributes {stable_mosaic.version = 11 : i64} {
  func.func @_linear_ln_kernel(%arg0: i32, %arg1: i32, %arg2: memref<16x512xbf16, #tpu.memory_space<vmem>>, %arg3: memref<512x128xbf16, #tpu.memory_space<vmem>>, %arg4: memref<1x128xf32, #tpu.memory_space<vmem>>, %arg5: memref<16x128xbf16, #tpu.memory_space<vmem>>, %arg6: memref<1x128xf32, #tpu.memory_space<vmem>>, %arg7: memref<1x128xf32, #tpu.memory_space<vmem>>, %arg8: memref<16x128xbf16, #tpu.memory_space<vmem>>, %arg9: memref<16x128xf32, #tpu.memory_space<vmem>>) attributes {dimension_semantics = [#tpu.dimension_semantics<parallel>, #tpu.dimension_semantics<arbitrary>], iteration_bounds = array<i64: 1, 1>, scalar_prefetch = 0 : i64, scratch_operands = 1 : i64, tpu.core_type = #tpu.core_type<tc>, window_params = [{transform_indices = @transform_0, window_bounds = array<i64: 16, 512>}, {transform_indices = @transform_1, window_bounds = array<i64: 512, 128>}, {pipeline_mode = #tpu.pipeline_mode<synchronous>, transform_indices = @transform_2, window_bounds = array<i64: 1, 128>}, {transform_indices = @transform_3, window_bounds = array<i64: 16, 128>}, {pipeline_mode = #tpu.pipeline_mode<synchronous>, transform_indices = @transform_4, window_bounds = array<i64: 1, 128>}, {pipeline_mode = #tpu.pipeline_mode<synchronous>, transform_indices = @transform_5, window_bounds = array<i64: 1, 128>}, {transform_indices = @transform_6, window_bounds = array<i64: 16, 128>}]} {
    %c0_i32 = arith.constant 0 : i32
    %0 = arith.cmpi eq, %arg1, %c0_i32 : i32
    %1 = arith.extui %0 : i1 to i32
    %c0_i32_0 = arith.constant 0 : i32
    %2 = arith.cmpi ne, %1, %c0_i32_0 : i32
    scf.if %2 {
      %cst_10 = arith.constant 0.000000e+00 : f32
      %12 = vector.broadcast %cst_10 : f32 to vector<16x128xf32>
      %c0_11 = arith.constant 0 : index
      %c0_12 = arith.constant 0 : index
      %13 = vector.load %arg9[%c0_11, %c0_12] : memref<16x128xf32, #tpu.memory_space<vmem>>, vector<16x128xf32>
      tpu.vector_store %arg9[%c0_11, %c0_12], %12 {strides = array<i32>} : memref<16x128xf32, #tpu.memory_space<vmem>>, vector<16x128xf32>,
    } else {
    }
    %c0 = arith.constant 0 : index
    %c0_1 = arith.constant 0 : index
    %3 = vector.load %arg9[%c0, %c0_1] : memref<16x128xf32, #tpu.memory_space<vmem>>, vector<16x128xf32>
    %c0_2 = arith.constant 0 : index
    %c0_3 = arith.constant 0 : index
    %4 = vector.load %arg2[%c0_2, %c0_3] : memref<16x512xbf16, #tpu.memory_space<vmem>>, vector<16x512xbf16>
    %c0_4 = arith.constant 0 : index
    %c0_5 = arith.constant 0 : index
    %5 = vector.load %arg3[%c0_4, %c0_5] : memref<512x128xbf16, #tpu.memory_space<vmem>>, vector<512x128xbf16>
    %cst = arith.constant dense<0.000000e+00> : vector<16x128xf32>
    %6 = tpu.matmul %4, %5, %cst {dimension_numbers = #tpu.dot_dimension_numbers<[1], [0], [0], [1], [0, 0, 1, 1], [], []>} : vector<16x512xbf16>, vector<512x128xbf16>, vector<16x128xf32> -> vector<16x128xf32>
    %7 = arith.addf %3, %6 : vector<16x128xf32>
    %c0_6 = arith.constant 0 : index
    %c0_7 = arith.constant 0 : index
    %8 = vector.load %arg9[%c0_6, %c0_7] : memref<16x128xf32, #tpu.memory_space<vmem>>, vector<16x128xf32>
    tpu.vector_store %arg9[%c0_6, %c0_7], %7 {strides = array<i32>} : memref<16x128xf32, #tpu.memory_space<vmem>>, vector<16x128xf32>,
    %c0_i32_8 = arith.constant 0 : i32
    %9 = arith.cmpi eq, %arg1, %c0_i32_8 : i32
    %10 = arith.extui %9 : i1 to i32
    %c0_i32_9 = arith.constant 0 : i32
    %11 = arith.cmpi ne, %10, %c0_i32_9 : i32
    scf.if %11 {
      %c0_10 = arith.constant 0 : index
      %c0_11 = arith.constant 0 : index
      %12 = vector.load %arg9[%c0_10, %c0_11] : memref<16x128xf32, #tpu.memory_space<vmem>>, vector<16x128xf32>
      %c0_12 = arith.constant 0 : index
      %c0_13 = arith.constant 0 : index
      %13 = vector.load %arg4[%c0_12, %c0_13] : memref<1x128xf32, #tpu.memory_space<vmem>>, vector<1x128xf32>
      %14 = vector.broadcast %13 : vector<1x128xf32> to vector<16x128xf32>
      %15 = arith.addf %12, %14 : vector<16x128xf32>
      %c0_14 = arith.constant 0 : index
      %c0_15 = arith.constant 0 : index
      %16 = vector.load %arg5[%c0_14, %c0_15] : memref<16x128xbf16, #tpu.memory_space<vmem>>, vector<16x128xbf16>
      %17 = arith.extf %16 : vector<16x128xbf16> to vector<16x128xf32>
      %18 = arith.addf %15, %17 : vector<16x128xf32>
      %cst_16 = arith.constant dense<0.000000e+00> : vector<16xf32>
      %19 = vector.multi_reduction <add>, %18, %cst_16 [1] : vector<16x128xf32> to vector<16xf32>
      %20 = vector.shape_cast %19 : vector<16xf32> to vector<16x1xf32>
      %cst_17 = arith.constant 1.280000e+02 : f32
      %21 = vector.broadcast %cst_17 : f32 to vector<16x1xf32>
      %22 = arith.divf %20, %21 : vector<16x1xf32>
      %23 = vector.broadcast %22 : vector<16x1xf32> to vector<16x128xf32>
      %24 = arith.subf %18, %23 : vector<16x128xf32>
      %25 = arith.mulf %24, %24 : vector<16x128xf32>
      %cst_18 = arith.constant dense<0.000000e+00> : vector<16xf32>
      %26 = vector.multi_reduction <add>, %25, %cst_18 [1] : vector<16x128xf32> to vector<16xf32>
      %27 = vector.shape_cast %26 : vector<16xf32> to vector<16x1xf32>
      %cst_19 = arith.constant 1.280000e+02 : f32
      %28 = vector.broadcast %cst_19 : f32 to vector<16x1xf32>
      %29 = arith.divf %27, %28 : vector<16x1xf32>
      %cst_20 = arith.constant 9.99999974E-6 : f32
      %30 = vector.broadcast %cst_20 : f32 to vector<16x1xf32>
      %31 = arith.addf %29, %30 : vector<16x1xf32>
      %32 = math.rsqrt %31 : vector<16x1xf32>
      %33 = vector.broadcast %32 : vector<16x1xf32> to vector<16x128xf32>
      %34 = arith.mulf %24, %33 : vector<16x128xf32>
      %c0_21 = arith.constant 0 : index
      %c0_22 = arith.constant 0 : index
      %35 = vector.load %arg6[%c0_21, %c0_22] : memref<1x128xf32, #tpu.memory_space<vmem>>, vector<1x128xf32>
      %36 = vector.broadcast %35 : vector<1x128xf32> to vector<16x128xf32>
      %37 = arith.mulf %34, %36 : vector<16x128xf32>
      %c0_23 = arith.constant 0 : index
      %c0_24 = arith.constant 0 : index
      %38 = vector.load %arg7[%c0_23, %c0_24] : memref<1x128xf32, #tpu.memory_space<vmem>>, vector<1x128xf32>
      %39 = vector.broadcast %38 : vector<1x128xf32> to vector<16x128xf32>
      %40 = arith.addf %37, %39 : vector<16x128xf32>
      %41 = arith.truncf %40 : vector<16x128xf32> to vector<16x128xbf16>
      %c0_25 = arith.constant 0 : index
      %c0_26 = arith.constant 0 : index
      %42 = vector.load %arg8[%c0_25, %c0_26] : memref<16x128xbf16, #tpu.memory_space<vmem>>, vector<16x128xbf16>
      tpu.vector_store %arg8[%c0_25, %c0_26], %41 {strides = array<i32>} : memref<16x128xbf16, #tpu.memory_space<vmem>>, vector<16x128xbf16>,
    } else {
    }
    return
  }
  func.func @transform_0(%arg0: i32, %arg1: i32) -> (i32, i32) {
    %c0_i32 = arith.constant 0 : i32
    return %arg0, %arg1 : i32, i32
  }
  func.func @transform_1(%arg0: i32, %arg1: i32) -> (i32, i32) {
    %c0_i32 = arith.constant 0 : i32
    %c0_i32_0 = arith.constant 0 : i32
    return %arg1, %c0_i32 : i32, i32
  }
  func.func @transform_2(%arg0: i32, %arg1: i32) -> (i32, i32) {
    %c0_i32 = arith.constant 0 : i32
    %c0_i32_0 = arith.constant 0 : i32
    %c0_i32_1 = arith.constant 0 : i32
    return %c0_i32, %c0_i32_0 : i32, i32
  }
  func.func @transform_3(%arg0: i32, %arg1: i32) -> (i32, i32) {
    %c0_i32 = arith.constant 0 : i32
    %c0_i32_0 = arith.constant 0 : i32
    return %arg0, %c0_i32 : i32, i32
  }
  func.func @transform_4(%arg0: i32, %arg1: i32) -> (i32, i32) {
    %c0_i32 = arith.constant 0 : i32
    %c0_i32_0 = arith.constant 0 : i32
    %c0_i32_1 = arith.constant 0 : i32
    return %c0_i32, %c0_i32_0 : i32, i32
  }
  func.func @transform_5(%arg0: i32, %arg1: i32) -> (i32, i32) {
    %c0_i32 = arith.constant 0 : i32
    %c0_i32_0 = arith.constant 0 : i32
    %c0_i32_1 = arith.constant 0 : i32
    return %c0_i32, %c0_i32_0 : i32, i32
  }
  func.func @transform_6(%arg0: i32, %arg1: i32) -> (i32, i32) {
    %c0_i32 = arith.constant 0 : i32
    %c0_i32_0 = arith.constant 0 : i32
    return %arg0, %c0_i32 : i32, i32
  }
}

module attributes {stable_mosaic.version = 11 : i64} {
  func.func @_layernorm_kernel(%arg0: i32, %arg1: memref<16x128xbf16, #tpu.memory_space<vmem>>, %arg2: memref<1x128xf32, #tpu.memory_space<vmem>>, %arg3: memref<1x128xf32, #tpu.memory_space<vmem>>, %arg4: memref<16x128xf32, #tpu.memory_space<vmem>>) attributes {dimension_semantics = [#tpu.dimension_semantics<parallel>], iteration_bounds = array<i64: 1>, scalar_prefetch = 0 : i64, scratch_operands = 0 : i64, tpu.core_type = #tpu.core_type<tc>, window_params = [{transform_indices = @transform_0, window_bounds = array<i64: 16, 128>}, {pipeline_mode = #tpu.pipeline_mode<synchronous>, transform_indices = @transform_1, window_bounds = array<i64: 1, 128>}, {pipeline_mode = #tpu.pipeline_mode<synchronous>, transform_indices = @transform_2, window_bounds = array<i64: 1, 128>}, {transform_indices = @transform_3, window_bounds = array<i64: 16, 128>}]} {
    %c0 = arith.constant 0 : index
    %c0_0 = arith.constant 0 : index
    %0 = vector.load %arg1[%c0, %c0_0] : memref<16x128xbf16, #tpu.memory_space<vmem>>, vector<16x128xbf16>
    %1 = arith.extf %0 : vector<16x128xbf16> to vector<16x128xf32>
    %cst = arith.constant dense<0.000000e+00> : vector<16xf32>
    %2 = vector.multi_reduction <add>, %1, %cst [1] : vector<16x128xf32> to vector<16xf32>
    %3 = vector.shape_cast %2 : vector<16xf32> to vector<16x1xf32>
    %cst_1 = arith.constant 1.280000e+02 : f32
    %4 = vector.broadcast %cst_1 : f32 to vector<16x1xf32>
    %5 = arith.divf %3, %4 : vector<16x1xf32>
    %6 = vector.broadcast %5 : vector<16x1xf32> to vector<16x128xf32>
    %7 = arith.subf %1, %6 : vector<16x128xf32>
    %8 = arith.mulf %7, %7 : vector<16x128xf32>
    %cst_2 = arith.constant dense<0.000000e+00> : vector<16xf32>
    %9 = vector.multi_reduction <add>, %8, %cst_2 [1] : vector<16x128xf32> to vector<16xf32>
    %10 = vector.shape_cast %9 : vector<16xf32> to vector<16x1xf32>
    %cst_3 = arith.constant 1.280000e+02 : f32
    %11 = vector.broadcast %cst_3 : f32 to vector<16x1xf32>
    %12 = arith.divf %10, %11 : vector<16x1xf32>
    %cst_4 = arith.constant 9.99999974E-6 : f32
    %13 = vector.broadcast %cst_4 : f32 to vector<16x1xf32>
    %14 = arith.addf %12, %13 : vector<16x1xf32>
    %15 = math.rsqrt %14 : vector<16x1xf32>
    %16 = vector.broadcast %15 : vector<16x1xf32> to vector<16x128xf32>
    %17 = arith.mulf %7, %16 : vector<16x128xf32>
    %c0_5 = arith.constant 0 : index
    %c0_6 = arith.constant 0 : index
    %18 = vector.load %arg2[%c0_5, %c0_6] : memref<1x128xf32, #tpu.memory_space<vmem>>, vector<1x128xf32>
    %19 = vector.broadcast %18 : vector<1x128xf32> to vector<16x128xf32>
    %20 = arith.mulf %17, %19 : vector<16x128xf32>
    %c0_7 = arith.constant 0 : index
    %c0_8 = arith.constant 0 : index
    %21 = vector.load %arg3[%c0_7, %c0_8] : memref<1x128xf32, #tpu.memory_space<vmem>>, vector<1x128xf32>
    %22 = vector.broadcast %21 : vector<1x128xf32> to vector<16x128xf32>
    %23 = arith.addf %20, %22 : vector<16x128xf32>
    %c0_9 = arith.constant 0 : index
    %c0_10 = arith.constant 0 : index
    %24 = vector.load %arg4[%c0_9, %c0_10] : memref<16x128xf32, #tpu.memory_space<vmem>>, vector<16x128xf32>
    tpu.vector_store %arg4[%c0_9, %c0_10], %23 {strides = array<i32>} : memref<16x128xf32, #tpu.memory_space<vmem>>, vector<16x128xf32>,
    return
  }
  func.func @transform_0(%arg0: i32) -> (i32, i32) {
    %c0_i32 = arith.constant 0 : i32
    %c0_i32_0 = arith.constant 0 : i32
    return %arg0, %c0_i32 : i32, i32
  }
  func.func @transform_1(%arg0: i32) -> (i32, i32) {
    %c0_i32 = arith.constant 0 : i32
    %c0_i32_0 = arith.constant 0 : i32
    %c0_i32_1 = arith.constant 0 : i32
    return %c0_i32, %c0_i32_0 : i32, i32
  }
  func.func @transform_2(%arg0: i32) -> (i32, i32) {
    %c0_i32 = arith.constant 0 : i32
    %c0_i32_0 = arith.constant 0 : i32
    %c0_i32_1 = arith.constant 0 : i32
    return %c0_i32, %c0_i32_0 : i32, i32
  }
  func.func @transform_3(%arg0: i32) -> (i32, i32) {
    %c0_i32 = arith.constant 0 : i32
    %c0_i32_0 = arith.constant 0 : i32
    return %arg0, %c0_i32 : i32, i32
  }
}

module attributes {stable_mosaic.version = 11 : i64} {
  func.func @_linear_kernel(%arg0: i32, %arg1: i32, %arg2: i32, %arg3: memref<16x128xf32, #tpu.memory_space<vmem>>, %arg4: memref<128x64xbf16, #tpu.memory_space<vmem>>, %arg5: memref<1x64xf32, #tpu.memory_space<vmem>>, %arg6: memref<16x64xbf16, #tpu.memory_space<vmem>>, %arg7: memref<16x64xf32, #tpu.memory_space<vmem>>) attributes {dimension_semantics = [#tpu.dimension_semantics<parallel>, #tpu.dimension_semantics<parallel>, #tpu.dimension_semantics<arbitrary>], iteration_bounds = array<i64: 1, 1, 1>, scalar_prefetch = 0 : i64, scratch_operands = 1 : i64, tpu.core_type = #tpu.core_type<tc>, window_params = [{transform_indices = @transform_0, window_bounds = array<i64: 16, 128>}, {transform_indices = @transform_1, window_bounds = array<i64: 128, 64>}, {transform_indices = @transform_2, window_bounds = array<i64: 1, 64>}, {transform_indices = @transform_3, window_bounds = array<i64: 16, 64>}]} {
    %c0_i32 = arith.constant 0 : i32
    %0 = arith.cmpi eq, %arg2, %c0_i32 : i32
    %1 = arith.extui %0 : i1 to i32
    %c0_i32_0 = arith.constant 0 : i32
    %2 = arith.cmpi ne, %1, %c0_i32_0 : i32
    scf.if %2 {
      %cst_10 = arith.constant 0.000000e+00 : f32
      %13 = vector.broadcast %cst_10 : f32 to vector<16x64xf32>
      %c0_11 = arith.constant 0 : index
      %c0_12 = arith.constant 0 : index
      %14 = vector.load %arg7[%c0_11, %c0_12] : memref<16x64xf32, #tpu.memory_space<vmem>>, vector<16x64xf32>
      tpu.vector_store %arg7[%c0_11, %c0_12], %13 {strides = array<i32>} : memref<16x64xf32, #tpu.memory_space<vmem>>, vector<16x64xf32>,
    } else {
    }
    %c0 = arith.constant 0 : index
    %c0_1 = arith.constant 0 : index
    %3 = vector.load %arg7[%c0, %c0_1] : memref<16x64xf32, #tpu.memory_space<vmem>>, vector<16x64xf32>
    %c0_2 = arith.constant 0 : index
    %c0_3 = arith.constant 0 : index
    %4 = vector.load %arg3[%c0_2, %c0_3] : memref<16x128xf32, #tpu.memory_space<vmem>>, vector<16x128xf32>
    %5 = arith.truncf %4 : vector<16x128xf32> to vector<16x128xbf16>
    %c0_4 = arith.constant 0 : index
    %c0_5 = arith.constant 0 : index
    %6 = vector.load %arg4[%c0_4, %c0_5] : memref<128x64xbf16, #tpu.memory_space<vmem>>, vector<128x64xbf16>
    %cst = arith.constant dense<0.000000e+00> : vector<16x64xf32>
    %7 = tpu.matmul %5, %6, %cst {dimension_numbers = #tpu.dot_dimension_numbers<[1], [0], [0], [1], [0, 0, 1, 1], [], []>} : vector<16x128xbf16>, vector<128x64xbf16>, vector<16x64xf32> -> vector<16x64xf32>
    %8 = arith.addf %3, %7 : vector<16x64xf32>
    %c0_6 = arith.constant 0 : index
    %c0_7 = arith.constant 0 : index
    %9 = vector.load %arg7[%c0_6, %c0_7] : memref<16x64xf32, #tpu.memory_space<vmem>>, vector<16x64xf32>
    tpu.vector_store %arg7[%c0_6, %c0_7], %8 {strides = array<i32>} : memref<16x64xf32, #tpu.memory_space<vmem>>, vector<16x64xf32>,
    %c0_i32_8 = arith.constant 0 : i32
    %10 = arith.cmpi eq, %arg2, %c0_i32_8 : i32
    %11 = arith.extui %10 : i1 to i32
    %c0_i32_9 = arith.constant 0 : i32
    %12 = arith.cmpi ne, %11, %c0_i32_9 : i32
    scf.if %12 {
      %c0_10 = arith.constant 0 : index
      %c0_11 = arith.constant 0 : index
      %13 = vector.load %arg7[%c0_10, %c0_11] : memref<16x64xf32, #tpu.memory_space<vmem>>, vector<16x64xf32>
      %c0_12 = arith.constant 0 : index
      %c0_13 = arith.constant 0 : index
      %14 = vector.load %arg5[%c0_12, %c0_13] : memref<1x64xf32, #tpu.memory_space<vmem>>, vector<1x64xf32>
      %15 = vector.broadcast %14 : vector<1x64xf32> to vector<16x64xf32>
      %16 = arith.addf %13, %15 : vector<16x64xf32>
      %cst_14 = arith.constant 0.000000e+00 : f32
      %17 = vector.broadcast %cst_14 : f32 to vector<16x64xf32>
      %18 = arith.maximumf %16, %17 : vector<16x64xf32>
      %19 = arith.truncf %18 : vector<16x64xf32> to vector<16x64xbf16>
      %c0_15 = arith.constant 0 : index
      %c0_16 = arith.constant 0 : index
      %20 = vector.load %arg6[%c0_15, %c0_16] : memref<16x64xbf16, #tpu.memory_space<vmem>>, vector<16x64xbf16>
      tpu.vector_store %arg6[%c0_15, %c0_16], %19 {strides = array<i32>} : memref<16x64xbf16, #tpu.memory_space<vmem>>, vector<16x64xbf16>,
    } else {
    }
    return
  }
  func.func @transform_0(%arg0: i32, %arg1: i32, %arg2: i32) -> (i32, i32) {
    %c0_i32 = arith.constant 0 : i32
    return %arg0, %arg2 : i32, i32
  }
  func.func @transform_1(%arg0: i32, %arg1: i32, %arg2: i32) -> (i32, i32) {
    %c0_i32 = arith.constant 0 : i32
    return %arg2, %arg1 : i32, i32
  }
  func.func @transform_2(%arg0: i32, %arg1: i32, %arg2: i32) -> (i32, i32) {
    %c0_i32 = arith.constant 0 : i32
    %c0_i32_0 = arith.constant 0 : i32
    return %c0_i32, %arg1 : i32, i32
  }
  func.func @transform_3(%arg0: i32, %arg1: i32, %arg2: i32) -> (i32, i32) {
    %c0_i32 = arith.constant 0 : i32
    return %arg0, %arg1 : i32, i32
  }
}

module attributes {stable_mosaic.version = 11 : i64} {
  func.func @_linear_kernel(%arg0: i32, %arg1: i32, %arg2: i32, %arg3: memref<16x64xbf16, #tpu.memory_space<vmem>>, %arg4: memref<64x5xbf16, #tpu.memory_space<vmem>>, %arg5: memref<1x5xf32, #tpu.memory_space<vmem>>, %arg6: memref<16x5xf32, #tpu.memory_space<vmem>>, %arg7: memref<16x5xf32, #tpu.memory_space<vmem>>) attributes {dimension_semantics = [#tpu.dimension_semantics<parallel>, #tpu.dimension_semantics<parallel>, #tpu.dimension_semantics<arbitrary>], iteration_bounds = array<i64: 1, 1, 1>, scalar_prefetch = 0 : i64, scratch_operands = 1 : i64, tpu.core_type = #tpu.core_type<tc>, window_params = [{transform_indices = @transform_0, window_bounds = array<i64: 16, 64>}, {transform_indices = @transform_1, window_bounds = array<i64: 64, 5>}, {transform_indices = @transform_2, window_bounds = array<i64: 1, 5>}, {transform_indices = @transform_3, window_bounds = array<i64: 16, 5>}]} {
    %c0_i32 = arith.constant 0 : i32
    %0 = arith.cmpi eq, %arg2, %c0_i32 : i32
    %1 = arith.extui %0 : i1 to i32
    %c0_i32_0 = arith.constant 0 : i32
    %2 = arith.cmpi ne, %1, %c0_i32_0 : i32
    scf.if %2 {
      %cst_10 = arith.constant 0.000000e+00 : f32
      %12 = vector.broadcast %cst_10 : f32 to vector<16x5xf32>
      %c0_11 = arith.constant 0 : index
      %c0_12 = arith.constant 0 : index
      %13 = vector.load %arg7[%c0_11, %c0_12] : memref<16x5xf32, #tpu.memory_space<vmem>>, vector<16x5xf32>
      tpu.vector_store %arg7[%c0_11, %c0_12], %12 {strides = array<i32>} : memref<16x5xf32, #tpu.memory_space<vmem>>, vector<16x5xf32>,
    } else {
    }
    %c0 = arith.constant 0 : index
    %c0_1 = arith.constant 0 : index
    %3 = vector.load %arg7[%c0, %c0_1] : memref<16x5xf32, #tpu.memory_space<vmem>>, vector<16x5xf32>
    %c0_2 = arith.constant 0 : index
    %c0_3 = arith.constant 0 : index
    %4 = vector.load %arg3[%c0_2, %c0_3] : memref<16x64xbf16, #tpu.memory_space<vmem>>, vector<16x64xbf16>
    %c0_4 = arith.constant 0 : index
    %c0_5 = arith.constant 0 : index
    %5 = vector.load %arg4[%c0_4, %c0_5] : memref<64x5xbf16, #tpu.memory_space<vmem>>, vector<64x5xbf16>
    %cst = arith.constant dense<0.000000e+00> : vector<16x5xf32>
    %6 = tpu.matmul %4, %5, %cst {dimension_numbers = #tpu.dot_dimension_numbers<[1], [0], [0], [1], [0, 0, 1, 1], [], []>} : vector<16x64xbf16>, vector<64x5xbf16>, vector<16x5xf32> -> vector<16x5xf32>
    %7 = arith.addf %3, %6 : vector<16x5xf32>
    %c0_6 = arith.constant 0 : index
    %c0_7 = arith.constant 0 : index
    %8 = vector.load %arg7[%c0_6, %c0_7] : memref<16x5xf32, #tpu.memory_space<vmem>>, vector<16x5xf32>
    tpu.vector_store %arg7[%c0_6, %c0_7], %7 {strides = array<i32>} : memref<16x5xf32, #tpu.memory_space<vmem>>, vector<16x5xf32>,
    %c0_i32_8 = arith.constant 0 : i32
    %9 = arith.cmpi eq, %arg2, %c0_i32_8 : i32
    %10 = arith.extui %9 : i1 to i32
    %c0_i32_9 = arith.constant 0 : i32
    %11 = arith.cmpi ne, %10, %c0_i32_9 : i32
    scf.if %11 {
      %c0_10 = arith.constant 0 : index
      %c0_11 = arith.constant 0 : index
      %12 = vector.load %arg7[%c0_10, %c0_11] : memref<16x5xf32, #tpu.memory_space<vmem>>, vector<16x5xf32>
      %c0_12 = arith.constant 0 : index
      %c0_13 = arith.constant 0 : index
      %13 = vector.load %arg5[%c0_12, %c0_13] : memref<1x5xf32, #tpu.memory_space<vmem>>, vector<1x5xf32>
      %14 = vector.broadcast %13 : vector<1x5xf32> to vector<16x5xf32>
      %15 = arith.addf %12, %14 : vector<16x5xf32>
      %c0_14 = arith.constant 0 : index
      %c0_15 = arith.constant 0 : index
      %16 = vector.load %arg6[%c0_14, %c0_15] : memref<16x5xf32, #tpu.memory_space<vmem>>, vector<16x5xf32>
      tpu.vector_store %arg6[%c0_14, %c0_15], %15 {strides = array<i32>} : memref<16x5xf32, #tpu.memory_space<vmem>>, vector<16x5xf32>,
    } else {
    }
    return
  }
  func.func @transform_0(%arg0: i32, %arg1: i32, %arg2: i32) -> (i32, i32) {
    %c0_i32 = arith.constant 0 : i32
    return %arg0, %arg2 : i32, i32
  }
  func.func @transform_1(%arg0: i32, %arg1: i32, %arg2: i32) -> (i32, i32) {
    %c0_i32 = arith.constant 0 : i32
    return %arg2, %arg1 : i32, i32
  }
  func.func @transform_2(%arg0: i32, %arg1: i32, %arg2: i32) -> (i32, i32) {
    %c0_i32 = arith.constant 0 : i32
    %c0_i32_0 = arith.constant 0 : i32
    return %c0_i32, %arg1 : i32, i32
  }
  func.func @transform_3(%arg0: i32, %arg1: i32, %arg2: i32) -> (i32, i32) {
    %c0_i32 = arith.constant 0 : i32
    return %arg0, %arg1 : i32, i32
  }
}

module attributes {stable_mosaic.version = 11 : i64} {
  func.func @_linear_kernel(%arg0: i32, %arg1: i32, %arg2: i32, %arg3: memref<16x128xf32, #tpu.memory_space<vmem>>, %arg4: memref<128x52xbf16, #tpu.memory_space<vmem>>, %arg5: memref<1x52xf32, #tpu.memory_space<vmem>>, %arg6: memref<16x52xf32, #tpu.memory_space<vmem>>, %arg7: memref<16x52xf32, #tpu.memory_space<vmem>>) attributes {dimension_semantics = [#tpu.dimension_semantics<parallel>, #tpu.dimension_semantics<parallel>, #tpu.dimension_semantics<arbitrary>], iteration_bounds = array<i64: 1, 1, 1>, scalar_prefetch = 0 : i64, scratch_operands = 1 : i64, tpu.core_type = #tpu.core_type<tc>, window_params = [{transform_indices = @transform_0, window_bounds = array<i64: 16, 128>}, {transform_indices = @transform_1, window_bounds = array<i64: 128, 52>}, {transform_indices = @transform_2, window_bounds = array<i64: 1, 52>}, {transform_indices = @transform_3, window_bounds = array<i64: 16, 52>}]} {
    %c0_i32 = arith.constant 0 : i32
    %0 = arith.cmpi eq, %arg2, %c0_i32 : i32
    %1 = arith.extui %0 : i1 to i32
    %c0_i32_0 = arith.constant 0 : i32
    %2 = arith.cmpi ne, %1, %c0_i32_0 : i32
    scf.if %2 {
      %cst_10 = arith.constant 0.000000e+00 : f32
      %13 = vector.broadcast %cst_10 : f32 to vector<16x52xf32>
      %c0_11 = arith.constant 0 : index
      %c0_12 = arith.constant 0 : index
      %14 = vector.load %arg7[%c0_11, %c0_12] : memref<16x52xf32, #tpu.memory_space<vmem>>, vector<16x52xf32>
      tpu.vector_store %arg7[%c0_11, %c0_12], %13 {strides = array<i32>} : memref<16x52xf32, #tpu.memory_space<vmem>>, vector<16x52xf32>,
    } else {
    }
    %c0 = arith.constant 0 : index
    %c0_1 = arith.constant 0 : index
    %3 = vector.load %arg7[%c0, %c0_1] : memref<16x52xf32, #tpu.memory_space<vmem>>, vector<16x52xf32>
    %c0_2 = arith.constant 0 : index
    %c0_3 = arith.constant 0 : index
    %4 = vector.load %arg3[%c0_2, %c0_3] : memref<16x128xf32, #tpu.memory_space<vmem>>, vector<16x128xf32>
    %5 = arith.truncf %4 : vector<16x128xf32> to vector<16x128xbf16>
    %c0_4 = arith.constant 0 : index
    %c0_5 = arith.constant 0 : index
    %6 = vector.load %arg4[%c0_4, %c0_5] : memref<128x52xbf16, #tpu.memory_space<vmem>>, vector<128x52xbf16>
    %cst = arith.constant dense<0.000000e+00> : vector<16x52xf32>
    %7 = tpu.matmul %5, %6, %cst {dimension_numbers = #tpu.dot_dimension_numbers<[1], [0], [0], [1], [0, 0, 1, 1], [], []>} : vector<16x128xbf16>, vector<128x52xbf16>, vector<16x52xf32> -> vector<16x52xf32>
    %8 = arith.addf %3, %7 : vector<16x52xf32>
    %c0_6 = arith.constant 0 : index
    %c0_7 = arith.constant 0 : index
    %9 = vector.load %arg7[%c0_6, %c0_7] : memref<16x52xf32, #tpu.memory_space<vmem>>, vector<16x52xf32>
    tpu.vector_store %arg7[%c0_6, %c0_7], %8 {strides = array<i32>} : memref<16x52xf32, #tpu.memory_space<vmem>>, vector<16x52xf32>,
    %c0_i32_8 = arith.constant 0 : i32
    %10 = arith.cmpi eq, %arg2, %c0_i32_8 : i32
    %11 = arith.extui %10 : i1 to i32
    %c0_i32_9 = arith.constant 0 : i32
    %12 = arith.cmpi ne, %11, %c0_i32_9 : i32
    scf.if %12 {
      %c0_10 = arith.constant 0 : index
      %c0_11 = arith.constant 0 : index
      %13 = vector.load %arg7[%c0_10, %c0_11] : memref<16x52xf32, #tpu.memory_space<vmem>>, vector<16x52xf32>
      %c0_12 = arith.constant 0 : index
      %c0_13 = arith.constant 0 : index
      %14 = vector.load %arg5[%c0_12, %c0_13] : memref<1x52xf32, #tpu.memory_space<vmem>>, vector<1x52xf32>
      %15 = vector.broadcast %14 : vector<1x52xf32> to vector<16x52xf32>
      %16 = arith.addf %13, %15 : vector<16x52xf32>
      %c0_14 = arith.constant 0 : index
      %c0_15 = arith.constant 0 : index
      %17 = vector.load %arg6[%c0_14, %c0_15] : memref<16x52xf32, #tpu.memory_space<vmem>>, vector<16x52xf32>
      tpu.vector_store %arg6[%c0_14, %c0_15], %16 {strides = array<i32>} : memref<16x52xf32, #tpu.memory_space<vmem>>, vector<16x52xf32>,
    } else {
    }
    return
  }
  func.func @transform_0(%arg0: i32, %arg1: i32, %arg2: i32) -> (i32, i32) {
    %c0_i32 = arith.constant 0 : i32
    return %arg0, %arg2 : i32, i32
  }
  func.func @transform_1(%arg0: i32, %arg1: i32, %arg2: i32) -> (i32, i32) {
    %c0_i32 = arith.constant 0 : i32
    return %arg2, %arg1 : i32, i32
  }
  func.func @transform_2(%arg0: i32, %arg1: i32, %arg2: i32) -> (i32, i32) {
    %c0_i32 = arith.constant 0 : i32
    %c0_i32_0 = arith.constant 0 : i32
    return %c0_i32, %arg1 : i32, i32
  }
  func.func @transform_3(%arg0: i32, %arg1: i32, %arg2: i32) -> (i32, i32) {
    %c0_i32 = arith.constant 0 : i32
    return %arg0, %arg1 : i32, i32
  }
}

module attributes {stable_mosaic.version = 11 : i64} {
  func.func @_linear_kernel(%arg0: i32, %arg1: i32, %arg2: i32, %arg3: memref<16x128xf32, #tpu.memory_space<vmem>>, %arg4: memref<128x32xbf16, #tpu.memory_space<vmem>>, %arg5: memref<1x32xf32, #tpu.memory_space<vmem>>, %arg6: memref<16x32xf32, #tpu.memory_space<vmem>>, %arg7: memref<16x32xf32, #tpu.memory_space<vmem>>) attributes {dimension_semantics = [#tpu.dimension_semantics<parallel>, #tpu.dimension_semantics<parallel>, #tpu.dimension_semantics<arbitrary>], iteration_bounds = array<i64: 1, 1, 1>, scalar_prefetch = 0 : i64, scratch_operands = 1 : i64, tpu.core_type = #tpu.core_type<tc>, window_params = [{transform_indices = @transform_0, window_bounds = array<i64: 16, 128>}, {transform_indices = @transform_1, window_bounds = array<i64: 128, 32>}, {transform_indices = @transform_2, window_bounds = array<i64: 1, 32>}, {transform_indices = @transform_3, window_bounds = array<i64: 16, 32>}]} {
    %c0_i32 = arith.constant 0 : i32
    %0 = arith.cmpi eq, %arg2, %c0_i32 : i32
    %1 = arith.extui %0 : i1 to i32
    %c0_i32_0 = arith.constant 0 : i32
    %2 = arith.cmpi ne, %1, %c0_i32_0 : i32
    scf.if %2 {
      %cst_10 = arith.constant 0.000000e+00 : f32
      %13 = vector.broadcast %cst_10 : f32 to vector<16x32xf32>
      %c0_11 = arith.constant 0 : index
      %c0_12 = arith.constant 0 : index
      %14 = vector.load %arg7[%c0_11, %c0_12] : memref<16x32xf32, #tpu.memory_space<vmem>>, vector<16x32xf32>
      tpu.vector_store %arg7[%c0_11, %c0_12], %13 {strides = array<i32>} : memref<16x32xf32, #tpu.memory_space<vmem>>, vector<16x32xf32>,
    } else {
    }
    %c0 = arith.constant 0 : index
    %c0_1 = arith.constant 0 : index
    %3 = vector.load %arg7[%c0, %c0_1] : memref<16x32xf32, #tpu.memory_space<vmem>>, vector<16x32xf32>
    %c0_2 = arith.constant 0 : index
    %c0_3 = arith.constant 0 : index
    %4 = vector.load %arg3[%c0_2, %c0_3] : memref<16x128xf32, #tpu.memory_space<vmem>>, vector<16x128xf32>
    %5 = arith.truncf %4 : vector<16x128xf32> to vector<16x128xbf16>
    %c0_4 = arith.constant 0 : index
    %c0_5 = arith.constant 0 : index
    %6 = vector.load %arg4[%c0_4, %c0_5] : memref<128x32xbf16, #tpu.memory_space<vmem>>, vector<128x32xbf16>
    %cst = arith.constant dense<0.000000e+00> : vector<16x32xf32>
    %7 = tpu.matmul %5, %6, %cst {dimension_numbers = #tpu.dot_dimension_numbers<[1], [0], [0], [1], [0, 0, 1, 1], [], []>} : vector<16x128xbf16>, vector<128x32xbf16>, vector<16x32xf32> -> vector<16x32xf32>
    %8 = arith.addf %3, %7 : vector<16x32xf32>
    %c0_6 = arith.constant 0 : index
    %c0_7 = arith.constant 0 : index
    %9 = vector.load %arg7[%c0_6, %c0_7] : memref<16x32xf32, #tpu.memory_space<vmem>>, vector<16x32xf32>
    tpu.vector_store %arg7[%c0_6, %c0_7], %8 {strides = array<i32>} : memref<16x32xf32, #tpu.memory_space<vmem>>, vector<16x32xf32>,
    %c0_i32_8 = arith.constant 0 : i32
    %10 = arith.cmpi eq, %arg2, %c0_i32_8 : i32
    %11 = arith.extui %10 : i1 to i32
    %c0_i32_9 = arith.constant 0 : i32
    %12 = arith.cmpi ne, %11, %c0_i32_9 : i32
    scf.if %12 {
      %c0_10 = arith.constant 0 : index
      %c0_11 = arith.constant 0 : index
      %13 = vector.load %arg7[%c0_10, %c0_11] : memref<16x32xf32, #tpu.memory_space<vmem>>, vector<16x32xf32>
      %c0_12 = arith.constant 0 : index
      %c0_13 = arith.constant 0 : index
      %14 = vector.load %arg5[%c0_12, %c0_13] : memref<1x32xf32, #tpu.memory_space<vmem>>, vector<1x32xf32>
      %15 = vector.broadcast %14 : vector<1x32xf32> to vector<16x32xf32>
      %16 = arith.addf %13, %15 : vector<16x32xf32>
      %c0_14 = arith.constant 0 : index
      %c0_15 = arith.constant 0 : index
      %17 = vector.load %arg6[%c0_14, %c0_15] : memref<16x32xf32, #tpu.memory_space<vmem>>, vector<16x32xf32>
      tpu.vector_store %arg6[%c0_14, %c0_15], %16 {strides = array<i32>} : memref<16x32xf32, #tpu.memory_space<vmem>>, vector<16x32xf32>,
    } else {
    }
    return
  }
  func.func @transform_0(%arg0: i32, %arg1: i32, %arg2: i32) -> (i32, i32) {
    %c0_i32 = arith.constant 0 : i32
    return %arg0, %arg2 : i32, i32
  }
  func.func @transform_1(%arg0: i32, %arg1: i32, %arg2: i32) -> (i32, i32) {
    %c0_i32 = arith.constant 0 : i32
    return %arg2, %arg1 : i32, i32
  }
  func.func @transform_2(%arg0: i32, %arg1: i32, %arg2: i32) -> (i32, i32) {
    %c0_i32 = arith.constant 0 : i32
    %c0_i32_0 = arith.constant 0 : i32
    return %c0_i32, %arg1 : i32, i32
  }
  func.func @transform_3(%arg0: i32, %arg1: i32, %arg2: i32) -> (i32, i32) {
    %c0_i32 = arith.constant 0 : i32
    return %arg0, %arg1 : i32, i32
  }
}

</mosaic_0001>

<llo_original>
// kernel: _lambda_.21
$region0: #{_lambda_.21}
  #allocation0 [shape = 'u32[]', space=smem, size = 0x4, offset = 0x4, fixed_abs, tag = 'smem constant byte address 0x4 - core index']
  #allocation1 [shape = 'u32[144,128]{1,0:T(1,128)}', space=vmem, size = 0x12000, scoped, tag = 'internal scratch']
  #allocation2 [shape = 'f32[16,128]{1,0:T(8,128)}', space=vmem, size = 0x2000, scoped, tag = 'scratch operand']
  %s0 = inlined_call_operand.vmem [shape: f32[16,32], index: 0, kind: input, shape index: {}]
  %s1 = inlined_call_operand.vmem [shape: bf16[32,128], index: 1, kind: input, shape index: {}]
  %s2 = inlined_call_operand.vmem [shape: f32[1,128], index: 2, kind: input, shape index: {}]
  %s3 = inlined_call_operand.vmem [shape: f32[16,128], index: 3, kind: output, shape index: {}]
  %s4 = sld [smem:[#allocation0]]
  $region30: #{_lambda_.21} parent=0
    _
  %s6 = ssub.s32 1, %s4
  %s7 = scalar_select 0, %s6, %s4
  // Predicated region
  $region2: #{_lambda_.21} parent=0 // pred_check
    _
  $region3: #{_lambda_.21} parent=0 // pred_check_branch
    %9 = sbr.rel (0) target = $region5
  $region4: #{_lambda_.21} parent=0 // pred_region
    _
  $region5: #{_lambda_.21} parent=0 // pred_fallthru
    _
  // Predicated region
  $region6: #{_lambda_.21} parent=0 // pred_check
    _
  $region7: #{_lambda_.21} parent=0 // pred_check_branch
    %11 = sbr.rel (0) target = $region9
  $region8: #{_lambda_.21} parent=0 // pred_region
    _
  $region9: #{_lambda_.21} parent=0 // pred_fallthru
    _
  // Predicated region
  $region10: #{_lambda_.21} parent=0 // pred_check
    _
  $region11: #{_lambda_.21} parent=0 // pred_check_branch
    %13 = sbr.rel (0) target = $region13
  $region12: #{_lambda_.21} parent=0 // pred_region
    _
  $region13: #{_lambda_.21} parent=0 // pred_fallthru
    _
  %p15 = scmp.eq.s32.totalorder 0, 0
  // Predicated region
  $region14: #{_lambda_.21} parent=0 // pred_check
    %p16 = pneg %p15
  $region15: #{_lambda_.21} parent=0 // pred_check_branch
    %18 = sbr.rel (%p16) target = $region17
  $region16: #{_lambda_.21} parent=0 // pred_region
    %19 = vst [vmem:[#allocation2] sm:$0xff] 0.0
    %20 = vst [vmem:[#allocation2 + $0x8] sm:$0xff] 0.0
  $region17: #{_lambda_.21} parent=0 // pred_fallthru
    _
  %v21 = vld [vmem:[#allocation2] sm:$0xff]
  %v22 = vld [vmem:[#allocation2 + $0x8] sm:$0xff]
  %v23 = vld [vmem:[%s0] sm:$0xff]
  %v24 = vld [vmem:[%s0 + $0x8] sm:$0xff]
  %v25 = vpack.c.bf16 %v24, %v23
  %v26 = vld [vmem:[%s1] sm:$0xf]
  %v27 = vld [vmem:[%s1 + $0x4] sm:$0xf]
  %v28 = vld [vmem:[%s1 + $0x8] sm:$0xf]
  %v29 = vld [vmem:[%s1 + $0xc] sm:$0xf]
  %v34 = vunpack.c.l.b16 %v26
  %v35 = vunpack.c.l.b16 %v27
  %v36 = vunpack.c.l.b16 %v28
  %v37 = vunpack.c.l.b16 %v29
  %v38 = vpack.c.b16 %v35, %v34
  %v39 = vpack.c.b16 %v37, %v36
  %vm42 = vcmask 261120
  %v44 = vsel %vm42, %v25, 0
  %46 = vmatprep.subr.bf16.mxu0 0
  %47 = vmatpush1.bf16.msra.mxu0 %v38
  %48 = vmatprep.subr.bf16.mxu0 0
  %49 = vmatpush1.bf16.msra.mxu0 %v39
  %50 = vmatprep.subr.bf16.mxu0 0
  %51 = vmatpush1.bf16.msra.mxu0 0
  %52 = vmatprep.subr.bf16.mxu0 0
  %53 = vmatpush1.bf16.msra.mxu0 0
  %54 = vmatprep.subr.bf16.mxu0 0
  %55 = vmatpush1.bf16.msra.mxu0 0
  %56 = vmatprep.subr.bf16.mxu0 0
  %57 = vmatpush1.bf16.msra.mxu0 0
  %58 = vmatprep.subr.bf16.mxu0 0
  %59 = vmatpush1.bf16.msra.mxu0 0
  %60 = vmatprep.subr.bf16.mxu0 0
  %61 = vmatpush1.bf16.msra.mxu0 0
  %62 = vmatprep.subr.bf16.mxu0 0
  %63 = vmatpush1.bf16.msra.mxu0 0
  %64 = vmatprep.subr.bf16.mxu0 0
  %65 = vmatpush1.bf16.msra.mxu0 0
  %66 = vmatprep.subr.bf16.mxu0 0
  %67 = vmatpush1.bf16.msra.mxu0 0
  %68 = vmatprep.subr.bf16.mxu0 0
  %69 = vmatpush1.bf16.msra.mxu0 0
  %70 = vmatprep.subr.bf16.mxu0 0
  %71 = vmatpush1.bf16.msra.mxu0 0
  %72 = vmatprep.subr.bf16.mxu0 0
  %73 = vmatpush1.bf16.msra.mxu0 0
  %74 = vmatprep.subr.bf16.mxu0 0
  %75 = vmatpush1.bf16.msra.mxu0 0
  %76 = vmatprep.subr.bf16.mxu0 0
  %77 = vmatpush1.bf16.msra.mxu0 0
  %78 = vmatprep.mubr.bf16.mxu0 0
  %79 = vmatmul.mubr.bf16.gmra.mrb[0].mxu0 %v44
  %v80 = vpop.f32.mrb[0].mxu0
  %v81 = vadd.f32 0.0, %v80
  %v82 = vpop.f32.mrb[0].mxu0
  %v83 = vpop.f32.mrb[0].mxu0
  %v84 = vadd.f32 0.0, %v83
  %v85 = vpop.f32.mrb[0].mxu0
  %86 = vdwg.mxu0
  %v87 = vadd.f32 %v21, %v81
  %v88 = vadd.f32 %v22, %v84
  %89 = vst [vmem:[#allocation2] sm:$0xff] %v87
  %90 = vst [vmem:[#allocation2 + $0x8] sm:$0xff] %v88
  // Predicated region
  $region18: #{_lambda_.21} parent=0 // pred_check
    %p91 = pneg %p15
  $region19: #{_lambda_.21} parent=0 // pred_check_branch
    %93 = sbr.rel (%p91) target = $region21
  $region20: #{_lambda_.21} parent=0 // pred_region
    %v94 = vld [vmem:[#allocation2] sm:$0xff]
    %v95 = vld [vmem:[#allocation2 + $0x8] sm:$0xff]
    %v96 = vld [vmem:[%s2] sm:$0x1]
    %v98 = vlaneseq
    %v99 = vshrl.u32 %v98, 7
    %v100 = vsub.s32 0, %v99
    %v101 = vrot.slane %v96, %v100
    %v103 = vadd.f32 %v94, %v101
    %v104 = vadd.f32 %v95, %v101
    %105 = vst [vmem:[%s3] sm:$0xff] %v103
    %106 = vst [vmem:[%s3 + $0x8] sm:$0xff] %v104
  $region21: #{_lambda_.21} parent=0 // pred_fallthru
    _
  // Predicated region
  $region22: #{_lambda_.21} parent=0 // pred_check
    _
  $region23: #{_lambda_.21} parent=0 // pred_check_branch
    %108 = sbr.rel (0) target = $region25
  $region24: #{_lambda_.21} parent=0 // pred_region
    _
  $region25: #{_lambda_.21} parent=0 // pred_fallthru
    _
  // Predicated region
  $region26: #{_lambda_.21} parent=0 // pred_check
    _
  $region27: #{_lambda_.21} parent=0 // pred_check_branch
    %110 = sbr.rel (0) target = $region29
  $region28: #{_lambda_.21} parent=0 // pred_region
    _
  $region29: #{_lambda_.21} parent=0 // pred_fallthru
    _

// kernel: _lambda_.22
$region0: #{_lambda_.22}
  #allocation0 [shape = 'u32[]', space=smem, size = 0x4, offset = 0x4, fixed_abs, tag = 'smem constant byte address 0x4 - core index']
  #allocation1 [shape = 'u32[144,128]{1,0:T(1,128)}', space=vmem, size = 0x12000, scoped, tag = 'internal scratch']
  #allocation2 [shape = 'f32[2,128]{1,0:T(2,128)}', space=vmem, size = 0x400, scoped, tag = 'scratch operand']
  %s0 = inlined_call_operand.vmem [shape: f32[2,96], index: 0, kind: input, shape index: {}]
  %s1 = inlined_call_operand.vmem [shape: bf16[96,128], index: 1, kind: input, shape index: {}]
  %s2 = inlined_call_operand.vmem [shape: f32[1,128], index: 2, kind: input, shape index: {}]
  %s3 = inlined_call_operand.vmem [shape: f32[2,128], index: 3, kind: output, shape index: {}]
  %s4 = sld [smem:[#allocation0]]
  $region30: #{_lambda_.22} parent=0
    _
  %s6 = ssub.s32 1, %s4
  %s7 = scalar_select 0, %s6, %s4
  // Predicated region
  $region2: #{_lambda_.22} parent=0 // pred_check
    _
  $region3: #{_lambda_.22} parent=0 // pred_check_branch
    %9 = sbr.rel (0) target = $region5
  $region4: #{_lambda_.22} parent=0 // pred_region
    _
  $region5: #{_lambda_.22} parent=0 // pred_fallthru
    _
  // Predicated region
  $region6: #{_lambda_.22} parent=0 // pred_check
    _
  $region7: #{_lambda_.22} parent=0 // pred_check_branch
    %11 = sbr.rel (0) target = $region9
  $region8: #{_lambda_.22} parent=0 // pred_region
    _
  $region9: #{_lambda_.22} parent=0 // pred_fallthru
    _
  // Predicated region
  $region10: #{_lambda_.22} parent=0 // pred_check
    _
  $region11: #{_lambda_.22} parent=0 // pred_check_branch
    %13 = sbr.rel (0) target = $region13
  $region12: #{_lambda_.22} parent=0 // pred_region
    _
  $region13: #{_lambda_.22} parent=0 // pred_fallthru
    _
  %p15 = scmp.eq.s32.totalorder 0, 0
  // Predicated region
  $region14: #{_lambda_.22} parent=0 // pred_check
    %p16 = pneg %p15
  $region15: #{_lambda_.22} parent=0 // pred_check_branch
    %18 = sbr.rel (%p16) target = $region17
  $region16: #{_lambda_.22} parent=0 // pred_region
    %19 = vst [vmem:[#allocation2] sm:$0x3] 0.0
  $region17: #{_lambda_.22} parent=0 // pred_fallthru
    _
  %v20 = vld [vmem:[#allocation2] sm:$0x3]
  %v21 = vld [vmem:[%s0] sm:$0x3]
  %v22 = vpack.c.bf16 %v21, %v21
  %v23 = vld [vmem:[%s1] sm:$0xf]
  %v24 = vld [vmem:[%s1 + $0x4] sm:$0xf]
  %v25 = vld [vmem:[%s1 + $0x8] sm:$0xf]
  %v26 = vld [vmem:[%s1 + $0xc] sm:$0xf]
  %v27 = vld [vmem:[%s1 + $0x10] sm:$0xf]
  %v28 = vld [vmem:[%s1 + $0x14] sm:$0xf]
  %v29 = vld [vmem:[%s1 + $0x18] sm:$0xf]
  %v30 = vld [vmem:[%s1 + $0x1c] sm:$0xf]
  %v31 = vld [vmem:[%s1 + $0x20] sm:$0xf]
  %v32 = vld [vmem:[%s1 + $0x24] sm:$0xf]
  %v33 = vld [vmem:[%s1 + $0x28] sm:$0xf]
  %v34 = vld [vmem:[%s1 + $0x2c] sm:$0xf]
  %v47 = vunpack.c.l.b16 %v23
  %v48 = vunpack.c.l.b16 %v24
  %v49 = vunpack.c.l.b16 %v25
  %v50 = vunpack.c.l.b16 %v26
  %v51 = vunpack.c.l.b16 %v27
  %v52 = vunpack.c.l.b16 %v28
  %v53 = vunpack.c.l.b16 %v29
  %v54 = vunpack.c.l.b16 %v30
  %v55 = vunpack.c.l.b16 %v31
  %v56 = vunpack.c.l.b16 %v32
  %v57 = vunpack.c.l.b16 %v33
  %v58 = vunpack.c.l.b16 %v34
  %v59 = vpack.c.b16 %v48, %v47
  %v60 = vpack.c.b16 %v50, %v49
  %v61 = vpack.c.b16 %v52, %v51
  %v62 = vpack.c.b16 %v54, %v53
  %v63 = vpack.c.b16 %v56, %v55
  %v64 = vpack.c.b16 %v58, %v57
  %vm71 = vcmask 785408
  %v73 = vsel %vm71, %v22, 0
  %75 = vmatprep.subr.bf16.mxu0 0
  %76 = vmatpush1.bf16.msra.mxu0 %v59
  %77 = vmatprep.subr.bf16.mxu0 0
  %78 = vmatpush1.bf16.msra.mxu0 %v60
  %79 = vmatprep.subr.bf16.mxu0 0
  %80 = vmatpush1.bf16.msra.mxu0 %v61
  %81 = vmatprep.subr.bf16.mxu0 0
  %82 = vmatpush1.bf16.msra.mxu0 %v62
  %83 = vmatprep.subr.bf16.mxu0 0
  %84 = vmatpush1.bf16.msra.mxu0 %v63
  %85 = vmatprep.subr.bf16.mxu0 0
  %86 = vmatpush1.bf16.msra.mxu0 %v64
  %87 = vmatprep.subr.bf16.mxu0 0
  %88 = vmatpush1.bf16.msra.mxu0 0
  %89 = vmatprep.subr.bf16.mxu0 0
  %90 = vmatpush1.bf16.msra.mxu0 0
  %91 = vmatprep.subr.bf16.mxu0 0
  %92 = vmatpush1.bf16.msra.mxu0 0
  %93 = vmatprep.subr.bf16.mxu0 0
  %94 = vmatpush1.bf16.msra.mxu0 0
  %95 = vmatprep.subr.bf16.mxu0 0
  %96 = vmatpush1.bf16.msra.mxu0 0
  %97 = vmatprep.subr.bf16.mxu0 0
  %98 = vmatpush1.bf16.msra.mxu0 0
  %99 = vmatprep.subr.bf16.mxu0 0
  %100 = vmatpush1.bf16.msra.mxu0 0
  %101 = vmatprep.subr.bf16.mxu0 0
  %102 = vmatpush1.bf16.msra.mxu0 0
  %103 = vmatprep.subr.bf16.mxu0 0
  %104 = vmatpush1.bf16.msra.mxu0 0
  %105 = vmatprep.subr.bf16.mxu0 0
  %106 = vmatpush1.bf16.msra.mxu0 0
  %107 = vmatprep.mubr.bf16.mxu0 0
  %108 = vmatmul.mubr.bf16.gmra.mrb[0].mxu0 %v73
  %v109 = vpop.f32.mrb[0].mxu0
  %v110 = vadd.f32 0.0, %v109
  %v111 = vpop.f32.mrb[0].mxu0
  %v112 = vpop.f32.mrb[0].mxu0
  %v113 = vpop.f32.mrb[0].mxu0
  %114 = vdwg.mxu0
  %v115 = vadd.f32 %v20, %v110
  %116 = vst [vmem:[#allocation2] sm:$0x3] %v115
  // Predicated region
  $region18: #{_lambda_.22} parent=0 // pred_check
    %p117 = pneg %p15
  $region19: #{_lambda_.22} parent=0 // pred_check_branch
    %119 = sbr.rel (%p117) target = $region21
  $region20: #{_lambda_.22} parent=0 // pred_region
    %v120 = vld [vmem:[#allocation2] sm:$0x3]
    %v121 = vld [vmem:[%s2] sm:$0x1]
    %v123 = vlaneseq
    %v124 = vshrl.u32 %v123, 7
    %v125 = vsub.s32 0, %v124
    %v126 = vrot.slane %v121, %v125
    %v128 = vadd.f32 %v120, %v126
    %129 = vst [vmem:[%s3] sm:$0x3] %v128
  $region21: #{_lambda_.22} parent=0 // pred_fallthru
    _
  // Predicated region
  $region22: #{_lambda_.22} parent=0 // pred_check
    _
  $region23: #{_lambda_.22} parent=0 // pred_check_branch
    %131 = sbr.rel (0) target = $region25
  $region24: #{_lambda_.22} parent=0 // pred_region
    _
  $region25: #{_lambda_.22} parent=0 // pred_fallthru
    _
  // Predicated region
  $region26: #{_lambda_.22} parent=0 // pred_check
    _
  $region27: #{_lambda_.22} parent=0 // pred_check_branch
    %133 = sbr.rel (0) target = $region29
  $region28: #{_lambda_.22} parent=0 // pred_region
    _
  $region29: #{_lambda_.22} parent=0 // pred_fallthru
    _

// kernel: _lambda_.20
$region0: #{_lambda_.20}
  #allocation0 [shape = 'u32[]', space=smem, size = 0x4, offset = 0x4, fixed_abs, tag = 'smem constant byte address 0x4 - core index']
  #allocation1 [shape = 'u32[144,128]{1,0:T(1,128)}', space=vmem, size = 0x12000, scoped, tag = 'internal scratch']
  #allocation2 [shape = 'f32[16,128]{1,0:T(8,128)}', space=vmem, size = 0x2000, scoped, tag = 'scratch operand']
  %s0 = inlined_call_operand.vmem [shape: f32[16,16], index: 0, kind: input, shape index: {}]
  %s1 = inlined_call_operand.vmem [shape: bf16[16,128], index: 1, kind: input, shape index: {}]
  %s2 = inlined_call_operand.vmem [shape: f32[1,128], index: 2, kind: input, shape index: {}]
  %s3 = inlined_call_operand.vmem [shape: f32[16,128], index: 3, kind: output, shape index: {}]
  %s4 = sld [smem:[#allocation0]]
  $region30: #{_lambda_.20} parent=0
    _
  %s6 = ssub.s32 1, %s4
  %s7 = scalar_select 0, %s6, %s4
  // Predicated region
  $region2: #{_lambda_.20} parent=0 // pred_check
    _
  $region3: #{_lambda_.20} parent=0 // pred_check_branch
    %9 = sbr.rel (0) target = $region5
  $region4: #{_lambda_.20} parent=0 // pred_region
    _
  $region5: #{_lambda_.20} parent=0 // pred_fallthru
    _
  // Predicated region
  $region6: #{_lambda_.20} parent=0 // pred_check
    _
  $region7: #{_lambda_.20} parent=0 // pred_check_branch
    %11 = sbr.rel (0) target = $region9
  $region8: #{_lambda_.20} parent=0 // pred_region
    _
  $region9: #{_lambda_.20} parent=0 // pred_fallthru
    _
  // Predicated region
  $region10: #{_lambda_.20} parent=0 // pred_check
    _
  $region11: #{_lambda_.20} parent=0 // pred_check_branch
    %13 = sbr.rel (0) target = $region13
  $region12: #{_lambda_.20} parent=0 // pred_region
    _
  $region13: #{_lambda_.20} parent=0 // pred_fallthru
    _
  %p15 = scmp.eq.s32.totalorder 0, 0
  // Predicated region
  $region14: #{_lambda_.20} parent=0 // pred_check
    %p16 = pneg %p15
  $region15: #{_lambda_.20} parent=0 // pred_check_branch
    %18 = sbr.rel (%p16) target = $region17
  $region16: #{_lambda_.20} parent=0 // pred_region
    %19 = vst [vmem:[#allocation2] sm:$0xff] 0.0
    %20 = vst [vmem:[#allocation2 + $0x8] sm:$0xff] 0.0
  $region17: #{_lambda_.20} parent=0 // pred_fallthru
    _
  %v21 = vld [vmem:[#allocation2] sm:$0xff]
  %v22 = vld [vmem:[#allocation2 + $0x8] sm:$0xff]
  %v23 = vld [vmem:[%s0] sm:$0xff]
  %v24 = vld [vmem:[%s0 + $0x8] sm:$0xff]
  %v25 = vpack.c.bf16 %v24, %v23
  %v26 = vld [vmem:[%s1] sm:$0xf]
  %v27 = vld [vmem:[%s1 + $0x4] sm:$0xf]
  %v30 = vunpack.c.l.b16 %v26
  %v31 = vunpack.c.l.b16 %v27
  %v32 = vpack.c.b16 %v31, %v30
  %vm34 = vcmask 130048
  %v36 = vsel %vm34, %v25, 0
  %38 = vmatprep.subr.bf16.mxu0 0
  %39 = vmatpush1.bf16.msra.mxu0 %v32
  %40 = vmatprep.subr.bf16.mxu0 0
  %41 = vmatpush1.bf16.msra.mxu0 0
  %42 = vmatprep.subr.bf16.mxu0 0
  %43 = vmatpush1.bf16.msra.mxu0 0
  %44 = vmatprep.subr.bf16.mxu0 0
  %45 = vmatpush1.bf16.msra.mxu0 0
  %46 = vmatprep.subr.bf16.mxu0 0
  %47 = vmatpush1.bf16.msra.mxu0 0
  %48 = vmatprep.subr.bf16.mxu0 0
  %49 = vmatpush1.bf16.msra.mxu0 0
  %50 = vmatprep.subr.bf16.mxu0 0
  %51 = vmatpush1.bf16.msra.mxu0 0
  %52 = vmatprep.subr.bf16.mxu0 0
  %53 = vmatpush1.bf16.msra.mxu0 0
  %54 = vmatprep.subr.bf16.mxu0 0
  %55 = vmatpush1.bf16.msra.mxu0 0
  %56 = vmatprep.subr.bf16.mxu0 0
  %57 = vmatpush1.bf16.msra.mxu0 0
  %58 = vmatprep.subr.bf16.mxu0 0
  %59 = vmatpush1.bf16.msra.mxu0 0
  %60 = vmatprep.subr.bf16.mxu0 0
  %61 = vmatpush1.bf16.msra.mxu0 0
  %62 = vmatprep.subr.bf16.mxu0 0
  %63 = vmatpush1.bf16.msra.mxu0 0
  %64 = vmatprep.subr.bf16.mxu0 0
  %65 = vmatpush1.bf16.msra.mxu0 0
  %66 = vmatprep.subr.bf16.mxu0 0
  %67 = vmatpush1.bf16.msra.mxu0 0
  %68 = vmatprep.subr.bf16.mxu0 0
  %69 = vmatpush1.bf16.msra.mxu0 0
  %70 = vmatprep.mubr.bf16.mxu0 0
  %71 = vmatmul.mubr.bf16.gmra.mrb[0].mxu0 %v36
  %v72 = vpop.f32.mrb[0].mxu0
  %v73 = vadd.f32 0.0, %v72
  %v74 = vpop.f32.mrb[0].mxu0
  %v75 = vpop.f32.mrb[0].mxu0
  %v76 = vadd.f32 0.0, %v75
  %v77 = vpop.f32.mrb[0].mxu0
  %78 = vdwg.mxu0
  %v79 = vadd.f32 %v21, %v73
  %v80 = vadd.f32 %v22, %v76
  %81 = vst [vmem:[#allocation2] sm:$0xff] %v79
  %82 = vst [vmem:[#allocation2 + $0x8] sm:$0xff] %v80
  // Predicated region
  $region18: #{_lambda_.20} parent=0 // pred_check
    %p83 = pneg %p15
  $region19: #{_lambda_.20} parent=0 // pred_check_branch
    %85 = sbr.rel (%p83) target = $region21
  $region20: #{_lambda_.20} parent=0 // pred_region
    %v86 = vld [vmem:[#allocation2] sm:$0xff]
    %v87 = vld [vmem:[#allocation2 + $0x8] sm:$0xff]
    %v88 = vld [vmem:[%s2] sm:$0x1]
    %v90 = vlaneseq
    %v91 = vshrl.u32 %v90, 7
    %v92 = vsub.s32 0, %v91
    %v93 = vrot.slane %v88, %v92
    %v95 = vadd.f32 %v86, %v93
    %v96 = vadd.f32 %v87, %v93
    %97 = vst [vmem:[%s3] sm:$0xff] %v95
    %98 = vst [vmem:[%s3 + $0x8] sm:$0xff] %v96
  $region21: #{_lambda_.20} parent=0 // pred_fallthru
    _
  // Predicated region
  $region22: #{_lambda_.20} parent=0 // pred_check
    _
  $region23: #{_lambda_.20} parent=0 // pred_check_branch
    %100 = sbr.rel (0) target = $region25
  $region24: #{_lambda_.20} parent=0 // pred_region
    _
  $region25: #{_lambda_.20} parent=0 // pred_fallthru
    _
  // Predicated region
  $region26: #{_lambda_.20} parent=0 // pred_check
    _
  $region27: #{_lambda_.20} parent=0 // pred_check_branch
    %102 = sbr.rel (0) target = $region29
  $region28: #{_lambda_.20} parent=0 // pred_region
    _
  $region29: #{_lambda_.20} parent=0 // pred_fallthru
    _

// kernel: _lambda_.23
$region0: #{_lambda_.23}
  #allocation0 [shape = 'u32[]', space=smem, size = 0x4, offset = 0x4, fixed_abs, tag = 'smem constant byte address 0x4 - core index']
  #allocation1 [shape = 'u32[144,128]{1,0:T(1,128)}', space=vmem, size = 0x12000, scoped, tag = 'internal scratch']
  #allocation2 [shape = 'f32[2,128]{1,0:T(2,128)}', space=vmem, size = 0x400, scoped, tag = 'scratch operand']
  %s0 = inlined_call_operand.vmem [shape: f32[2,128], index: 0, kind: input, shape index: {}]
  %s1 = inlined_call_operand.vmem [shape: bf16[128,128], index: 1, kind: input, shape index: {}]
  %s2 = inlined_call_operand.vmem [shape: f32[1,128], index: 2, kind: input, shape index: {}]
  %s3 = inlined_call_operand.vmem [shape: f32[2,128], index: 3, kind: output, shape index: {}]
  %s4 = sld [smem:[#allocation0]]
  $region30: #{_lambda_.23} parent=0
    _
  %s6 = ssub.s32 1, %s4
  %s7 = scalar_select 0, %s6, %s4
  // Predicated region
  $region2: #{_lambda_.23} parent=0 // pred_check
    _
  $region3: #{_lambda_.23} parent=0 // pred_check_branch
    %9 = sbr.rel (0) target = $region5
  $region4: #{_lambda_.23} parent=0 // pred_region
    _
  $region5: #{_lambda_.23} parent=0 // pred_fallthru
    _
  // Predicated region
  $region6: #{_lambda_.23} parent=0 // pred_check
    _
  $region7: #{_lambda_.23} parent=0 // pred_check_branch
    %11 = sbr.rel (0) target = $region9
  $region8: #{_lambda_.23} parent=0 // pred_region
    _
  $region9: #{_lambda_.23} parent=0 // pred_fallthru
    _
  // Predicated region
  $region10: #{_lambda_.23} parent=0 // pred_check
    _
  $region11: #{_lambda_.23} parent=0 // pred_check_branch
    %13 = sbr.rel (0) target = $region13
  $region12: #{_lambda_.23} parent=0 // pred_region
    _
  $region13: #{_lambda_.23} parent=0 // pred_fallthru
    _
  %p15 = scmp.eq.s32.totalorder 0, 0
  // Predicated region
  $region14: #{_lambda_.23} parent=0 // pred_check
    %p16 = pneg %p15
  $region15: #{_lambda_.23} parent=0 // pred_check_branch
    %18 = sbr.rel (%p16) target = $region17
  $region16: #{_lambda_.23} parent=0 // pred_region
    %19 = vst [vmem:[#allocation2] sm:$0x3] 0.0
  $region17: #{_lambda_.23} parent=0 // pred_fallthru
    _
  %v20 = vld [vmem:[#allocation2] sm:$0x3]
  %v21 = vld [vmem:[%s0] sm:$0x3]
  %v22 = vpack.c.bf16 %v21, %v21
  %v23 = vld [vmem:[%s1] sm:$0xf]
  %v24 = vld [vmem:[%s1 + $0x4] sm:$0xf]
  %v25 = vld [vmem:[%s1 + $0x8] sm:$0xf]
  %v26 = vld [vmem:[%s1 + $0xc] sm:$0xf]
  %v27 = vld [vmem:[%s1 + $0x10] sm:$0xf]
  %v28 = vld [vmem:[%s1 + $0x14] sm:$0xf]
  %v29 = vld [vmem:[%s1 + $0x18] sm:$0xf]
  %v30 = vld [vmem:[%s1 + $0x1c] sm:$0xf]
  %v31 = vld [vmem:[%s1 + $0x20] sm:$0xf]
  %v32 = vld [vmem:[%s1 + $0x24] sm:$0xf]
  %v33 = vld [vmem:[%s1 + $0x28] sm:$0xf]
  %v34 = vld [vmem:[%s1 + $0x2c] sm:$0xf]
  %v35 = vld [vmem:[%s1 + $0x30] sm:$0xf]
  %v36 = vld [vmem:[%s1 + $0x34] sm:$0xf]
  %v37 = vld [vmem:[%s1 + $0x38] sm:$0xf]
  %v38 = vld [vmem:[%s1 + $0x3c] sm:$0xf]
  %v55 = vunpack.c.l.b16 %v23
  %v56 = vunpack.c.l.b16 %v24
  %v57 = vunpack.c.l.b16 %v25
  %v58 = vunpack.c.l.b16 %v26
  %v59 = vunpack.c.l.b16 %v27
  %v60 = vunpack.c.l.b16 %v28
  %v61 = vunpack.c.l.b16 %v29
  %v62 = vunpack.c.l.b16 %v30
  %v63 = vunpack.c.l.b16 %v31
  %v64 = vunpack.c.l.b16 %v32
  %v65 = vunpack.c.l.b16 %v33
  %v66 = vunpack.c.l.b16 %v34
  %v67 = vunpack.c.l.b16 %v35
  %v68 = vunpack.c.l.b16 %v36
  %v69 = vunpack.c.l.b16 %v37
  %v70 = vunpack.c.l.b16 %v38
  %v71 = vpack.c.b16 %v56, %v55
  %v72 = vpack.c.b16 %v58, %v57
  %v73 = vpack.c.b16 %v60, %v59
  %v74 = vpack.c.b16 %v62, %v61
  %v75 = vpack.c.b16 %v64, %v63
  %v76 = vpack.c.b16 %v66, %v65
  %v77 = vpack.c.b16 %v68, %v67
  %v78 = vpack.c.b16 %v70, %v69
  %87 = vmatprep.subr.bf16.mxu0 0
  %88 = vmatpush1.bf16.msra.mxu0 %v71
  %89 = vmatprep.subr.bf16.mxu0 0
  %90 = vmatpush1.bf16.msra.mxu0 %v72
  %91 = vmatprep.subr.bf16.mxu0 0
  %92 = vmatpush1.bf16.msra.mxu0 %v73
  %93 = vmatprep.subr.bf16.mxu0 0
  %94 = vmatpush1.bf16.msra.mxu0 %v74
  %95 = vmatprep.subr.bf16.mxu0 0
  %96 = vmatpush1.bf16.msra.mxu0 %v75
  %97 = vmatprep.subr.bf16.mxu0 0
  %98 = vmatpush1.bf16.msra.mxu0 %v76
  %99 = vmatprep.subr.bf16.mxu0 0
  %100 = vmatpush1.bf16.msra.mxu0 %v77
  %101 = vmatprep.subr.bf16.mxu0 0
  %102 = vmatpush1.bf16.msra.mxu0 %v78
  %103 = vmatprep.subr.bf16.mxu0 0
  %104 = vmatpush1.bf16.msra.mxu0 0
  %105 = vmatprep.subr.bf16.mxu0 0
  %106 = vmatpush1.bf16.msra.mxu0 0
  %107 = vmatprep.subr.bf16.mxu0 0
  %108 = vmatpush1.bf16.msra.mxu0 0
  %109 = vmatprep.subr.bf16.mxu0 0
  %110 = vmatpush1.bf16.msra.mxu0 0
  %111 = vmatprep.subr.bf16.mxu0 0
  %112 = vmatpush1.bf16.msra.mxu0 0
  %113 = vmatprep.subr.bf16.mxu0 0
  %114 = vmatpush1.bf16.msra.mxu0 0
  %115 = vmatprep.subr.bf16.mxu0 0
  %116 = vmatpush1.bf16.msra.mxu0 0
  %117 = vmatprep.subr.bf16.mxu0 0
  %118 = vmatpush1.bf16.msra.mxu0 0
  %119 = vmatprep.mubr.bf16.mxu0 0
  %120 = vmatmul.mubr.bf16.gmra.mrb[0].mxu0 %v22
  %v121 = vpop.f32.mrb[0].mxu0
  %v122 = vadd.f32 0.0, %v121
  %v123 = vpop.f32.mrb[0].mxu0
  %v124 = vpop.f32.mrb[0].mxu0
  %v125 = vpop.f32.mrb[0].mxu0
  %126 = vdwg.mxu0
  %v127 = vadd.f32 %v20, %v122
  %128 = vst [vmem:[#allocation2] sm:$0x3] %v127
  // Predicated region
  $region18: #{_lambda_.23} parent=0 // pred_check
    %p129 = pneg %p15
  $region19: #{_lambda_.23} parent=0 // pred_check_branch
    %131 = sbr.rel (%p129) target = $region21
  $region20: #{_lambda_.23} parent=0 // pred_region
    %v132 = vld [vmem:[#allocation2] sm:$0x3]
    %v133 = vld [vmem:[%s2] sm:$0x1]
    %v135 = vlaneseq
    %v136 = vshrl.u32 %v135, 7
    %v137 = vsub.s32 0, %v136
    %v138 = vrot.slane %v133, %v137
    %v140 = vadd.f32 %v132, %v138
    %141 = vst [vmem:[%s3] sm:$0x3] %v140
  $region21: #{_lambda_.23} parent=0 // pred_fallthru
    _
  // Predicated region
  $region22: #{_lambda_.23} parent=0 // pred_check
    _
  $region23: #{_lambda_.23} parent=0 // pred_check_branch
    %143 = sbr.rel (0) target = $region25
  $region24: #{_lambda_.23} parent=0 // pred_region
    _
  $region25: #{_lambda_.23} parent=0 // pred_fallthru
    _
  // Predicated region
  $region26: #{_lambda_.23} parent=0 // pred_check
    _
  $region27: #{_lambda_.23} parent=0 // pred_check_branch
    %145 = sbr.rel (0) target = $region29
  $region28: #{_lambda_.23} parent=0 // pred_region
    _
  $region29: #{_lambda_.23} parent=0 // pred_fallthru
    _

// kernel: _lambda_.25
$region0: #{_lambda_.25}
  #allocation0 [shape = 'u32[]', space=smem, size = 0x4, offset = 0x4, fixed_abs, tag = 'smem constant byte address 0x4 - core index']
  #allocation1 [shape = 'u32[144,128]{1,0:T(1,128)}', space=vmem, size = 0x12000, scoped, tag = 'internal scratch']
  #allocation2 [shape = 'f32[16,128]{1,0:T(8,128)}', space=vmem, size = 0x2000, scoped, tag = 'scratch operand']
  %s0 = inlined_call_operand.vmem [shape: bf16[16,128], index: 0, kind: input, shape index: {}]
  %s1 = inlined_call_operand.vmem [shape: bf16[128,384], index: 1, kind: input, shape index: {}]
  %s2 = inlined_call_operand.vmem [shape: f32[1,384], index: 2, kind: input, shape index: {}]
  %s3 = inlined_call_operand.vmem [shape: bf16[16,384], index: 3, kind: output, shape index: {}]
  %s4 = sld [smem:[#allocation0]]
  $region131: #{_lambda_.25} parent=0
    _
  %s6 = ssub.s32 1, %s4
  %s7 = scalar_select 0, %s6, %s4
  $region1: #{_lambda_.25} parent=0
    #allocation3 [shape = 'u8[65536]{0}', space=vmem, size = 0x10000, scoped, tag = 'input window, operand 1']
    #allocation4 [shape = 'u8[8192]{0}', space=vmem, size = 0x2000, scoped, tag = 'output window, operand 0']
    loop: start=0, step=1, limit=5
    $region2: #{_lambda_.25} parent=1 // loop_pre_header
      _
    $region3: #{_lambda_.25} parent=1 // loop_header
      %s9 = sphi 0, %s13
      %p10 = scmp.ge.s32.totalorder %s9, 5
      %s16 = sphi 0, %s35
      %s17 = sphi 0, %s31
      %s18 = sphi 0, %s27
      %s19 = sphi 0, %s16
      %s20 = sphi 0, %s17
      %s21 = sphi 0, %s18
      %s22 = sphi 0, %s19
      %s23 = sphi 0, %s20
      %s24 = sphi 0, %s21
      %s40 = sphi 0, %s42
      %s43 = sphi 0, %s40
      %s44 = sphi 0, %s43
      %s60 = sphi 0, %s44
      %s68 = sphi 0, %s70
      %s71 = sphi 0, %s68
      %s72 = sphi 0, %s71
      %s88 = sphi 0, %s72
      %s94 = sphi 0, %s96
      %s97 = sphi 0, %s94
      %s98 = sphi 0, %s97
      %s114 = sphi 0, %s98
      %s122 = sphi 0, %s124
      %s125 = sphi 0, %s122
      %s126 = sphi 0, %s125
      %s142 = sphi 0, %s126
    $region4: #{_lambda_.25} parent=1 // loop_header_branch
      %12 = sbr.rel (%p10) target = $region8
    $region5: #{_lambda_.25} parent=1 // loop_body
      %s14 = ssub.s32 %s9, 1
      %s15 = ssub.s32 %s9, 2
      %s25 = sadd.s32 1, %s18
      %p26 = scmp.ge.s32.totalorder %s25, 1
      %s27 = scalar_select %p26, 0, %s25
      %s28 = sadd.s32 1, %s17
      %s29 = scalar_select %p26, %s28, %s17
      %p30 = scmp.ge.s32.totalorder %s29, 3
      %s31 = scalar_select %p30, 0, %s29
      %s32 = sadd.s32 1, %s16
      %s33 = scalar_select %p30, %s32, %s16
      %p34 = scmp.ge.s32.totalorder %s33, 1
      %s35 = scalar_select %p34, 0, %s33
      %s36 = ssub.s32 %s16, %s35
      %s37 = ssub.s32 %s18, %s27
      %s38 = sor.u32 %s36, %s37
      %p39 = scmp.eq.s32.totalorder %s38, 0
      %s41 = sadd.s32 %s40, 1
      %s42 = scalar_select %p39, %s40, %s41
      %p45 = pneg %p39
      %p46 = scmp.eq.s32.totalorder %s9, 2
      %p47 = por %p45, %p46
      %p48 = scmp.ne.s32.totalorder %s40, %s43
      %p49 = scmp.eq.s32.totalorder %s9, 0
      %p50 = por %p48, %p49
      %p51 = scmp.ne.s32.totalorder %s40, %s43
      %p52 = scmp.eq.s32.totalorder %s14, 2
      %p53 = por %p51, %p52
      %p54 = scmp.ne.s32.totalorder %s43, %s44
      %p55 = scmp.eq.s32.totalorder %s14, 0
      %p56 = por %p54, %p55
      %p57 = scmp.ne.s32.totalorder %s43, %s44
      %p58 = scmp.eq.s32.totalorder %s15, 2
      %p59 = por %p57, %p58
      %p61 = scmp.ne.s32.totalorder %s44, %s60
      %p62 = scmp.eq.s32.totalorder %s15, 0
      %p63 = por %p61, %p62
      %s64 = ssub.s32 %s18, %s27
      %s65 = ssub.s32 %s17, %s31
      %s66 = sor.u32 %s64, %s65
      %p67 = scmp.eq.s32.totalorder %s66, 0
      %s69 = sadd.s32 %s68, 1
      %s70 = scalar_select %p67, %s68, %s69
      %p73 = pneg %p67
      %p74 = scmp.eq.s32.totalorder %s9, 2
      %p75 = por %p73, %p74
      %p76 = scmp.ne.s32.totalorder %s68, %s71
      %p77 = scmp.eq.s32.totalorder %s9, 0
      %p78 = por %p76, %p77
      %p79 = scmp.ne.s32.totalorder %s68, %s71
      %p80 = scmp.eq.s32.totalorder %s14, 2
      %p81 = por %p79, %p80
      %p82 = scmp.ne.s32.totalorder %s71, %s72
      %p83 = scmp.eq.s32.totalorder %s14, 0
      %p84 = por %p82, %p83
      %p85 = scmp.ne.s32.totalorder %s71, %s72
      %p86 = scmp.eq.s32.totalorder %s15, 2
      %p87 = por %p85, %p86
      %p89 = scmp.ne.s32.totalorder %s72, %s88
      %p90 = scmp.eq.s32.totalorder %s15, 0
      %p91 = por %p89, %p90
      %s92 = ssub.s32 %s17, %s31
      %p93 = scmp.eq.s32.totalorder %s92, 0
      %s95 = sadd.s32 %s94, 1
      %s96 = scalar_select %p93, %s94, %s95
      %p99 = pneg %p93
      %p100 = scmp.eq.s32.totalorder %s9, 2
      %p101 = por %p99, %p100
      %p102 = scmp.ne.s32.totalorder %s94, %s97
      %p103 = scmp.eq.s32.totalorder %s9, 0
      %p104 = por %p102, %p103
      %p105 = scmp.ne.s32.totalorder %s94, %s97
      %p106 = scmp.eq.s32.totalorder %s14, 2
      %p107 = por %p105, %p106
      %p108 = scmp.ne.s32.totalorder %s97, %s98
      %p109 = scmp.eq.s32.totalorder %s14, 0
      %p110 = por %p108, %p109
      %p111 = scmp.ne.s32.totalorder %s97, %s98
      %p112 = scmp.eq.s32.totalorder %s15, 2
      %p113 = por %p111, %p112
      %p115 = scmp.ne.s32.totalorder %s98, %s114
      %p116 = scmp.eq.s32.totalorder %s15, 0
      %p117 = por %p115, %p116
      %s118 = ssub.s32 %s16, %s35
      %s119 = ssub.s32 %s17, %s31
      %s120 = sor.u32 %s118, %s119
      %p121 = scmp.eq.s32.totalorder %s120, 0
      %s123 = sadd.s32 %s122, 1
      %s124 = scalar_select %p121, %s122, %s123
      %p127 = pneg %p121
      %p128 = scmp.eq.s32.totalorder %s9, 2
      %p129 = por %p127, %p128
      %p130 = scmp.ne.s32.totalorder %s122, %s125
      %p131 = scmp.eq.s32.totalorder %s9, 0
      %p132 = por %p130, %p131
      %p133 = scmp.ne.s32.totalorder %s122, %s125
      %p134 = scmp.eq.s32.totalorder %s14, 2
      %p135 = por %p133, %p134
      %p136 = scmp.ne.s32.totalorder %s125, %s126
      %p137 = scmp.eq.s32.totalorder %s14, 0
      %p138 = por %p136, %p137
      %p139 = scmp.ne.s32.totalorder %s125, %s126
      %p140 = scmp.eq.s32.totalorder %s15, 2
      %p141 = por %p139, %p140
      %p143 = scmp.ne.s32.totalorder %s126, %s142
      %p144 = scmp.eq.s32.totalorder %s15, 0
      %p145 = por %p143, %p144
      %p146 = scmp.le.s32.totalorder 1, %s9
      %p147 = scmp.lt.s32.totalorder %s9, 4
      %p148 = pnand %p146, %p147
      %p149 = pneg %p148
      // Predicated region
      $region9: #{_lambda_.25} parent=5 // pred_check
        _
      $region10: #{_lambda_.25} parent=5 // pred_check_branch
        %151 = sbr.rel (%p148) target = $region12
      $region11: #{_lambda_.25} parent=5 // pred_region
        %s152 = ssub.s32 %s9, 1
        // Predicated region
        $region13: #{_lambda_.25} parent=11 // pred_check
          %p153 = pneg %p56
        $region14: #{_lambda_.25} parent=11 // pred_check_branch
          %155 = sbr.rel (%p153) target = $region16
        $region15: #{_lambda_.25} parent=11 // pred_region
          %s156 = smul.u32 2, %s19
          %p157 = scmp.lt.s32.totalorder %s156, 1
          %s158 = scalar_select %p157, %s156, 1
          %p159 = scmp.lt.s32.totalorder %s21, 0
          %s160 = scalar_select %p159, %s21, 0
          %s161 = sadd.s32 %s160, %s158
          %s162 = smul.addr %s161, 4
          %s163 = scalar_lea.vmem %s0, %s162
          %s164 = smul.u32 2, %s19
        $region16: #{_lambda_.25} parent=11 // pred_fallthru
          _
      $region12: #{_lambda_.25} parent=5 // pred_fallthru
        _
      %p165 = scmp.lt.s32.totalorder %s9, 3
      // Predicated region
      $region17: #{_lambda_.25} parent=5 // pred_check
        %p166 = pneg %p165
      $region18: #{_lambda_.25} parent=5 // pred_check_branch
        %168 = sbr.rel (%p166) target = $region20
      $region19: #{_lambda_.25} parent=5 // pred_region
        // Predicated region
        $region21: #{_lambda_.25} parent=19 // pred_check
          %p169 = pneg %p78
        $region22: #{_lambda_.25} parent=19 // pred_check_branch
          %171 = sbr.rel (%p169) target = $region24
        $region23: #{_lambda_.25} parent=19 // pred_region
          %s172 = sand.u32 %s68, 1
          %s173 = sand.u32 %s68, 1
          %s174 = smul.addr %s173, 64
          %s175 = scalar_lea.vmem [#allocation3], %s174
          %s176 = smul.u32 16, %s18
          %s177 = smul.addr %s176, 3
          %s178 = sadd.s32 %s17, %s177
          %s179 = smul.addr %s178, 4
          %s180 = scalar_lea.vmem %s1, %s179
          // Predicated region
          $region25: #{_lambda_.25} parent=23 // pred_check
            _
          $region26: #{_lambda_.25} parent=23 // pred_check_branch
            %182 = sbr.rel (0) target = $region28
          $region27: #{_lambda_.25} parent=23 // pred_region
            // Predicated region
            $region29: #{_lambda_.25} parent=27 // pred_check
              _
            $region30: #{_lambda_.25} parent=27 // pred_check_branch
              %184 = sbr.rel target = $region32
            $region31: #{_lambda_.25} parent=27 // pred_region
              // Predicated region
              $region44: #{_lambda_.25} parent=31 // pred_check
                _
              $region45: #{_lambda_.25} parent=31 // pred_check_branch
                %229 = sbr.rel (0) target = $region47
              $region46: #{_lambda_.25} parent=31 // pred_region
                loop: start=0, step=1, limit=1
                $region48: #{_lambda_.25} parent=46 // loop_pre_header
                  _
                $region49: #{_lambda_.25} parent=46 // loop_header
                  %s231 = sphi 0, %s235
                  %p232 = scmp.ge.s32.totalorder %s231, 1
                  %s236 = sphi %s180, %s180
                  %s237 = sphi %s175, %s175
                $region50: #{_lambda_.25} parent=46 // loop_header_branch
                  %234 = sbr.rel (%p232) target = $region54
                $region51: #{_lambda_.25} parent=46 // loop_body
                  _
                $region52: #{_lambda_.25} parent=46 // loop_footer
                  %s235 = sadd.s32 1, %s231
                $region53: #{_lambda_.25} parent=46 // loop_footer_branch
                  %230 = sbr.rel target = $region49
                $region54: #{_lambda_.25} parent=46 // loop_exit
                  _
                loop: start=0, step=1, limit=1
                $region55: #{_lambda_.25} parent=46 // loop_pre_header
                  _
                $region56: #{_lambda_.25} parent=46 // loop_header
                  %s240 = sphi 0, %s244
                  %p241 = scmp.ge.s32.totalorder %s240, 1
                  %s245 = sphi %s180, %s180
                  %s246 = sphi %s175, %s175
                $region57: #{_lambda_.25} parent=46 // loop_header_branch
                  %243 = sbr.rel (%p241) target = $region61
                $region58: #{_lambda_.25} parent=46 // loop_body
                  %v247 = vld [vmem:[%s245] sm:$0xf]
                  %248 = vst [vmem:[%s246] sm:$0xf] %v247
                  %v249 = vld [vmem:[%s245 + $0xc] sm:$0xf]
                  %250 = vst [vmem:[%s246 + $0x4] sm:$0xf] %v249
                  %v251 = vld [vmem:[%s245 + $0x18] sm:$0xf]
                  %252 = vst [vmem:[%s246 + $0x8] sm:$0xf] %v251
                  %v253 = vld [vmem:[%s245 + $0x24] sm:$0xf]
                  %254 = vst [vmem:[%s246 + $0xc] sm:$0xf] %v253
                  %v255 = vld [vmem:[%s245 + $0x30] sm:$0xf]
                  %256 = vst [vmem:[%s246 + $0x10] sm:$0xf] %v255
                  %v257 = vld [vmem:[%s245 + $0x3c] sm:$0xf]
                  %258 = vst [vmem:[%s246 + $0x14] sm:$0xf] %v257
                  %v259 = vld [vmem:[%s245 + $0x48] sm:$0xf]
                  %260 = vst [vmem:[%s246 + $0x18] sm:$0xf] %v259
                  %v261 = vld [vmem:[%s245 + $0x54] sm:$0xf]
                  %262 = vst [vmem:[%s246 + $0x1c] sm:$0xf] %v261
                  %v263 = vld [vmem:[%s245 + $0x60] sm:$0xf]
                  %264 = vst [vmem:[%s246 + $0x20] sm:$0xf] %v263
                  %v265 = vld [vmem:[%s245 + $0x6c] sm:$0xf]
                  %266 = vst [vmem:[%s246 + $0x24] sm:$0xf] %v265
                  %v267 = vld [vmem:[%s245 + $0x78] sm:$0xf]
                  %268 = vst [vmem:[%s246 + $0x28] sm:$0xf] %v267
                  %v269 = vld [vmem:[%s245 + $0x84] sm:$0xf]
                  %270 = vst [vmem:[%s246 + $0x2c] sm:$0xf] %v269
                  %v271 = vld [vmem:[%s245 + $0x90] sm:$0xf]
                  %272 = vst [vmem:[%s246 + $0x30] sm:$0xf] %v271
                  %v273 = vld [vmem:[%s245 + $0x9c] sm:$0xf]
                  %274 = vst [vmem:[%s246 + $0x34] sm:$0xf] %v273
                  %v275 = vld [vmem:[%s245 + $0xa8] sm:$0xf]
                  %276 = vst [vmem:[%s246 + $0x38] sm:$0xf] %v275
                  %v277 = vld [vmem:[%s245 + $0xb4] sm:$0xf]
                  %278 = vst [vmem:[%s246 + $0x3c] sm:$0xf] %v277
                $region59: #{_lambda_.25} parent=46 // loop_footer
                  %s244 = sadd.s32 1, %s240
                $region60: #{_lambda_.25} parent=46 // loop_footer_branch
                  %239 = sbr.rel target = $region56
                $region61: #{_lambda_.25} parent=46 // loop_exit
                  _
              $region47: #{_lambda_.25} parent=31 // pred_fallthru
                _
            $region32: #{_lambda_.25} parent=27 // pred_fallthru
              _
            // Predicated region
            $region33: #{_lambda_.25} parent=27 // pred_check
              _
            $region34: #{_lambda_.25} parent=27 // pred_check_branch
              %186 = sbr.rel (0) target = $region36
            $region35: #{_lambda_.25} parent=27 // pred_region
              loop: start=0, step=1, limit=1
              $region37: #{_lambda_.25} parent=35 // loop_pre_header
                _
              $region38: #{_lambda_.25} parent=35 // loop_header
                %s189 = sphi 0, %s193
                %p190 = scmp.ge.s32.totalorder %s189, 1
                %s194 = sphi %s180, %s180
                %s195 = sphi %s175, %s175
              $region39: #{_lambda_.25} parent=35 // loop_header_branch
                %192 = sbr.rel (%p190) target = $region43
              $region40: #{_lambda_.25} parent=35 // loop_body
                %v196 = vld [vmem:[%s194] sm:$0xf]
                %197 = vst [vmem:[%s195] sm:$0xf] %v196
                %v198 = vld [vmem:[%s194 + $0xc] sm:$0xf]
                %199 = vst [vmem:[%s195 + $0x4] sm:$0xf] %v198
                %v200 = vld [vmem:[%s194 + $0x18] sm:$0xf]
                %201 = vst [vmem:[%s195 + $0x8] sm:$0xf] %v200
                %v202 = vld [vmem:[%s194 + $0x24] sm:$0xf]
                %203 = vst [vmem:[%s195 + $0xc] sm:$0xf] %v202
                %v204 = vld [vmem:[%s194 + $0x30] sm:$0xf]
                %205 = vst [vmem:[%s195 + $0x10] sm:$0xf] %v204
                %v206 = vld [vmem:[%s194 + $0x3c] sm:$0xf]
                %207 = vst [vmem:[%s195 + $0x14] sm:$0xf] %v206
                %v208 = vld [vmem:[%s194 + $0x48] sm:$0xf]
                %209 = vst [vmem:[%s195 + $0x18] sm:$0xf] %v208
                %v210 = vld [vmem:[%s194 + $0x54] sm:$0xf]
                %211 = vst [vmem:[%s195 + $0x1c] sm:$0xf] %v210
                %v212 = vld [vmem:[%s194 + $0x60] sm:$0xf]
                %213 = vst [vmem:[%s195 + $0x20] sm:$0xf] %v212
                %v214 = vld [vmem:[%s194 + $0x6c] sm:$0xf]
                %215 = vst [vmem:[%s195 + $0x24] sm:$0xf] %v214
                %v216 = vld [vmem:[%s194 + $0x78] sm:$0xf]
                %217 = vst [vmem:[%s195 + $0x28] sm:$0xf] %v216
                %v218 = vld [vmem:[%s194 + $0x84] sm:$0xf]
                %219 = vst [vmem:[%s195 + $0x2c] sm:$0xf] %v218
                %v220 = vld [vmem:[%s194 + $0x90] sm:$0xf]
                %221 = vst [vmem:[%s195 + $0x30] sm:$0xf] %v220
                %v222 = vld [vmem:[%s194 + $0x9c] sm:$0xf]
                %223 = vst [vmem:[%s195 + $0x34] sm:$0xf] %v222
                %v224 = vld [vmem:[%s194 + $0xa8] sm:$0xf]
                %225 = vst [vmem:[%s195 + $0x38] sm:$0xf] %v224
                %v226 = vld [vmem:[%s194 + $0xb4] sm:$0xf]
                %227 = vst [vmem:[%s195 + $0x3c] sm:$0xf] %v226
              $region41: #{_lambda_.25} parent=35 // loop_footer
                %s193 = sadd.s32 1, %s189
              $region42: #{_lambda_.25} parent=35 // loop_footer_branch
                %188 = sbr.rel target = $region38
              $region43: #{_lambda_.25} parent=35 // loop_exit
                _
            $region36: #{_lambda_.25} parent=27 // pred_fallthru
              _
          $region28: #{_lambda_.25} parent=23 // pred_fallthru
            _
          %279 = vnop
        $region24: #{_lambda_.25} parent=19 // pred_fallthru
          _
        // Predicated region
        $region62: #{_lambda_.25} parent=19 // pred_check
          %p280 = pneg %p104
        $region63: #{_lambda_.25} parent=19 // pred_check_branch
          %282 = sbr.rel (%p280) target = $region65
        $region64: #{_lambda_.25} parent=19 // pred_region
          %p283 = scmp.lt.s32.totalorder %s17, 2
          %s284 = scalar_select %p283, %s17, 2
          %s285 = scalar_lea.vmem %s2, %s284
        $region65: #{_lambda_.25} parent=19 // pred_fallthru
          _
      $region20: #{_lambda_.25} parent=5 // pred_fallthru
        _
      %p286 = scmp.le.s32.totalorder 1, %s9
      %p287 = scmp.lt.s32.totalorder %s9, 4
      %p288 = pnand %p286, %p287
      %p289 = pneg %p288
      // Predicated region
      $region66: #{_lambda_.25} parent=5 // pred_check
        _
      $region67: #{_lambda_.25} parent=5 // pred_check_branch
        %291 = sbr.rel (%p288) target = $region69
      $region68: #{_lambda_.25} parent=5 // pred_region
        %s292 = ssub.s32 %s9, 1
        %s293 = sand.u32 %s71, 1
        %s294 = sand.u32 %s71, 1
        %s295 = smul.addr %s294, 64
        %s296 = scalar_lea.vmem [#allocation3], %s295
        // Predicated region
        $region70: #{_lambda_.25} parent=68 // pred_check
          %p297 = pneg %p84
        $region71: #{_lambda_.25} parent=68 // pred_check_branch
          %299 = sbr.rel (%p297) target = $region73
        $region72: #{_lambda_.25} parent=68 // pred_region
          _
        $region73: #{_lambda_.25} parent=68 // pred_fallthru
          _
        %s300 = smul.u32 2, %s19
        %p301 = scmp.lt.s32.totalorder %s300, 1
        %s302 = scalar_select %p301, %s300, 1
        %p303 = scmp.lt.s32.totalorder %s21, 0
        %s304 = scalar_select %p303, %s21, 0
        %s305 = sadd.s32 %s304, %s302
        %s306 = smul.addr %s305, 4
        %s307 = scalar_lea.vmem %s0, %s306
        %p308 = pneg %p56
        %p309 = pneg %p53
        %s310 = sand.u32 %s71, 1
        %s311 = sand.u32 %s71, 1
        %s312 = smul.addr %s311, 64
        %s313 = scalar_lea.vmem [#allocation3], %s312
        %p314 = pneg %p84
        %p315 = pneg %p81
        %p316 = scmp.lt.s32.totalorder %s20, 2
        %s317 = scalar_select %p316, %s20, 2
        %s318 = scalar_lea.vmem %s2, %s317
        %p319 = pneg %p110
        %p320 = pneg %p107
        %p321 = pneg %p138
        %p322 = pneg %p135
        %s323 = sand.u32 %s125, 1
        %s324 = sand.u32 %s125, 1
        %s325 = smul.addr %s324, 8
        %s326 = scalar_lea.vmem [#allocation4], %s325
        %s327 = smul.u32 2, %s19
        %p328 = scmp.lt.s32.totalorder %s327, 1
        %s329 = scalar_select %p328, %s327, 1
        %p330 = scmp.lt.s32.totalorder %s21, 0
        %s331 = scalar_select %p330, %s21, 0
        %s332 = sadd.s32 %s331, %s329
        %s333 = smul.addr %s332, 4
        %s334 = scalar_lea.vmem %s0, %s333
        %s335 = smul.u32 2, %s19
        %s336 = smul.u32 16, %s21
        %p337 = scmp.lt.s32.totalorder %s20, 2
        %s338 = scalar_select %p337, %s20, 2
        %s339 = scalar_lea.vmem %s2, %s338
        %s340 = smul.u32 2, %s19
        %p342 = scmp.eq.s32.totalorder %s21, 0
        // Predicated region
        $region74: #{_lambda_.25} parent=68 // pred_check
          %p343 = pneg %p342
        $region75: #{_lambda_.25} parent=68 // pred_check_branch
          %345 = sbr.rel (%p343) target = $region77
        $region76: #{_lambda_.25} parent=68 // pred_region
          %346 = vst [vmem:[#allocation2] sm:$0xff] 0.0
          %347 = vst [vmem:[#allocation2 + $0x8] sm:$0xff] 0.0
        $region77: #{_lambda_.25} parent=68 // pred_fallthru
          _
        %v348 = vld [vmem:[#allocation2] sm:$0xff]
        %v349 = vld [vmem:[#allocation2 + $0x8] sm:$0xff]
        %v350 = vld [vmem:[%s334] sm:$0xf]
        %v351 = vld [vmem:[%s334 + $0x4] sm:$0xf]
        %v352 = vld [vmem:[%s296] sm:$0xf]
        %v353 = vld [vmem:[%s296 + $0x4] sm:$0xf]
        %v354 = vld [vmem:[%s296 + $0x8] sm:$0xf]
        %v355 = vld [vmem:[%s296 + $0xc] sm:$0xf]
        %v356 = vld [vmem:[%s296 + $0x10] sm:$0xf]
        %v357 = vld [vmem:[%s296 + $0x14] sm:$0xf]
        %v358 = vld [vmem:[%s296 + $0x18] sm:$0xf]
        %v359 = vld [vmem:[%s296 + $0x1c] sm:$0xf]
        %v360 = vld [vmem:[%s296 + $0x20] sm:$0xf]
        %v361 = vld [vmem:[%s296 + $0x24] sm:$0xf]
        %v362 = vld [vmem:[%s296 + $0x28] sm:$0xf]
        %v363 = vld [vmem:[%s296 + $0x2c] sm:$0xf]
        %v364 = vld [vmem:[%s296 + $0x30] sm:$0xf]
        %v365 = vld [vmem:[%s296 + $0x34] sm:$0xf]
        %v366 = vld [vmem:[%s296 + $0x38] sm:$0xf]
        %v367 = vld [vmem:[%s296 + $0x3c] sm:$0xf]
        %v370 = vunpack.c.l.b16 %v350
        %v371 = vunpack.c.l.b16 %v351
        %v372 = vpack.c.b16 %v371, %v370
        %v390 = vunpack.c.l.b16 %v352
        %v391 = vunpack.c.l.b16 %v353
        %v392 = vunpack.c.l.b16 %v354
        %v393 = vunpack.c.l.b16 %v355
        %v394 = vunpack.c.l.b16 %v356
        %v395 = vunpack.c.l.b16 %v357
        %v396 = vunpack.c.l.b16 %v358
        %v397 = vunpack.c.l.b16 %v359
        %v398 = vunpack.c.l.b16 %v360
        %v399 = vunpack.c.l.b16 %v361
        %v400 = vunpack.c.l.b16 %v362
        %v401 = vunpack.c.l.b16 %v363
        %v402 = vunpack.c.l.b16 %v364
        %v403 = vunpack.c.l.b16 %v365
        %v404 = vunpack.c.l.b16 %v366
        %v405 = vunpack.c.l.b16 %v367
        %v406 = vpack.c.b16 %v391, %v390
        %v407 = vpack.c.b16 %v393, %v392
        %v408 = vpack.c.b16 %v395, %v394
        %v409 = vpack.c.b16 %v397, %v396
        %v410 = vpack.c.b16 %v399, %v398
        %v411 = vpack.c.b16 %v401, %v400
        %v412 = vpack.c.b16 %v403, %v402
        %v413 = vpack.c.b16 %v405, %v404
        %422 = vmatprep.subr.bf16.mxu0 0
        %423 = vmatpush1.bf16.msra.mxu0 %v406
        %424 = vmatprep.subr.bf16.mxu0 0
        %425 = vmatpush1.bf16.msra.mxu0 %v407
        %426 = vmatprep.subr.bf16.mxu0 0
        %427 = vmatpush1.bf16.msra.mxu0 %v408
        %428 = vmatprep.subr.bf16.mxu0 0
        %429 = vmatpush1.bf16.msra.mxu0 %v409
        %430 = vmatprep.subr.bf16.mxu0 0
        %431 = vmatpush1.bf16.msra.mxu0 %v410
        %432 = vmatprep.subr.bf16.mxu0 0
        %433 = vmatpush1.bf16.msra.mxu0 %v411
        %434 = vmatprep.subr.bf16.mxu0 0
        %435 = vmatpush1.bf16.msra.mxu0 %v412
        %436 = vmatprep.subr.bf16.mxu0 0
        %437 = vmatpush1.bf16.msra.mxu0 %v413
        %438 = vmatprep.subr.bf16.mxu0 0
        %439 = vmatpush1.bf16.msra.mxu0 0
        %440 = vmatprep.subr.bf16.mxu0 0
        %441 = vmatpush1.bf16.msra.mxu0 0
        %442 = vmatprep.subr.bf16.mxu0 0
        %443 = vmatpush1.bf16.msra.mxu0 0
        %444 = vmatprep.subr.bf16.mxu0 0
        %445 = vmatpush1.bf16.msra.mxu0 0
        %446 = vmatprep.subr.bf16.mxu0 0
        %447 = vmatpush1.bf16.msra.mxu0 0
        %448 = vmatprep.subr.bf16.mxu0 0
        %449 = vmatpush1.bf16.msra.mxu0 0
        %450 = vmatprep.subr.bf16.mxu0 0
        %451 = vmatpush1.bf16.msra.mxu0 0
        %452 = vmatprep.subr.bf16.mxu0 0
        %453 = vmatpush1.bf16.msra.mxu0 0
        %454 = vmatprep.mubr.bf16.mxu0 0
        %455 = vmatmul.mubr.bf16.gmra.mrb[0].mxu0 %v372
        %v456 = vpop.f32.mrb[0].mxu0
        %v457 = vadd.f32 0.0, %v456
        %v458 = vpop.f32.mrb[0].mxu0
        %v459 = vpop.f32.mrb[0].mxu0
        %v460 = vadd.f32 0.0, %v459
        %v461 = vpop.f32.mrb[0].mxu0
        %462 = vdwg.mxu0
        %v463 = vadd.f32 %v348, %v457
        %v464 = vadd.f32 %v349, %v460
        %465 = vst [vmem:[#allocation2] sm:$0xff] %v463
        %466 = vst [vmem:[#allocation2 + $0x8] sm:$0xff] %v464
        // Predicated region
        $region78: #{_lambda_.25} parent=68 // pred_check
          %p467 = pneg %p342
        $region79: #{_lambda_.25} parent=68 // pred_check_branch
          %469 = sbr.rel (%p467) target = $region81
        $region80: #{_lambda_.25} parent=68 // pred_region
          %v470 = vld [vmem:[#allocation2] sm:$0xff]
          %v471 = vld [vmem:[#allocation2 + $0x8] sm:$0xff]
          %v472 = vld [vmem:[%s339] sm:$0x1]
          %v474 = vlaneseq
          %v475 = vshrl.u32 %v474, 7
          %v476 = vsub.s32 0, %v475
          %v477 = vrot.slane %v472, %v476
          %v479 = vadd.f32 %v470, %v477
          %v480 = vadd.f32 %v471, %v477
          %v481 = vpack.c.bf16 %v480, %v479
          %v483 = vunpack.c.l.b16 %v481
          %v484 = vunpack.c.h.b16 %v481
          %v485 = vpack.c.b16 %v483, %v483
          %v486 = vpack.c.b16 %v484, %v484
          %489 = vst [vmem:[%s326] sm:$0xf] %v485
          %490 = vst [vmem:[%s326 + $0x4] sm:$0xf] %v486
        $region81: #{_lambda_.25} parent=68 // pred_fallthru
          _
        %s491 = sand.u32 %s125, 1
        %s492 = sand.u32 %s125, 1
        %s493 = smul.addr %s492, 8
        %s494 = scalar_lea.vmem [#allocation4], %s493
        // Predicated region
        $region82: #{_lambda_.25} parent=68 // pred_check
          %p495 = pneg %p135
        $region83: #{_lambda_.25} parent=68 // pred_check_branch
          %497 = sbr.rel (%p495) target = $region85
        $region84: #{_lambda_.25} parent=68 // pred_region
          %s498 = smul.u32 2, %s19
          %s499 = smul.addr %s498, 3
          %s500 = sadd.s32 %s20, %s499
          %s501 = smul.addr %s500, 4
          %s502 = scalar_lea.vmem %s3, %s501
          // Predicated region
          $region86: #{_lambda_.25} parent=84 // pred_check
            _
          $region87: #{_lambda_.25} parent=84 // pred_check_branch
            %504 = sbr.rel (0) target = $region89
          $region88: #{_lambda_.25} parent=84 // pred_region
            // Predicated region
            $region90: #{_lambda_.25} parent=88 // pred_check
              _
            $region91: #{_lambda_.25} parent=88 // pred_check_branch
              %506 = sbr.rel target = $region93
            $region92: #{_lambda_.25} parent=88 // pred_region
              // Predicated region
              $region105: #{_lambda_.25} parent=92 // pred_check
                _
              $region106: #{_lambda_.25} parent=92 // pred_check_branch
                %523 = sbr.rel (0) target = $region108
              $region107: #{_lambda_.25} parent=92 // pred_region
                loop: start=0, step=1, limit=1
                $region109: #{_lambda_.25} parent=107 // loop_pre_header
                  _
                $region110: #{_lambda_.25} parent=107 // loop_header
                  %s525 = sphi 0, %s529
                  %p526 = scmp.ge.s32.totalorder %s525, 1
                  %s530 = sphi %s494, %s494
                  %s531 = sphi %s502, %s502
                $region111: #{_lambda_.25} parent=107 // loop_header_branch
                  %528 = sbr.rel (%p526) target = $region115
                $region112: #{_lambda_.25} parent=107 // loop_body
                  _
                $region113: #{_lambda_.25} parent=107 // loop_footer
                  %s529 = sadd.s32 1, %s525
                $region114: #{_lambda_.25} parent=107 // loop_footer_branch
                  %524 = sbr.rel target = $region110
                $region115: #{_lambda_.25} parent=107 // loop_exit
                  _
                loop: start=0, step=1, limit=1
                $region116: #{_lambda_.25} parent=107 // loop_pre_header
                  _
                $region117: #{_lambda_.25} parent=107 // loop_header
                  %s534 = sphi 0, %s538
                  %p535 = scmp.ge.s32.totalorder %s534, 1
                  %s539 = sphi %s494, %s494
                  %s540 = sphi %s502, %s502
                $region118: #{_lambda_.25} parent=107 // loop_header_branch
                  %537 = sbr.rel (%p535) target = $region122
                $region119: #{_lambda_.25} parent=107 // loop_body
                  %v541 = vld [vmem:[%s539] sm:$0xf]
                  %542 = vst [vmem:[%s540] sm:$0xf] %v541
                  %v543 = vld [vmem:[%s539 + $0x4] sm:$0xf]
                  %544 = vst [vmem:[%s540 + $0xc] sm:$0xf] %v543
                $region120: #{_lambda_.25} parent=107 // loop_footer
                  %s538 = sadd.s32 1, %s534
                $region121: #{_lambda_.25} parent=107 // loop_footer_branch
                  %533 = sbr.rel target = $region117
                $region122: #{_lambda_.25} parent=107 // loop_exit
                  _
              $region108: #{_lambda_.25} parent=92 // pred_fallthru
                _
            $region93: #{_lambda_.25} parent=88 // pred_fallthru
              _
            // Predicated region
            $region94: #{_lambda_.25} parent=88 // pred_check
              _
            $region95: #{_lambda_.25} parent=88 // pred_check_branch
              %508 = sbr.rel (0) target = $region97
            $region96: #{_lambda_.25} parent=88 // pred_region
              loop: start=0, step=1, limit=1
              $region98: #{_lambda_.25} parent=96 // loop_pre_header
                _
              $region99: #{_lambda_.25} parent=96 // loop_header
                %s511 = sphi 0, %s515
                %p512 = scmp.ge.s32.totalorder %s511, 1
                %s516 = sphi %s494, %s494
                %s517 = sphi %s502, %s502
              $region100: #{_lambda_.25} parent=96 // loop_header_branch
                %514 = sbr.rel (%p512) target = $region104
              $region101: #{_lambda_.25} parent=96 // loop_body
                %v518 = vld [vmem:[%s516] sm:$0xf]
                %519 = vst [vmem:[%s517] sm:$0xf] %v518
                %v520 = vld [vmem:[%s516 + $0x4] sm:$0xf]
                %521 = vst [vmem:[%s517 + $0xc] sm:$0xf] %v520
              $region102: #{_lambda_.25} parent=96 // loop_footer
                %s515 = sadd.s32 1, %s511
              $region103: #{_lambda_.25} parent=96 // loop_footer_branch
                %510 = sbr.rel target = $region99
              $region104: #{_lambda_.25} parent=96 // loop_exit
                _
            $region97: #{_lambda_.25} parent=88 // pred_fallthru
              _
          $region89: #{_lambda_.25} parent=84 // pred_fallthru
            _
          %545 = vnop
        $region85: #{_lambda_.25} parent=68 // pred_fallthru
          _
      $region69: #{_lambda_.25} parent=5 // pred_fallthru
        _
      %p546 = scmp.le.s32.totalorder 2, %s9
      // Predicated region
      $region123: #{_lambda_.25} parent=5 // pred_check
        %p547 = pneg %p546
      $region124: #{_lambda_.25} parent=5 // pred_check_branch
        %549 = sbr.rel (%p547) target = $region126
      $region125: #{_lambda_.25} parent=5 // pred_region
        %s550 = ssub.s32 %s9, 2
        // Predicated region
        $region127: #{_lambda_.25} parent=125 // pred_check
          %p551 = pneg %p141
        $region128: #{_lambda_.25} parent=125 // pred_check_branch
          %553 = sbr.rel (%p551) target = $region130
        $region129: #{_lambda_.25} parent=125 // pred_region
          %s554 = sand.u32 %s126, 1
          %s555 = sand.u32 %s126, 1
          %s556 = smul.addr %s555, 8
          %s557 = scalar_lea.vmem [#allocation4], %s556
        $region130: #{_lambda_.25} parent=125 // pred_fallthru
          _
      $region126: #{_lambda_.25} parent=5 // pred_fallthru
        _
    $region6: #{_lambda_.25} parent=1 // loop_footer
      %s13 = sadd.s32 1, %s9
    $region7: #{_lambda_.25} parent=1 // loop_footer_branch
      %8 = sbr.rel target = $region3
    $region8: #{_lambda_.25} parent=1 // loop_exit
      _

// kernel: _lambda_.28
$region0: #{_lambda_.28}
  #allocation0 [shape = 'u32[]', space=smem, size = 0x4, offset = 0x4, fixed_abs, tag = 'smem constant byte address 0x4 - core index']
  #allocation1 [shape = 'u32[144,128]{1,0:T(1,128)}', space=vmem, size = 0x12000, scoped, tag = 'internal scratch']
  #allocation2 [shape = 'f32[16,256]{1,0:T(8,128)}', space=vmem, size = 0x4000, scoped, tag = 'scratch operand']
  %s0 = inlined_call_operand.vmem [shape: bf16[16,128], index: 0, kind: input, shape index: {}]
  %s1 = inlined_call_operand.vmem [shape: bf16[128,512], index: 1, kind: input, shape index: {}]
  %s2 = inlined_call_operand.vmem [shape: f32[1,512], index: 2, kind: input, shape index: {}]
  %s3 = inlined_call_operand.vmem [shape: bf16[16,512], index: 3, kind: output, shape index: {}]
  %s4 = sld [smem:[#allocation0]]
  $region125: #{_lambda_.28} parent=0
    _
  %s6 = ssub.s32 1, %s4
  %s7 = scalar_select 0, %s6, %s4
  $region1: #{_lambda_.28} parent=0
    #allocation3 [shape = 'u8[131072]{0}', space=vmem, size = 0x20000, scoped, tag = 'input window, operand 1']
    #allocation4 [shape = 'u8[16384]{0}', space=vmem, size = 0x4000, scoped, tag = 'output window, operand 0']
    loop: start=0, step=1, limit=4
    $region2: #{_lambda_.28} parent=1 // loop_pre_header
      _
    $region3: #{_lambda_.28} parent=1 // loop_header
      %s9 = sphi 0, %s13
      %p10 = scmp.ge.s32.totalorder %s9, 4
      %s16 = sphi 0, %s35
      %s17 = sphi 0, %s31
      %s18 = sphi 0, %s27
      %s19 = sphi 0, %s16
      %s20 = sphi 0, %s17
      %s21 = sphi 0, %s18
      %s22 = sphi 0, %s19
      %s23 = sphi 0, %s20
      %s24 = sphi 0, %s21
      %s40 = sphi 0, %s42
      %s43 = sphi 0, %s40
      %s44 = sphi 0, %s43
      %s60 = sphi 0, %s44
      %s68 = sphi 0, %s70
      %s71 = sphi 0, %s68
      %s72 = sphi 0, %s71
      %s88 = sphi 0, %s72
      %s94 = sphi 0, %s96
      %s97 = sphi 0, %s94
      %s98 = sphi 0, %s97
      %s114 = sphi 0, %s98
      %s122 = sphi 0, %s124
      %s125 = sphi 0, %s122
      %s126 = sphi 0, %s125
      %s142 = sphi 0, %s126
    $region4: #{_lambda_.28} parent=1 // loop_header_branch
      %12 = sbr.rel (%p10) target = $region8
    $region5: #{_lambda_.28} parent=1 // loop_body
      %s14 = ssub.s32 %s9, 1
      %s15 = ssub.s32 %s9, 2
      %s25 = sadd.s32 1, %s18
      %p26 = scmp.ge.s32.totalorder %s25, 1
      %s27 = scalar_select %p26, 0, %s25
      %s28 = sadd.s32 1, %s17
      %s29 = scalar_select %p26, %s28, %s17
      %p30 = scmp.ge.s32.totalorder %s29, 2
      %s31 = scalar_select %p30, 0, %s29
      %s32 = sadd.s32 1, %s16
      %s33 = scalar_select %p30, %s32, %s16
      %p34 = scmp.ge.s32.totalorder %s33, 1
      %s35 = scalar_select %p34, 0, %s33
      %s36 = ssub.s32 %s16, %s35
      %s37 = ssub.s32 %s18, %s27
      %s38 = sor.u32 %s36, %s37
      %p39 = scmp.eq.s32.totalorder %s38, 0
      %s41 = sadd.s32 %s40, 1
      %s42 = scalar_select %p39, %s40, %s41
      %p45 = pneg %p39
      %p46 = scmp.eq.s32.totalorder %s9, 1
      %p47 = por %p45, %p46
      %p48 = scmp.ne.s32.totalorder %s40, %s43
      %p49 = scmp.eq.s32.totalorder %s9, 0
      %p50 = por %p48, %p49
      %p51 = scmp.ne.s32.totalorder %s40, %s43
      %p52 = scmp.eq.s32.totalorder %s14, 1
      %p53 = por %p51, %p52
      %p54 = scmp.ne.s32.totalorder %s43, %s44
      %p55 = scmp.eq.s32.totalorder %s14, 0
      %p56 = por %p54, %p55
      %p57 = scmp.ne.s32.totalorder %s43, %s44
      %p58 = scmp.eq.s32.totalorder %s15, 1
      %p59 = por %p57, %p58
      %p61 = scmp.ne.s32.totalorder %s44, %s60
      %p62 = scmp.eq.s32.totalorder %s15, 0
      %p63 = por %p61, %p62
      %s64 = ssub.s32 %s18, %s27
      %s65 = ssub.s32 %s17, %s31
      %s66 = sor.u32 %s64, %s65
      %p67 = scmp.eq.s32.totalorder %s66, 0
      %s69 = sadd.s32 %s68, 1
      %s70 = scalar_select %p67, %s68, %s69
      %p73 = pneg %p67
      %p74 = scmp.eq.s32.totalorder %s9, 1
      %p75 = por %p73, %p74
      %p76 = scmp.ne.s32.totalorder %s68, %s71
      %p77 = scmp.eq.s32.totalorder %s9, 0
      %p78 = por %p76, %p77
      %p79 = scmp.ne.s32.totalorder %s68, %s71
      %p80 = scmp.eq.s32.totalorder %s14, 1
      %p81 = por %p79, %p80
      %p82 = scmp.ne.s32.totalorder %s71, %s72
      %p83 = scmp.eq.s32.totalorder %s14, 0
      %p84 = por %p82, %p83
      %p85 = scmp.ne.s32.totalorder %s71, %s72
      %p86 = scmp.eq.s32.totalorder %s15, 1
      %p87 = por %p85, %p86
      %p89 = scmp.ne.s32.totalorder %s72, %s88
      %p90 = scmp.eq.s32.totalorder %s15, 0
      %p91 = por %p89, %p90
      %s92 = ssub.s32 %s17, %s31
      %p93 = scmp.eq.s32.totalorder %s92, 0
      %s95 = sadd.s32 %s94, 1
      %s96 = scalar_select %p93, %s94, %s95
      %p99 = pneg %p93
      %p100 = scmp.eq.s32.totalorder %s9, 1
      %p101 = por %p99, %p100
      %p102 = scmp.ne.s32.totalorder %s94, %s97
      %p103 = scmp.eq.s32.totalorder %s9, 0
      %p104 = por %p102, %p103
      %p105 = scmp.ne.s32.totalorder %s94, %s97
      %p106 = scmp.eq.s32.totalorder %s14, 1
      %p107 = por %p105, %p106
      %p108 = scmp.ne.s32.totalorder %s97, %s98
      %p109 = scmp.eq.s32.totalorder %s14, 0
      %p110 = por %p108, %p109
      %p111 = scmp.ne.s32.totalorder %s97, %s98
      %p112 = scmp.eq.s32.totalorder %s15, 1
      %p113 = por %p111, %p112
      %p115 = scmp.ne.s32.totalorder %s98, %s114
      %p116 = scmp.eq.s32.totalorder %s15, 0
      %p117 = por %p115, %p116
      %s118 = ssub.s32 %s16, %s35
      %s119 = ssub.s32 %s17, %s31
      %s120 = sor.u32 %s118, %s119
      %p121 = scmp.eq.s32.totalorder %s120, 0
      %s123 = sadd.s32 %s122, 1
      %s124 = scalar_select %p121, %s122, %s123
      %p127 = pneg %p121
      %p128 = scmp.eq.s32.totalorder %s9, 1
      %p129 = por %p127, %p128
      %p130 = scmp.ne.s32.totalorder %s122, %s125
      %p131 = scmp.eq.s32.totalorder %s9, 0
      %p132 = por %p130, %p131
      %p133 = scmp.ne.s32.totalorder %s122, %s125
      %p134 = scmp.eq.s32.totalorder %s14, 1
      %p135 = por %p133, %p134
      %p136 = scmp.ne.s32.totalorder %s125, %s126
      %p137 = scmp.eq.s32.totalorder %s14, 0
      %p138 = por %p136, %p137
      %p139 = scmp.ne.s32.totalorder %s125, %s126
      %p140 = scmp.eq.s32.totalorder %s15, 1
      %p141 = por %p139, %p140
      %p143 = scmp.ne.s32.totalorder %s126, %s142
      %p144 = scmp.eq.s32.totalorder %s15, 0
      %p145 = por %p143, %p144
      %p146 = scmp.le.s32.totalorder 1, %s9
      %p147 = scmp.lt.s32.totalorder %s9, 3
      %p148 = pnand %p146, %p147
      %p149 = pneg %p148
      // Predicated region
      $region9: #{_lambda_.28} parent=5 // pred_check
        _
      $region10: #{_lambda_.28} parent=5 // pred_check_branch
        %151 = sbr.rel (%p148) target = $region12
      $region11: #{_lambda_.28} parent=5 // pred_region
        %s152 = ssub.s32 %s9, 1
        // Predicated region
        $region13: #{_lambda_.28} parent=11 // pred_check
          %p153 = pneg %p56
        $region14: #{_lambda_.28} parent=11 // pred_check_branch
          %155 = sbr.rel (%p153) target = $region16
        $region15: #{_lambda_.28} parent=11 // pred_region
          %s156 = smul.u32 2, %s19
          %p157 = scmp.lt.s32.totalorder %s156, 1
          %s158 = scalar_select %p157, %s156, 1
          %p159 = scmp.lt.s32.totalorder %s21, 0
          %s160 = scalar_select %p159, %s21, 0
          %s161 = sadd.s32 %s160, %s158
          %s162 = smul.addr %s161, 4
          %s163 = scalar_lea.vmem %s0, %s162
          %s164 = smul.u32 2, %s19
        $region16: #{_lambda_.28} parent=11 // pred_fallthru
          _
      $region12: #{_lambda_.28} parent=5 // pred_fallthru
        _
      %p165 = scmp.lt.s32.totalorder %s9, 2
      // Predicated region
      $region17: #{_lambda_.28} parent=5 // pred_check
        %p166 = pneg %p165
      $region18: #{_lambda_.28} parent=5 // pred_check_branch
        %168 = sbr.rel (%p166) target = $region20
      $region19: #{_lambda_.28} parent=5 // pred_region
        // Predicated region
        $region21: #{_lambda_.28} parent=19 // pred_check
          %p169 = pneg %p78
        $region22: #{_lambda_.28} parent=19 // pred_check_branch
          %171 = sbr.rel (%p169) target = $region24
        $region23: #{_lambda_.28} parent=19 // pred_region
          %s172 = sand.u32 %s68, 1
          %s173 = sand.u32 %s68, 1
          %s174 = smul.addr %s173, 128
          %s175 = scalar_lea.vmem [#allocation3], %s174
          %s176 = smul.u32 16, %s18
          %s177 = smul.u32 2, %s17
          %s178 = smul.addr %s176, 4
          %s179 = sadd.s32 %s177, %s178
          %s180 = smul.addr %s179, 4
          %s181 = scalar_lea.vmem %s1, %s180
          // Predicated region
          $region25: #{_lambda_.28} parent=23 // pred_check
            _
          $region26: #{_lambda_.28} parent=23 // pred_check_branch
            %183 = sbr.rel (0) target = $region28
          $region27: #{_lambda_.28} parent=23 // pred_region
            // Predicated region
            $region29: #{_lambda_.28} parent=27 // pred_check
              _
            $region30: #{_lambda_.28} parent=27 // pred_check_branch
              %185 = sbr.rel (0) target = $region32
            $region31: #{_lambda_.28} parent=27 // pred_region
              // Predicated region
              $region44: #{_lambda_.28} parent=31 // pred_check
                _
              $region45: #{_lambda_.28} parent=31 // pred_check_branch
                %230 = sbr.rel (0) target = $region47
              $region46: #{_lambda_.28} parent=31 // pred_region
                loop: start=0, step=1, limit=1
                $region48: #{_lambda_.28} parent=46 // loop_pre_header
                  _
                $region49: #{_lambda_.28} parent=46 // loop_header
                  %s232 = sphi 0, %s236
                  %p233 = scmp.ge.s32.totalorder %s232, 1
                  %s237 = sphi %s181, %s181
                  %s238 = sphi %s175, %s175
                $region50: #{_lambda_.28} parent=46 // loop_header_branch
                  %235 = sbr.rel (%p233) target = $region54
                $region51: #{_lambda_.28} parent=46 // loop_body
                  %v239 = vld [vmem:[%s237] sm:$0xff]
                  %240 = vst [vmem:[%s238] sm:$0xff] %v239
                  %v241 = vld [vmem:[%s237 + $0x10] sm:$0xff]
                  %242 = vst [vmem:[%s238 + $0x8] sm:$0xff] %v241
                  %v243 = vld [vmem:[%s237 + $0x20] sm:$0xff]
                  %244 = vst [vmem:[%s238 + $0x10] sm:$0xff] %v243
                  %v245 = vld [vmem:[%s237 + $0x30] sm:$0xff]
                  %246 = vst [vmem:[%s238 + $0x18] sm:$0xff] %v245
                  %v247 = vld [vmem:[%s237 + $0x40] sm:$0xff]
                  %248 = vst [vmem:[%s238 + $0x20] sm:$0xff] %v247
                  %v249 = vld [vmem:[%s237 + $0x50] sm:$0xff]
                  %250 = vst [vmem:[%s238 + $0x28] sm:$0xff] %v249
                  %v251 = vld [vmem:[%s237 + $0x60] sm:$0xff]
                  %252 = vst [vmem:[%s238 + $0x30] sm:$0xff] %v251
                  %v253 = vld [vmem:[%s237 + $0x70] sm:$0xff]
                  %254 = vst [vmem:[%s238 + $0x38] sm:$0xff] %v253
                  %v255 = vld [vmem:[%s237 + $0x80] sm:$0xff]
                  %256 = vst [vmem:[%s238 + $0x40] sm:$0xff] %v255
                  %v257 = vld [vmem:[%s237 + $0x90] sm:$0xff]
                  %258 = vst [vmem:[%s238 + $0x48] sm:$0xff] %v257
                  %v259 = vld [vmem:[%s237 + $0xa0] sm:$0xff]
                  %260 = vst [vmem:[%s238 + $0x50] sm:$0xff] %v259
                  %v261 = vld [vmem:[%s237 + $0xb0] sm:$0xff]
                  %262 = vst [vmem:[%s238 + $0x58] sm:$0xff] %v261
                  %v263 = vld [vmem:[%s237 + $0xc0] sm:$0xff]
                  %264 = vst [vmem:[%s238 + $0x60] sm:$0xff] %v263
                  %v265 = vld [vmem:[%s237 + $0xd0] sm:$0xff]
                  %266 = vst [vmem:[%s238 + $0x68] sm:$0xff] %v265
                  %v267 = vld [vmem:[%s237 + $0xe0] sm:$0xff]
                  %268 = vst [vmem:[%s238 + $0x70] sm:$0xff] %v267
                  %v269 = vld [vmem:[%s237 + $0xf0] sm:$0xff]
                  %270 = vst [vmem:[%s238 + $0x78] sm:$0xff] %v269
                $region52: #{_lambda_.28} parent=46 // loop_footer
                  %s236 = sadd.s32 1, %s232
                $region53: #{_lambda_.28} parent=46 // loop_footer_branch
                  %231 = sbr.rel target = $region49
                $region54: #{_lambda_.28} parent=46 // loop_exit
                  _
              $region47: #{_lambda_.28} parent=31 // pred_fallthru
                _
              // Predicated region
              $region55: #{_lambda_.28} parent=31 // pred_check
                _
              $region56: #{_lambda_.28} parent=31 // pred_check_branch
                %272 = sbr.rel target = $region58
              $region57: #{_lambda_.28} parent=31 // pred_region
                _
              $region58: #{_lambda_.28} parent=31 // pred_fallthru
                _
            $region32: #{_lambda_.28} parent=27 // pred_fallthru
              _
            // Predicated region
            $region33: #{_lambda_.28} parent=27 // pred_check
              _
            $region34: #{_lambda_.28} parent=27 // pred_check_branch
              %187 = sbr.rel target = $region36
            $region35: #{_lambda_.28} parent=27 // pred_region
              loop: start=0, step=1, limit=1
              $region37: #{_lambda_.28} parent=35 // loop_pre_header
                _
              $region38: #{_lambda_.28} parent=35 // loop_header
                %s190 = sphi 0, %s194
                %p191 = scmp.ge.s32.totalorder %s190, 1
                %s195 = sphi %s181, %s181
                %s196 = sphi %s175, %s175
              $region39: #{_lambda_.28} parent=35 // loop_header_branch
                %193 = sbr.rel (%p191) target = $region43
              $region40: #{_lambda_.28} parent=35 // loop_body
                %v197 = vld [vmem:[%s195] sm:$0xff]
                %198 = vst [vmem:[%s196] sm:$0xff] %v197
                %v199 = vld [vmem:[%s195 + $0x10] sm:$0xff]
                %200 = vst [vmem:[%s196 + $0x8] sm:$0xff] %v199
                %v201 = vld [vmem:[%s195 + $0x20] sm:$0xff]
                %202 = vst [vmem:[%s196 + $0x10] sm:$0xff] %v201
                %v203 = vld [vmem:[%s195 + $0x30] sm:$0xff]
                %204 = vst [vmem:[%s196 + $0x18] sm:$0xff] %v203
                %v205 = vld [vmem:[%s195 + $0x40] sm:$0xff]
                %206 = vst [vmem:[%s196 + $0x20] sm:$0xff] %v205
                %v207 = vld [vmem:[%s195 + $0x50] sm:$0xff]
                %208 = vst [vmem:[%s196 + $0x28] sm:$0xff] %v207
                %v209 = vld [vmem:[%s195 + $0x60] sm:$0xff]
                %210 = vst [vmem:[%s196 + $0x30] sm:$0xff] %v209
                %v211 = vld [vmem:[%s195 + $0x70] sm:$0xff]
                %212 = vst [vmem:[%s196 + $0x38] sm:$0xff] %v211
                %v213 = vld [vmem:[%s195 + $0x80] sm:$0xff]
                %214 = vst [vmem:[%s196 + $0x40] sm:$0xff] %v213
                %v215 = vld [vmem:[%s195 + $0x90] sm:$0xff]
                %216 = vst [vmem:[%s196 + $0x48] sm:$0xff] %v215
                %v217 = vld [vmem:[%s195 + $0xa0] sm:$0xff]
                %218 = vst [vmem:[%s196 + $0x50] sm:$0xff] %v217
                %v219 = vld [vmem:[%s195 + $0xb0] sm:$0xff]
                %220 = vst [vmem:[%s196 + $0x58] sm:$0xff] %v219
                %v221 = vld [vmem:[%s195 + $0xc0] sm:$0xff]
                %222 = vst [vmem:[%s196 + $0x60] sm:$0xff] %v221
                %v223 = vld [vmem:[%s195 + $0xd0] sm:$0xff]
                %224 = vst [vmem:[%s196 + $0x68] sm:$0xff] %v223
                %v225 = vld [vmem:[%s195 + $0xe0] sm:$0xff]
                %226 = vst [vmem:[%s196 + $0x70] sm:$0xff] %v225
                %v227 = vld [vmem:[%s195 + $0xf0] sm:$0xff]
                %228 = vst [vmem:[%s196 + $0x78] sm:$0xff] %v227
              $region41: #{_lambda_.28} parent=35 // loop_footer
                %s194 = sadd.s32 1, %s190
              $region42: #{_lambda_.28} parent=35 // loop_footer_branch
                %189 = sbr.rel target = $region38
              $region43: #{_lambda_.28} parent=35 // loop_exit
                _
            $region36: #{_lambda_.28} parent=27 // pred_fallthru
              _
          $region28: #{_lambda_.28} parent=23 // pred_fallthru
            _
          %273 = vnop
        $region24: #{_lambda_.28} parent=19 // pred_fallthru
          _
        // Predicated region
        $region59: #{_lambda_.28} parent=19 // pred_check
          %p274 = pneg %p104
        $region60: #{_lambda_.28} parent=19 // pred_check_branch
          %276 = sbr.rel (%p274) target = $region62
        $region61: #{_lambda_.28} parent=19 // pred_region
          %s277 = smul.u32 2, %s17
          %p278 = scmp.lt.s32.totalorder %s277, 3
          %s279 = scalar_select %p278, %s277, 3
          %s280 = scalar_lea.vmem %s2, %s279
          %s281 = smul.u32 2, %s17
        $region62: #{_lambda_.28} parent=19 // pred_fallthru
          _
      $region20: #{_lambda_.28} parent=5 // pred_fallthru
        _
      %p282 = scmp.le.s32.totalorder 1, %s9
      %p283 = scmp.lt.s32.totalorder %s9, 3
      %p284 = pnand %p282, %p283
      %p285 = pneg %p284
      // Predicated region
      $region63: #{_lambda_.28} parent=5 // pred_check
        _
      $region64: #{_lambda_.28} parent=5 // pred_check_branch
        %287 = sbr.rel (%p284) target = $region66
      $region65: #{_lambda_.28} parent=5 // pred_region
        %s288 = ssub.s32 %s9, 1
        %s289 = sand.u32 %s71, 1
        %s290 = sand.u32 %s71, 1
        %s291 = smul.addr %s290, 128
        %s292 = scalar_lea.vmem [#allocation3], %s291
        // Predicated region
        $region67: #{_lambda_.28} parent=65 // pred_check
          %p293 = pneg %p84
        $region68: #{_lambda_.28} parent=65 // pred_check_branch
          %295 = sbr.rel (%p293) target = $region70
        $region69: #{_lambda_.28} parent=65 // pred_region
          _
        $region70: #{_lambda_.28} parent=65 // pred_fallthru
          _
        %s296 = smul.u32 2, %s19
        %p297 = scmp.lt.s32.totalorder %s296, 1
        %s298 = scalar_select %p297, %s296, 1
        %p299 = scmp.lt.s32.totalorder %s21, 0
        %s300 = scalar_select %p299, %s21, 0
        %s301 = sadd.s32 %s300, %s298
        %s302 = smul.addr %s301, 4
        %s303 = scalar_lea.vmem %s0, %s302
        %p304 = pneg %p56
        %p305 = pneg %p53
        %s306 = sand.u32 %s71, 1
        %s307 = sand.u32 %s71, 1
        %s308 = smul.addr %s307, 128
        %s309 = scalar_lea.vmem [#allocation3], %s308
        %p310 = pneg %p84
        %p311 = pneg %p81
        %s312 = smul.u32 2, %s20
        %p313 = scmp.lt.s32.totalorder %s312, 3
        %s314 = scalar_select %p313, %s312, 3
        %s315 = scalar_lea.vmem %s2, %s314
        %p316 = pneg %p110
        %p317 = pneg %p107
        %p318 = pneg %p138
        %p319 = pneg %p135
        %s320 = sand.u32 %s125, 1
        %s321 = sand.u32 %s125, 1
        %s322 = smul.addr %s321, 16
        %s323 = scalar_lea.vmem [#allocation4], %s322
        %s324 = smul.u32 2, %s19
        %p325 = scmp.lt.s32.totalorder %s324, 1
        %s326 = scalar_select %p325, %s324, 1
        %p327 = scmp.lt.s32.totalorder %s21, 0
        %s328 = scalar_select %p327, %s21, 0
        %s329 = sadd.s32 %s328, %s326
        %s330 = smul.addr %s329, 4
        %s331 = scalar_lea.vmem %s0, %s330
        %s332 = smul.u32 2, %s19
        %s333 = smul.u32 16, %s21
        %s334 = smul.u32 2, %s20
        %s335 = smul.u32 2, %s20
        %p336 = scmp.lt.s32.totalorder %s335, 3
        %s337 = scalar_select %p336, %s335, 3
        %s338 = scalar_lea.vmem %s2, %s337
        %s339 = smul.u32 2, %s20
        %s340 = smul.u32 2, %s19
        %s341 = smul.u32 2, %s20
        %p343 = scmp.eq.s32.totalorder %s21, 0
        // Predicated region
        $region71: #{_lambda_.28} parent=65 // pred_check
          %p344 = pneg %p343
        $region72: #{_lambda_.28} parent=65 // pred_check_branch
          %346 = sbr.rel (%p344) target = $region74
        $region73: #{_lambda_.28} parent=65 // pred_region
          %347 = vst [vmem:[#allocation2] sm:$0xff] 0.0
          %348 = vst [vmem:[#allocation2 + $0x8] sm:$0xff] 0.0
          %349 = vst [vmem:[#allocation2 + $0x10] sm:$0xff] 0.0
          %350 = vst [vmem:[#allocation2 + $0x18] sm:$0xff] 0.0
        $region74: #{_lambda_.28} parent=65 // pred_fallthru
          _
        %v351 = vld [vmem:[#allocation2] sm:$0xff]
        %v352 = vld [vmem:[#allocation2 + $0x8] sm:$0xff]
        %v353 = vld [vmem:[#allocation2 + $0x10] sm:$0xff]
        %v354 = vld [vmem:[#allocation2 + $0x18] sm:$0xff]
        %v355 = vld [vmem:[%s331] sm:$0xf]
        %v356 = vld [vmem:[%s331 + $0x4] sm:$0xf]
        %v357 = vld [vmem:[%s292] sm:$0xff]
        %v358 = vld [vmem:[%s292 + $0x8] sm:$0xff]
        %v359 = vld [vmem:[%s292 + $0x10] sm:$0xff]
        %v360 = vld [vmem:[%s292 + $0x18] sm:$0xff]
        %v361 = vld [vmem:[%s292 + $0x20] sm:$0xff]
        %v362 = vld [vmem:[%s292 + $0x28] sm:$0xff]
        %v363 = vld [vmem:[%s292 + $0x30] sm:$0xff]
        %v364 = vld [vmem:[%s292 + $0x38] sm:$0xff]
        %v365 = vld [vmem:[%s292 + $0x40] sm:$0xff]
        %v366 = vld [vmem:[%s292 + $0x48] sm:$0xff]
        %v367 = vld [vmem:[%s292 + $0x50] sm:$0xff]
        %v368 = vld [vmem:[%s292 + $0x58] sm:$0xff]
        %v369 = vld [vmem:[%s292 + $0x60] sm:$0xff]
        %v370 = vld [vmem:[%s292 + $0x68] sm:$0xff]
        %v371 = vld [vmem:[%s292 + $0x70] sm:$0xff]
        %v372 = vld [vmem:[%s292 + $0x78] sm:$0xff]
        %v375 = vunpack.c.l.b16 %v355
        %v376 = vunpack.c.l.b16 %v356
        %v377 = vpack.c.b16 %v376, %v375
        %v395 = vunpack.c.l.b16 %v357
        %v396 = vunpack.c.h.b16 %v357
        %v397 = vunpack.c.l.b16 %v358
        %v398 = vunpack.c.h.b16 %v358
        %v399 = vunpack.c.l.b16 %v359
        %v400 = vunpack.c.h.b16 %v359
        %v401 = vunpack.c.l.b16 %v360
        %v402 = vunpack.c.h.b16 %v360
        %v403 = vunpack.c.l.b16 %v361
        %v404 = vunpack.c.h.b16 %v361
        %v405 = vunpack.c.l.b16 %v362
        %v406 = vunpack.c.h.b16 %v362
        %v407 = vunpack.c.l.b16 %v363
        %v408 = vunpack.c.h.b16 %v363
        %v409 = vunpack.c.l.b16 %v364
        %v410 = vunpack.c.h.b16 %v364
        %v411 = vunpack.c.l.b16 %v365
        %v412 = vunpack.c.h.b16 %v365
        %v413 = vunpack.c.l.b16 %v366
        %v414 = vunpack.c.h.b16 %v366
        %v415 = vunpack.c.l.b16 %v367
        %v416 = vunpack.c.h.b16 %v367
        %v417 = vunpack.c.l.b16 %v368
        %v418 = vunpack.c.h.b16 %v368
        %v419 = vunpack.c.l.b16 %v369
        %v420 = vunpack.c.h.b16 %v369
        %v421 = vunpack.c.l.b16 %v370
        %v422 = vunpack.c.h.b16 %v370
        %v423 = vunpack.c.l.b16 %v371
        %v424 = vunpack.c.h.b16 %v371
        %v425 = vunpack.c.l.b16 %v372
        %v426 = vunpack.c.h.b16 %v372
        %v427 = vpack.c.b16 %v397, %v395
        %v428 = vpack.c.b16 %v398, %v396
        %v429 = vpack.c.b16 %v401, %v399
        %v430 = vpack.c.b16 %v402, %v400
        %v431 = vpack.c.b16 %v405, %v403
        %v432 = vpack.c.b16 %v406, %v404
        %v433 = vpack.c.b16 %v409, %v407
        %v434 = vpack.c.b16 %v410, %v408
        %v435 = vpack.c.b16 %v413, %v411
        %v436 = vpack.c.b16 %v414, %v412
        %v437 = vpack.c.b16 %v417, %v415
        %v438 = vpack.c.b16 %v418, %v416
        %v439 = vpack.c.b16 %v421, %v419
        %v440 = vpack.c.b16 %v422, %v420
        %v441 = vpack.c.b16 %v425, %v423
        %v442 = vpack.c.b16 %v426, %v424
        %459 = vmatprep.subr.bf16.mxu0 %v428
        %460 = vmatpush1.bf16.msra.mxu0 %v427
        %461 = vmatprep.subr.bf16.mxu0 %v430
        %462 = vmatpush1.bf16.msra.mxu0 %v429
        %463 = vmatprep.subr.bf16.mxu0 %v432
        %464 = vmatpush1.bf16.msra.mxu0 %v431
        %465 = vmatprep.subr.bf16.mxu0 %v434
        %466 = vmatpush1.bf16.msra.mxu0 %v433
        %467 = vmatprep.subr.bf16.mxu0 %v436
        %468 = vmatpush1.bf16.msra.mxu0 %v435
        %469 = vmatprep.subr.bf16.mxu0 %v438
        %470 = vmatpush1.bf16.msra.mxu0 %v437
        %471 = vmatprep.subr.bf16.mxu0 %v440
        %472 = vmatpush1.bf16.msra.mxu0 %v439
        %473 = vmatprep.subr.bf16.mxu0 %v442
        %474 = vmatpush1.bf16.msra.mxu0 %v441
        %475 = vmatprep.subr.bf16.mxu0 0
        %476 = vmatpush1.bf16.msra.mxu0 0
        %477 = vmatprep.subr.bf16.mxu0 0
        %478 = vmatpush1.bf16.msra.mxu0 0
        %479 = vmatprep.subr.bf16.mxu0 0
        %480 = vmatpush1.bf16.msra.mxu0 0
        %481 = vmatprep.subr.bf16.mxu0 0
        %482 = vmatpush1.bf16.msra.mxu0 0
        %483 = vmatprep.subr.bf16.mxu0 0
        %484 = vmatpush1.bf16.msra.mxu0 0
        %485 = vmatprep.subr.bf16.mxu0 0
        %486 = vmatpush1.bf16.msra.mxu0 0
        %487 = vmatprep.subr.bf16.mxu0 0
        %488 = vmatpush1.bf16.msra.mxu0 0
        %489 = vmatprep.subr.bf16.mxu0 0
        %490 = vmatpush1.bf16.msra.mxu0 0
        %491 = vmatprep.mubr.bf16.mxu0 0
        %492 = vmatmul.mubr.bf16.gmra.mrb[0].mxu0 %v377
        %v493 = vpop.f32.mrb[0].mxu0
        %v494 = vadd.f32 0.0, %v493
        %v495 = vpop.f32.mrb[0].mxu0
        %v496 = vadd.f32 0.0, %v495
        %v497 = vpop.f32.mrb[0].mxu0
        %v498 = vadd.f32 0.0, %v497
        %v499 = vpop.f32.mrb[0].mxu0
        %v500 = vadd.f32 0.0, %v499
        %501 = vdwg.mxu0
        %v502 = vadd.f32 %v351, %v494
        %v503 = vadd.f32 %v352, %v496
        %v504 = vadd.f32 %v353, %v498
        %v505 = vadd.f32 %v354, %v500
        %506 = vst [vmem:[#allocation2] sm:$0xff] %v502
        %507 = vst [vmem:[#allocation2 + $0x8] sm:$0xff] %v503
        %508 = vst [vmem:[#allocation2 + $0x10] sm:$0xff] %v504
        %509 = vst [vmem:[#allocation2 + $0x18] sm:$0xff] %v505
        // Predicated region
        $region75: #{_lambda_.28} parent=65 // pred_check
          %p510 = pneg %p343
        $region76: #{_lambda_.28} parent=65 // pred_check_branch
          %512 = sbr.rel (%p510) target = $region78
        $region77: #{_lambda_.28} parent=65 // pred_region
          %v513 = vld [vmem:[#allocation2] sm:$0xff]
          %v514 = vld [vmem:[#allocation2 + $0x8] sm:$0xff]
          %v515 = vld [vmem:[#allocation2 + $0x10] sm:$0xff]
          %v516 = vld [vmem:[#allocation2 + $0x18] sm:$0xff]
          %v517 = vld [vmem:[%s338] sm:$0x3]
          %v519 = vlaneseq
          %v520 = vshrl.u32 %v519, 7
          %v521 = vsub.s32 0, %v520
          %v522 = vrot.slane %v517, %v521
          %v523 = vlaneseq
          %v524 = vshrl.u32 %v523, 7
          %v525 = vsub.s32 1, %v524
          %v526 = vrot.slane %v517, %v525
          %v529 = vadd.f32 %v513, %v522
          %v530 = vadd.f32 %v514, %v526
          %v531 = vadd.f32 %v515, %v522
          %v532 = vadd.f32 %v516, %v526
          %v533 = vmul.f32 %v529, 0.5
          %v534 = vmul.f32 %v530, 0.5
          %v535 = vmul.f32 %v531, 0.5
          %v536 = vmul.f32 %v532, 0.5
          %v537 = vmul.f32 %v529, 0.70710677
          %v538 = vmul.f32 %v530, 0.70710677
          %v539 = vmul.f32 %v531, 0.70710677
          %v540 = vmul.f32 %v532, 0.70710677
          %v541 = vand.u32 2147483647, %v537
          %v542 = vand.u32 2147483647, %v538
          %v543 = vand.u32 2147483647, %v539
          %v544 = vand.u32 2147483647, %v540
          %v545 = vmul.f32 %v541, 0.3275911
          %v546 = vmul.f32 %v542, 0.3275911
          %v547 = vmul.f32 %v543, 0.3275911
          %v548 = vmul.f32 %v544, 0.3275911
          %v549 = vadd.f32 %v545, 1.0
          %v550 = vadd.f32 %v546, 1.0
          %v551 = vadd.f32 %v547, 1.0
          %v552 = vadd.f32 %v548, 1.0
          %v553 = vrcp.pop %v549
          %v554 = vrcp.pop %v550
          %v555 = vrcp.pop %v551
          %v556 = vrcp.pop %v552
          %v557 = vmul.f32 %v553, 1.0614054
          %v558 = vmul.f32 %v554, 1.0614054
          %v559 = vmul.f32 %v555, 1.0614054
          %v560 = vmul.f32 %v556, 1.0614054
          %v561 = vadd.f32 %v557, -1.4531521
          %v562 = vadd.f32 %v558, -1.4531521
          %v563 = vadd.f32 %v559, -1.4531521
          %v564 = vadd.f32 %v560, -1.4531521
          %v565 = vmul.f32 %v561, %v553
          %v566 = vmul.f32 %v562, %v554
          %v567 = vmul.f32 %v563, %v555
          %v568 = vmul.f32 %v564, %v556
          %v569 = vadd.f32 %v565, 1.4214138
          %v570 = vadd.f32 %v566, 1.4214138
          %v571 = vadd.f32 %v567, 1.4214138
          %v572 = vadd.f32 %v568, 1.4214138
          %v573 = vmul.f32 %v569, %v553
          %v574 = vmul.f32 %v570, %v554
          %v575 = vmul.f32 %v571, %v555
          %v576 = vmul.f32 %v572, %v556
          %v577 = vadd.f32 %v573, -0.28449672
          %v578 = vadd.f32 %v574, -0.28449672
          %v579 = vadd.f32 %v575, -0.28449672
          %v580 = vadd.f32 %v576, -0.28449672
          %v581 = vmul.f32 %v577, %v553
          %v582 = vmul.f32 %v578, %v554
          %v583 = vmul.f32 %v579, %v555
          %v584 = vmul.f32 %v580, %v556
          %v585 = vadd.f32 %v581, 0.2548296
          %v586 = vadd.f32 %v582, 0.2548296
          %v587 = vadd.f32 %v583, 0.2548296
          %v588 = vadd.f32 %v584, 0.2548296
          %v589 = vmul.f32 %v585, %v553
          %v590 = vmul.f32 %v586, %v554
          %v591 = vmul.f32 %v587, %v555
          %v592 = vmul.f32 %v588, %v556
          %v593 = vsub.f32 0.0, %v541
          %v594 = vsub.f32 0.0, %v542
          %v595 = vsub.f32 0.0, %v543
          %v596 = vsub.f32 0.0, %v544
          %v597 = vmul.f32 %v593, %v541
          %v598 = vmul.f32 %v594, %v542
          %v599 = vmul.f32 %v595, %v543
          %v600 = vmul.f32 %v596, %v544
          %v601 = vmul.f32 %v597, 1.442695
          %v602 = vpow.pop %v601
          %v603 = vmul.f32 %v598, 1.442695
          %v604 = vpow.pop %v603
          %v605 = vmul.f32 %v599, 1.442695
          %v606 = vpow.pop %v605
          %v607 = vmul.f32 %v600, 1.442695
          %v608 = vpow.pop %v607
          %v609 = vmul.f32 %v589, %v602
          %v610 = vmul.f32 %v590, %v604
          %v611 = vmul.f32 %v591, %v606
          %v612 = vmul.f32 %v592, %v608
          %v613 = vsub.f32 1.0, %v609
          %v614 = vsub.f32 1.0, %v610
          %v615 = vsub.f32 1.0, %v611
          %v616 = vsub.f32 1.0, %v612
          %vm617 = vcmp.lt.f32.partialorder %v537, 0.0
          %vm618 = vcmp.lt.f32.partialorder %v538, 0.0
          %vm619 = vcmp.lt.f32.partialorder %v539, 0.0
          %vm620 = vcmp.lt.f32.partialorder %v540, 0.0
          %v621 = vsub.f32 0.0, %v613
          %v622 = vsub.f32 0.0, %v614
          %v623 = vsub.f32 0.0, %v615
          %v624 = vsub.f32 0.0, %v616
          %v625 = vsel %vm617, %v621, %v613
          %v626 = vsel %vm618, %v622, %v614
          %v627 = vsel %vm619, %v623, %v615
          %v628 = vsel %vm620, %v624, %v616
          %v629 = vadd.f32 %v625, 1.0
          %v630 = vadd.f32 %v626, 1.0
          %v631 = vadd.f32 %v627, 1.0
          %v632 = vadd.f32 %v628, 1.0
          %v633 = vmul.f32 %v533, %v629
          %v634 = vmul.f32 %v534, %v630
          %v635 = vmul.f32 %v535, %v631
          %v636 = vmul.f32 %v536, %v632
          %v637 = vpack.c.bf16 %v635, %v633
          %v638 = vpack.c.bf16 %v636, %v634
          %v641 = vunpack.c.l.b16 %v637
          %v642 = vunpack.c.l.b16 %v638
          %v643 = vunpack.c.h.b16 %v637
          %v644 = vunpack.c.h.b16 %v638
          %v645 = vpack.c.b16 %v642, %v641
          %v646 = vpack.c.b16 %v644, %v643
          %649 = vst [vmem:[%s323] sm:$0xff] %v645
          %650 = vst [vmem:[%s323 + $0x8] sm:$0xff] %v646
        $region78: #{_lambda_.28} parent=65 // pred_fallthru
          _
        %s651 = sand.u32 %s125, 1
        %s652 = sand.u32 %s125, 1
        %s653 = smul.addr %s652, 16
        %s654 = scalar_lea.vmem [#allocation4], %s653
        // Predicated region
        $region79: #{_lambda_.28} parent=65 // pred_check
          %p655 = pneg %p135
        $region80: #{_lambda_.28} parent=65 // pred_check_branch
          %657 = sbr.rel (%p655) target = $region82
        $region81: #{_lambda_.28} parent=65 // pred_region
          %s658 = smul.u32 2, %s19
          %s659 = smul.u32 2, %s20
          %s660 = smul.addr %s658, 4
          %s661 = sadd.s32 %s659, %s660
          %s662 = smul.addr %s661, 4
          %s663 = scalar_lea.vmem %s3, %s662
          // Predicated region
          $region83: #{_lambda_.28} parent=81 // pred_check
            _
          $region84: #{_lambda_.28} parent=81 // pred_check_branch
            %665 = sbr.rel (0) target = $region86
          $region85: #{_lambda_.28} parent=81 // pred_region
            // Predicated region
            $region87: #{_lambda_.28} parent=85 // pred_check
              _
            $region88: #{_lambda_.28} parent=85 // pred_check_branch
              %667 = sbr.rel (0) target = $region90
            $region89: #{_lambda_.28} parent=85 // pred_region
              // Predicated region
              $region102: #{_lambda_.28} parent=89 // pred_check
                _
              $region103: #{_lambda_.28} parent=89 // pred_check_branch
                %684 = sbr.rel (0) target = $region105
              $region104: #{_lambda_.28} parent=89 // pred_region
                loop: start=0, step=1, limit=1
                $region106: #{_lambda_.28} parent=104 // loop_pre_header
                  _
                $region107: #{_lambda_.28} parent=104 // loop_header
                  %s686 = sphi 0, %s690
                  %p687 = scmp.ge.s32.totalorder %s686, 1
                  %s691 = sphi %s654, %s654
                  %s692 = sphi %s663, %s663
                $region108: #{_lambda_.28} parent=104 // loop_header_branch
                  %689 = sbr.rel (%p687) target = $region112
                $region109: #{_lambda_.28} parent=104 // loop_body
                  %v693 = vld [vmem:[%s691] sm:$0xff]
                  %694 = vst [vmem:[%s692] sm:$0xff] %v693
                  %v695 = vld [vmem:[%s691 + $0x8] sm:$0xff]
                  %696 = vst [vmem:[%s692 + $0x10] sm:$0xff] %v695
                $region110: #{_lambda_.28} parent=104 // loop_footer
                  %s690 = sadd.s32 1, %s686
                $region111: #{_lambda_.28} parent=104 // loop_footer_branch
                  %685 = sbr.rel target = $region107
                $region112: #{_lambda_.28} parent=104 // loop_exit
                  _
              $region105: #{_lambda_.28} parent=89 // pred_fallthru
                _
              // Predicated region
              $region113: #{_lambda_.28} parent=89 // pred_check
                _
              $region114: #{_lambda_.28} parent=89 // pred_check_branch
                %698 = sbr.rel target = $region116
              $region115: #{_lambda_.28} parent=89 // pred_region
                _
              $region116: #{_lambda_.28} parent=89 // pred_fallthru
                _
            $region90: #{_lambda_.28} parent=85 // pred_fallthru
              _
            // Predicated region
            $region91: #{_lambda_.28} parent=85 // pred_check
              _
            $region92: #{_lambda_.28} parent=85 // pred_check_branch
              %669 = sbr.rel target = $region94
            $region93: #{_lambda_.28} parent=85 // pred_region
              loop: start=0, step=1, limit=1
              $region95: #{_lambda_.28} parent=93 // loop_pre_header
                _
              $region96: #{_lambda_.28} parent=93 // loop_header
                %s672 = sphi 0, %s676
                %p673 = scmp.ge.s32.totalorder %s672, 1
                %s677 = sphi %s654, %s654
                %s678 = sphi %s663, %s663
              $region97: #{_lambda_.28} parent=93 // loop_header_branch
                %675 = sbr.rel (%p673) target = $region101
              $region98: #{_lambda_.28} parent=93 // loop_body
                %v679 = vld [vmem:[%s677] sm:$0xff]
                %680 = vst [vmem:[%s678] sm:$0xff] %v679
                %v681 = vld [vmem:[%s677 + $0x8] sm:$0xff]
                %682 = vst [vmem:[%s678 + $0x10] sm:$0xff] %v681
              $region99: #{_lambda_.28} parent=93 // loop_footer
                %s676 = sadd.s32 1, %s672
              $region100: #{_lambda_.28} parent=93 // loop_footer_branch
                %671 = sbr.rel target = $region96
              $region101: #{_lambda_.28} parent=93 // loop_exit
                _
            $region94: #{_lambda_.28} parent=85 // pred_fallthru
              _
          $region86: #{_lambda_.28} parent=81 // pred_fallthru
            _
          %699 = vnop
        $region82: #{_lambda_.28} parent=65 // pred_fallthru
          _
      $region66: #{_lambda_.28} parent=5 // pred_fallthru
        _
      %p700 = scmp.le.s32.totalorder 2, %s9
      // Predicated region
      $region117: #{_lambda_.28} parent=5 // pred_check
        %p701 = pneg %p700
      $region118: #{_lambda_.28} parent=5 // pred_check_branch
        %703 = sbr.rel (%p701) target = $region120
      $region119: #{_lambda_.28} parent=5 // pred_region
        %s704 = ssub.s32 %s9, 2
        // Predicated region
        $region121: #{_lambda_.28} parent=119 // pred_check
          %p705 = pneg %p141
        $region122: #{_lambda_.28} parent=119 // pred_check_branch
          %707 = sbr.rel (%p705) target = $region124
        $region123: #{_lambda_.28} parent=119 // pred_region
          %s708 = sand.u32 %s126, 1
          %s709 = sand.u32 %s126, 1
          %s710 = smul.addr %s709, 16
          %s711 = scalar_lea.vmem [#allocation4], %s710
        $region124: #{_lambda_.28} parent=119 // pred_fallthru
          _
      $region120: #{_lambda_.28} parent=5 // pred_fallthru
        _
    $region6: #{_lambda_.28} parent=1 // loop_footer
      %s13 = sadd.s32 1, %s9
    $region7: #{_lambda_.28} parent=1 // loop_footer_branch
      %8 = sbr.rel target = $region3
    $region8: #{_lambda_.28} parent=1 // loop_exit
      _

// kernel: _lambda_.27
$region0: #{_lambda_.27}
  #allocation0 [shape = 'u32[]', space=smem, size = 0x4, offset = 0x4, fixed_abs, tag = 'smem constant byte address 0x4 - core index']
  #allocation1 [shape = 'u32[144,128]{1,0:T(1,128)}', space=vmem, size = 0x12000, scoped, tag = 'internal scratch']
  #allocation2 [shape = 'f32[16,128]{1,0:T(8,128)}', space=vmem, size = 0x2000, scoped, tag = 'scratch operand']
  %s0 = inlined_call_operand.vmem [shape: bf16[16,128], index: 0, kind: input, shape index: {}]
  %s1 = inlined_call_operand.vmem [shape: bf16[128,128], index: 1, kind: input, shape index: {}]
  %s2 = inlined_call_operand.vmem [shape: f32[1,128], index: 2, kind: input, shape index: {}]
  %s3 = inlined_call_operand.vmem [shape: bf16[16,128], index: 3, kind: input, shape index: {}]
  %s4 = inlined_call_operand.vmem [shape: f32[1,128], index: 4, kind: input, shape index: {}]
  %s5 = inlined_call_operand.vmem [shape: f32[1,128], index: 5, kind: input, shape index: {}]
  %s6 = inlined_call_operand.vmem [shape: bf16[16,128], index: 6, kind: output, shape index: {}]
  %s7 = sld [smem:[#allocation0]]
  $region42: #{_lambda_.27} parent=0
    _
  %s9 = ssub.s32 1, %s7
  %s10 = scalar_select 0, %s9, %s7
  // Predicated region
  $region2: #{_lambda_.27} parent=0 // pred_check
    _
  $region3: #{_lambda_.27} parent=0 // pred_check_branch
    %12 = sbr.rel (0) target = $region5
  $region4: #{_lambda_.27} parent=0 // pred_region
    _
  $region5: #{_lambda_.27} parent=0 // pred_fallthru
    _
  // Predicated region
  $region6: #{_lambda_.27} parent=0 // pred_check
    _
  $region7: #{_lambda_.27} parent=0 // pred_check_branch
    %14 = sbr.rel (0) target = $region9
  $region8: #{_lambda_.27} parent=0 // pred_region
    _
  $region9: #{_lambda_.27} parent=0 // pred_fallthru
    _
  // Predicated region
  $region10: #{_lambda_.27} parent=0 // pred_check
    _
  $region11: #{_lambda_.27} parent=0 // pred_check_branch
    %16 = sbr.rel (0) target = $region13
  $region12: #{_lambda_.27} parent=0 // pred_region
    _
  $region13: #{_lambda_.27} parent=0 // pred_fallthru
    _
  // Predicated region
  $region14: #{_lambda_.27} parent=0 // pred_check
    _
  $region15: #{_lambda_.27} parent=0 // pred_check_branch
    %18 = sbr.rel (0) target = $region17
  $region16: #{_lambda_.27} parent=0 // pred_region
    _
  $region17: #{_lambda_.27} parent=0 // pred_fallthru
    _
  // Predicated region
  $region18: #{_lambda_.27} parent=0 // pred_check
    _
  $region19: #{_lambda_.27} parent=0 // pred_check_branch
    %20 = sbr.rel (0) target = $region21
  $region20: #{_lambda_.27} parent=0 // pred_region
    _
  $region21: #{_lambda_.27} parent=0 // pred_fallthru
    _
  // Predicated region
  $region22: #{_lambda_.27} parent=0 // pred_check
    _
  $region23: #{_lambda_.27} parent=0 // pred_check_branch
    %22 = sbr.rel (0) target = $region25
  $region24: #{_lambda_.27} parent=0 // pred_region
    _
  $region25: #{_lambda_.27} parent=0 // pred_fallthru
    _
  %p24 = scmp.eq.s32.totalorder 0, 0
  // Predicated region
  $region26: #{_lambda_.27} parent=0 // pred_check
    %p25 = pneg %p24
  $region27: #{_lambda_.27} parent=0 // pred_check_branch
    %27 = sbr.rel (%p25) target = $region29
  $region28: #{_lambda_.27} parent=0 // pred_region
    %28 = vst [vmem:[#allocation2] sm:$0xff] 0.0
    %29 = vst [vmem:[#allocation2 + $0x8] sm:$0xff] 0.0
  $region29: #{_lambda_.27} parent=0 // pred_fallthru
    _
  %v30 = vld [vmem:[#allocation2] sm:$0xff]
  %v31 = vld [vmem:[#allocation2 + $0x8] sm:$0xff]
  %v32 = vld [vmem:[%s0] sm:$0xf]
  %v33 = vld [vmem:[%s0 + $0x4] sm:$0xf]
  %v34 = vld [vmem:[%s1] sm:$0xf]
  %v35 = vld [vmem:[%s1 + $0x4] sm:$0xf]
  %v36 = vld [vmem:[%s1 + $0x8] sm:$0xf]
  %v37 = vld [vmem:[%s1 + $0xc] sm:$0xf]
  %v38 = vld [vmem:[%s1 + $0x10] sm:$0xf]
  %v39 = vld [vmem:[%s1 + $0x14] sm:$0xf]
  %v40 = vld [vmem:[%s1 + $0x18] sm:$0xf]
  %v41 = vld [vmem:[%s1 + $0x1c] sm:$0xf]
  %v42 = vld [vmem:[%s1 + $0x20] sm:$0xf]
  %v43 = vld [vmem:[%s1 + $0x24] sm:$0xf]
  %v44 = vld [vmem:[%s1 + $0x28] sm:$0xf]
  %v45 = vld [vmem:[%s1 + $0x2c] sm:$0xf]
  %v46 = vld [vmem:[%s1 + $0x30] sm:$0xf]
  %v47 = vld [vmem:[%s1 + $0x34] sm:$0xf]
  %v48 = vld [vmem:[%s1 + $0x38] sm:$0xf]
  %v49 = vld [vmem:[%s1 + $0x3c] sm:$0xf]
  %v52 = vunpack.c.l.b16 %v32
  %v53 = vunpack.c.l.b16 %v33
  %v54 = vpack.c.b16 %v53, %v52
  %v72 = vunpack.c.l.b16 %v34
  %v73 = vunpack.c.l.b16 %v35
  %v74 = vunpack.c.l.b16 %v36
  %v75 = vunpack.c.l.b16 %v37
  %v76 = vunpack.c.l.b16 %v38
  %v77 = vunpack.c.l.b16 %v39
  %v78 = vunpack.c.l.b16 %v40
  %v79 = vunpack.c.l.b16 %v41
  %v80 = vunpack.c.l.b16 %v42
  %v81 = vunpack.c.l.b16 %v43
  %v82 = vunpack.c.l.b16 %v44
  %v83 = vunpack.c.l.b16 %v45
  %v84 = vunpack.c.l.b16 %v46
  %v85 = vunpack.c.l.b16 %v47
  %v86 = vunpack.c.l.b16 %v48
  %v87 = vunpack.c.l.b16 %v49
  %v88 = vpack.c.b16 %v73, %v72
  %v89 = vpack.c.b16 %v75, %v74
  %v90 = vpack.c.b16 %v77, %v76
  %v91 = vpack.c.b16 %v79, %v78
  %v92 = vpack.c.b16 %v81, %v80
  %v93 = vpack.c.b16 %v83, %v82
  %v94 = vpack.c.b16 %v85, %v84
  %v95 = vpack.c.b16 %v87, %v86
  %104 = vmatprep.subr.bf16.mxu0 0
  %105 = vmatpush1.bf16.msra.mxu0 %v88
  %106 = vmatprep.subr.bf16.mxu0 0
  %107 = vmatpush1.bf16.msra.mxu0 %v89
  %108 = vmatprep.subr.bf16.mxu0 0
  %109 = vmatpush1.bf16.msra.mxu0 %v90
  %110 = vmatprep.subr.bf16.mxu0 0
  %111 = vmatpush1.bf16.msra.mxu0 %v91
  %112 = vmatprep.subr.bf16.mxu0 0
  %113 = vmatpush1.bf16.msra.mxu0 %v92
  %114 = vmatprep.subr.bf16.mxu0 0
  %115 = vmatpush1.bf16.msra.mxu0 %v93
  %116 = vmatprep.subr.bf16.mxu0 0
  %117 = vmatpush1.bf16.msra.mxu0 %v94
  %118 = vmatprep.subr.bf16.mxu0 0
  %119 = vmatpush1.bf16.msra.mxu0 %v95
  %120 = vmatprep.subr.bf16.mxu0 0
  %121 = vmatpush1.bf16.msra.mxu0 0
  %122 = vmatprep.subr.bf16.mxu0 0
  %123 = vmatpush1.bf16.msra.mxu0 0
  %124 = vmatprep.subr.bf16.mxu0 0
  %125 = vmatpush1.bf16.msra.mxu0 0
  %126 = vmatprep.subr.bf16.mxu0 0
  %127 = vmatpush1.bf16.msra.mxu0 0
  %128 = vmatprep.subr.bf16.mxu0 0
  %129 = vmatpush1.bf16.msra.mxu0 0
  %130 = vmatprep.subr.bf16.mxu0 0
  %131 = vmatpush1.bf16.msra.mxu0 0
  %132 = vmatprep.subr.bf16.mxu0 0
  %133 = vmatpush1.bf16.msra.mxu0 0
  %134 = vmatprep.subr.bf16.mxu0 0
  %135 = vmatpush1.bf16.msra.mxu0 0
  %136 = vmatprep.mubr.bf16.mxu0 0
  %137 = vmatmul.mubr.bf16.gmra.mrb[0].mxu0 %v54
  %v138 = vpop.f32.mrb[0].mxu0
  %v139 = vadd.f32 0.0, %v138
  %v140 = vpop.f32.mrb[0].mxu0
  %v141 = vpop.f32.mrb[0].mxu0
  %v142 = vadd.f32 0.0, %v141
  %v143 = vpop.f32.mrb[0].mxu0
  %144 = vdwg.mxu0
  %v145 = vadd.f32 %v30, %v139
  %v146 = vadd.f32 %v31, %v142
  %147 = vst [vmem:[#allocation2] sm:$0xff] %v145
  %148 = vst [vmem:[#allocation2 + $0x8] sm:$0xff] %v146
  // Predicated region
  $region30: #{_lambda_.27} parent=0 // pred_check
    %p149 = pneg %p24
  $region31: #{_lambda_.27} parent=0 // pred_check_branch
    %151 = sbr.rel (%p149) target = $region33
  $region32: #{_lambda_.27} parent=0 // pred_region
    %v152 = vld [vmem:[#allocation2] sm:$0xff]
    %v153 = vld [vmem:[#allocation2 + $0x8] sm:$0xff]
    %v154 = vld [vmem:[%s2] sm:$0x1]
    %v156 = vlaneseq
    %v157 = vshrl.u32 %v156, 7
    %v158 = vsub.s32 0, %v157
    %v159 = vrot.slane %v154, %v158
    %v161 = vadd.f32 %v152, %v159
    %v162 = vadd.f32 %v153, %v159
    %v163 = vld [vmem:[%s3] sm:$0xf]
    %v164 = vld [vmem:[%s3 + $0x4] sm:$0xf]
    %v165 = vunpack.c.l.bf16 %v163
    %v166 = vunpack.c.l.bf16 %v164
    %v167 = vadd.f32 %v161, %v165
    %v168 = vadd.f32 %v162, %v166
    %169 = vadd.xlane.f32.xlu0 %v167
    %v170 = vpop.xlane.xlu0 %169
    %171 = vadd.xlane.f32.xlu0 %v168
    %v172 = vpop.xlane.xlu0 %171
    %v173 = vrcp.pop 128.0
    %v174 = vmul.f32 %v170, %v173
    %v175 = vmul.f32 %v172, %v173
    %v176 = vsub.f32 %v167, %v174
    %v177 = vsub.f32 %v168, %v175
    %v178 = vmul.f32 %v176, %v176
    %v179 = vmul.f32 %v177, %v177
    %180 = vadd.xlane.f32.xlu0 %v178
    %v181 = vpop.xlane.xlu0 %180
    %182 = vadd.xlane.f32.xlu0 %v179
    %v183 = vpop.xlane.xlu0 %182
    %v184 = vmul.f32 %v181, %v173
    %v185 = vmul.f32 %v183, %v173
    %v186 = vadd.f32 %v184, 1e-05
    %v187 = vadd.f32 %v185, 1e-05
    %v188 = vrsqrt.pop %v186
    %v189 = vrsqrt.pop %v187
    %v190 = vmul.f32 %v176, %v188
    %v191 = vmul.f32 %v177, %v189
    %v192 = vld [vmem:[%s4] sm:$0x1]
    %v194 = vlaneseq
    %v195 = vshrl.u32 %v194, 7
    %v196 = vsub.s32 0, %v195
    %v197 = vrot.slane %v192, %v196
    %v199 = vmul.f32 %v190, %v197
    %v200 = vmul.f32 %v191, %v197
    %v201 = vld [vmem:[%s5] sm:$0x1]
    %v203 = vlaneseq
    %v204 = vshrl.u32 %v203, 7
    %v205 = vsub.s32 0, %v204
    %v206 = vrot.slane %v201, %v205
    %v208 = vadd.f32 %v199, %v206
    %v209 = vadd.f32 %v200, %v206
    %v210 = vpack.c.bf16 %v209, %v208
    %v212 = vunpack.c.l.b16 %v210
    %v213 = vunpack.c.h.b16 %v210
    %v214 = vpack.c.b16 %v212, %v212
    %v215 = vpack.c.b16 %v213, %v213
    %218 = vst [vmem:[%s6] sm:$0xf] %v214
    %219 = vst [vmem:[%s6 + $0x4] sm:$0xf] %v215
  $region33: #{_lambda_.27} parent=0 // pred_fallthru
    _
  // Predicated region
  $region34: #{_lambda_.27} parent=0 // pred_check
    _
  $region35: #{_lambda_.27} parent=0 // pred_check_branch
    %221 = sbr.rel (0) target = $region37
  $region36: #{_lambda_.27} parent=0 // pred_region
    _
  $region37: #{_lambda_.27} parent=0 // pred_fallthru
    _
  // Predicated region
  $region38: #{_lambda_.27} parent=0 // pred_check
    _
  $region39: #{_lambda_.27} parent=0 // pred_check_branch
    %223 = sbr.rel (0) target = $region41
  $region40: #{_lambda_.27} parent=0 // pred_region
    _
  $region41: #{_lambda_.27} parent=0 // pred_fallthru
    _

// kernel: _lambda_.26
$region0: #{_lambda_.26}
  #allocation0 [shape = 'u32[]', space=smem, size = 0x4, offset = 0x4, fixed_abs, tag = 'smem constant byte address 0x4 - core index']
  #allocation1 [shape = 'u32[144,128]{1,0:T(1,128)}', space=vmem, size = 0x12000, scoped, tag = 'internal scratch']
  %s0 = inlined_call_operand.vmem [shape: bf16[2,8,384], index: 0, kind: input, shape index: {}, may-alias: {0,1,2}]
  %s1 = inlined_call_operand.vmem [shape: bf16[2,8,384], index: 1, kind: input, shape index: {}, may-alias: {0,1,2}]
  %s2 = inlined_call_operand.vmem [shape: bf16[2,8,384], index: 2, kind: input, shape index: {}, may-alias: {0,1,2}]
  %s3 = inlined_call_operand.vmem [shape: f32[2,1,8], index: 3, kind: input, shape index: {}]
  %s4 = inlined_call_operand.vmem [shape: bf16[2,8,128], index: 4, kind: output, shape index: {}]
  %s5 = sld [smem:[#allocation0]]
  $region49: #{_lambda_.26} parent=0
    _
  %s7 = ssub.s32 1, %s5
  %s8 = scalar_select 0, %s7, %s5
  loop: start=0, step=1, limit=4
  $region2: #{_lambda_.26} parent=0 // loop_pre_header
    _
  $region3: #{_lambda_.26} parent=0 // loop_header
    %s10 = sphi 0, %s14
    %p11 = scmp.ge.s32.totalorder %s10, 4
    %s17 = sphi 0, %s29
    %s18 = sphi 0, %s25
    %s19 = sphi 0, %s17
    %s20 = sphi 0, %s18
    %s21 = sphi 0, %s19
    %s22 = sphi 0, %s20
    %s34 = sphi 0, %s36
    %s37 = sphi 0, %s34
    %s38 = sphi 0, %s37
    %s54 = sphi 0, %s38
    %s60 = sphi 0, %s62
    %s63 = sphi 0, %s60
    %s64 = sphi 0, %s63
    %s80 = sphi 0, %s64
    %s86 = sphi 0, %s88
    %s89 = sphi 0, %s86
    %s90 = sphi 0, %s89
    %s106 = sphi 0, %s90
    %s112 = sphi 0, %s114
    %s115 = sphi 0, %s112
    %s116 = sphi 0, %s115
    %s132 = sphi 0, %s116
    %s140 = sphi 0, %s142
    %s143 = sphi 0, %s140
    %s144 = sphi 0, %s143
    %s160 = sphi 0, %s144
  $region4: #{_lambda_.26} parent=0 // loop_header_branch
    %13 = sbr.rel (%p11) target = $region8
  $region5: #{_lambda_.26} parent=0 // loop_body
    %s15 = ssub.s32 %s10, 1
    %s16 = ssub.s32 %s10, 2
    %s23 = sadd.s32 1, %s18
    %p24 = scmp.ge.s32.totalorder %s23, 1
    %s25 = scalar_select %p24, 0, %s23
    %s26 = sadd.s32 1, %s17
    %s27 = scalar_select %p24, %s26, %s17
    %p28 = scmp.ge.s32.totalorder %s27, 2
    %s29 = scalar_select %p28, 0, %s27
    %s30 = ssub.s32 %s17, %s29
    %s31 = ssub.s32 %s18, %s25
    %s32 = sor.u32 %s30, %s31
    %p33 = scmp.eq.s32.totalorder %s32, 0
    %s35 = sadd.s32 %s34, 1
    %s36 = scalar_select %p33, %s34, %s35
    %p39 = pneg %p33
    %p40 = scmp.eq.s32.totalorder %s10, 1
    %p41 = por %p39, %p40
    %p42 = scmp.ne.s32.totalorder %s34, %s37
    %p43 = scmp.eq.s32.totalorder %s10, 0
    %p44 = por %p42, %p43
    %p45 = scmp.ne.s32.totalorder %s34, %s37
    %p46 = scmp.eq.s32.totalorder %s15, 1
    %p47 = por %p45, %p46
    %p48 = scmp.ne.s32.totalorder %s37, %s38
    %p49 = scmp.eq.s32.totalorder %s15, 0
    %p50 = por %p48, %p49
    %p51 = scmp.ne.s32.totalorder %s37, %s38
    %p52 = scmp.eq.s32.totalorder %s16, 1
    %p53 = por %p51, %p52
    %p55 = scmp.ne.s32.totalorder %s38, %s54
    %p56 = scmp.eq.s32.totalorder %s16, 0
    %p57 = por %p55, %p56
    %s58 = ssub.s32 %s17, %s29
    %p59 = scmp.eq.s32.totalorder %s58, 0
    %s61 = sadd.s32 %s60, 1
    %s62 = scalar_select %p59, %s60, %s61
    %p65 = pneg %p59
    %p66 = scmp.eq.s32.totalorder %s10, 1
    %p67 = por %p65, %p66
    %p68 = scmp.ne.s32.totalorder %s60, %s63
    %p69 = scmp.eq.s32.totalorder %s10, 0
    %p70 = por %p68, %p69
    %p71 = scmp.ne.s32.totalorder %s60, %s63
    %p72 = scmp.eq.s32.totalorder %s15, 1
    %p73 = por %p71, %p72
    %p74 = scmp.ne.s32.totalorder %s63, %s64
    %p75 = scmp.eq.s32.totalorder %s15, 0
    %p76 = por %p74, %p75
    %p77 = scmp.ne.s32.totalorder %s63, %s64
    %p78 = scmp.eq.s32.totalorder %s16, 1
    %p79 = por %p77, %p78
    %p81 = scmp.ne.s32.totalorder %s64, %s80
    %p82 = scmp.eq.s32.totalorder %s16, 0
    %p83 = por %p81, %p82
    %s84 = ssub.s32 %s17, %s29
    %p85 = scmp.eq.s32.totalorder %s84, 0
    %s87 = sadd.s32 %s86, 1
    %s88 = scalar_select %p85, %s86, %s87
    %p91 = pneg %p85
    %p92 = scmp.eq.s32.totalorder %s10, 1
    %p93 = por %p91, %p92
    %p94 = scmp.ne.s32.totalorder %s86, %s89
    %p95 = scmp.eq.s32.totalorder %s10, 0
    %p96 = por %p94, %p95
    %p97 = scmp.ne.s32.totalorder %s86, %s89
    %p98 = scmp.eq.s32.totalorder %s15, 1
    %p99 = por %p97, %p98
    %p100 = scmp.ne.s32.totalorder %s89, %s90
    %p101 = scmp.eq.s32.totalorder %s15, 0
    %p102 = por %p100, %p101
    %p103 = scmp.ne.s32.totalorder %s89, %s90
    %p104 = scmp.eq.s32.totalorder %s16, 1
    %p105 = por %p103, %p104
    %p107 = scmp.ne.s32.totalorder %s90, %s106
    %p108 = scmp.eq.s32.totalorder %s16, 0
    %p109 = por %p107, %p108
    %s110 = ssub.s32 %s17, %s29
    %p111 = scmp.eq.s32.totalorder %s110, 0
    %s113 = sadd.s32 %s112, 1
    %s114 = scalar_select %p111, %s112, %s113
    %p117 = pneg %p111
    %p118 = scmp.eq.s32.totalorder %s10, 1
    %p119 = por %p117, %p118
    %p120 = scmp.ne.s32.totalorder %s112, %s115
    %p121 = scmp.eq.s32.totalorder %s10, 0
    %p122 = por %p120, %p121
    %p123 = scmp.ne.s32.totalorder %s112, %s115
    %p124 = scmp.eq.s32.totalorder %s15, 1
    %p125 = por %p123, %p124
    %p126 = scmp.ne.s32.totalorder %s115, %s116
    %p127 = scmp.eq.s32.totalorder %s15, 0
    %p128 = por %p126, %p127
    %p129 = scmp.ne.s32.totalorder %s115, %s116
    %p130 = scmp.eq.s32.totalorder %s16, 1
    %p131 = por %p129, %p130
    %p133 = scmp.ne.s32.totalorder %s116, %s132
    %p134 = scmp.eq.s32.totalorder %s16, 0
    %p135 = por %p133, %p134
    %s136 = ssub.s32 %s17, %s29
    %s137 = ssub.s32 %s18, %s25
    %s138 = sor.u32 %s136, %s137
    %p139 = scmp.eq.s32.totalorder %s138, 0
    %s141 = sadd.s32 %s140, 1
    %s142 = scalar_select %p139, %s140, %s141
    %p145 = pneg %p139
    %p146 = scmp.eq.s32.totalorder %s10, 1
    %p147 = por %p145, %p146
    %p148 = scmp.ne.s32.totalorder %s140, %s143
    %p149 = scmp.eq.s32.totalorder %s10, 0
    %p150 = por %p148, %p149
    %p151 = scmp.ne.s32.totalorder %s140, %s143
    %p152 = scmp.eq.s32.totalorder %s15, 1
    %p153 = por %p151, %p152
    %p154 = scmp.ne.s32.totalorder %s143, %s144
    %p155 = scmp.eq.s32.totalorder %s15, 0
    %p156 = por %p154, %p155
    %p157 = scmp.ne.s32.totalorder %s143, %s144
    %p158 = scmp.eq.s32.totalorder %s16, 1
    %p159 = por %p157, %p158
    %p161 = scmp.ne.s32.totalorder %s144, %s160
    %p162 = scmp.eq.s32.totalorder %s16, 0
    %p163 = por %p161, %p162
    %p164 = scmp.le.s32.totalorder 1, %s10
    %p165 = scmp.lt.s32.totalorder %s10, 3
    %p166 = pnand %p164, %p165
    %p167 = pneg %p166
    // Predicated region
    $region9: #{_lambda_.26} parent=5 // pred_check
      _
    $region10: #{_lambda_.26} parent=5 // pred_check_branch
      %169 = sbr.rel (%p166) target = $region12
    $region11: #{_lambda_.26} parent=5 // pred_region
      %s170 = ssub.s32 %s10, 1
    $region12: #{_lambda_.26} parent=5 // pred_fallthru
      _
    %p171 = scmp.lt.s32.totalorder %s10, 2
    // Predicated region
    $region13: #{_lambda_.26} parent=5 // pred_check
      %p172 = pneg %p171
    $region14: #{_lambda_.26} parent=5 // pred_check_branch
      %174 = sbr.rel (%p172) target = $region16
    $region15: #{_lambda_.26} parent=5 // pred_region
      // Predicated region
      $region17: #{_lambda_.26} parent=15 // pred_check
        %p175 = pneg %p44
      $region18: #{_lambda_.26} parent=15 // pred_check_branch
        %177 = sbr.rel (%p175) target = $region20
      $region19: #{_lambda_.26} parent=15 // pred_region
        %p178 = scmp.lt.s32.totalorder %s17, 1
        %s179 = scalar_select %p178, %s17, 1
        %p180 = scmp.lt.s32.totalorder %s18, 0
        %s181 = scalar_select %p180, %s18, 0
        %s182 = smul.addr %s181, 3
        %s183 = smul.addr %s179, 3
        %s184 = sadd.s32 %s182, %s183
        %s185 = smul.addr %s184, 4
        %s186 = scalar_lea.vmem %s0, %s185
      $region20: #{_lambda_.26} parent=15 // pred_fallthru
        _
      // Predicated region
      $region21: #{_lambda_.26} parent=15 // pred_check
        %p187 = pneg %p70
      $region22: #{_lambda_.26} parent=15 // pred_check_branch
        %189 = sbr.rel (%p187) target = $region24
      $region23: #{_lambda_.26} parent=15 // pred_region
        %p190 = scmp.lt.s32.totalorder %s17, 1
        %s191 = scalar_select %p190, %s17, 1
        %s192 = smul.addr %s191, 3
        %s193 = sadd.s32 1, %s192
        %s194 = smul.addr %s193, 4
        %s195 = scalar_lea.vmem %s1, %s194
      $region24: #{_lambda_.26} parent=15 // pred_fallthru
        _
      // Predicated region
      $region25: #{_lambda_.26} parent=15 // pred_check
        %p196 = pneg %p96
      $region26: #{_lambda_.26} parent=15 // pred_check_branch
        %198 = sbr.rel (%p196) target = $region28
      $region27: #{_lambda_.26} parent=15 // pred_region
        %p199 = scmp.lt.s32.totalorder %s17, 1
        %s200 = scalar_select %p199, %s17, 1
        %s201 = smul.addr %s200, 3
        %s202 = sadd.s32 2, %s201
        %s203 = smul.addr %s202, 4
        %s204 = scalar_lea.vmem %s2, %s203
      $region28: #{_lambda_.26} parent=15 // pred_fallthru
        _
      // Predicated region
      $region29: #{_lambda_.26} parent=15 // pred_check
        %p205 = pneg %p122
      $region30: #{_lambda_.26} parent=15 // pred_check_branch
        %207 = sbr.rel (%p205) target = $region32
      $region31: #{_lambda_.26} parent=15 // pred_region
        %p208 = scmp.lt.s32.totalorder %s17, 1
        %s209 = scalar_select %p208, %s17, 1
        %s210 = scalar_lea.vmem %s3, %s209
      $region32: #{_lambda_.26} parent=15 // pred_fallthru
        _
    $region16: #{_lambda_.26} parent=5 // pred_fallthru
      _
    %p211 = scmp.le.s32.totalorder 1, %s10
    %p212 = scmp.lt.s32.totalorder %s10, 3
    %p213 = pnand %p211, %p212
    %p214 = pneg %p213
    // Predicated region
    $region33: #{_lambda_.26} parent=5 // pred_check
      _
    $region34: #{_lambda_.26} parent=5 // pred_check_branch
      %216 = sbr.rel (%p213) target = $region36
    $region35: #{_lambda_.26} parent=5 // pred_region
      %s217 = ssub.s32 %s10, 1
      %p218 = scmp.lt.s32.totalorder %s19, 1
      %s219 = scalar_select %p218, %s19, 1
      %p220 = scmp.lt.s32.totalorder %s20, 0
      %s221 = scalar_select %p220, %s20, 0
      %s222 = smul.addr %s221, 3
      %s223 = smul.addr %s219, 3
      %s224 = sadd.s32 %s222, %s223
      %s225 = smul.addr %s224, 4
      %s226 = scalar_lea.vmem %s0, %s225
      %p227 = pneg %p50
      %p228 = pneg %p47
      %p229 = scmp.lt.s32.totalorder %s19, 1
      %s230 = scalar_select %p229, %s19, 1
      %s231 = smul.addr %s230, 3
      %s232 = sadd.s32 1, %s231
      %s233 = smul.addr %s232, 4
      %s234 = scalar_lea.vmem %s1, %s233
      %p235 = pneg %p76
      %p236 = pneg %p73
      %p237 = scmp.lt.s32.totalorder %s19, 1
      %s238 = scalar_select %p237, %s19, 1
      %s239 = smul.addr %s238, 3
      %s240 = sadd.s32 2, %s239
      %s241 = smul.addr %s240, 4
      %s242 = scalar_lea.vmem %s2, %s241
      %p243 = pneg %p102
      %p244 = pneg %p99
      %p245 = scmp.lt.s32.totalorder %s19, 1
      %s246 = scalar_select %p245, %s19, 1
      %s247 = scalar_lea.vmem %s3, %s246
      %p248 = pneg %p128
      %p249 = pneg %p125
      %p250 = pneg %p156
      %p251 = pneg %p153
      %p252 = scmp.lt.s32.totalorder %s19, 1
      %s253 = scalar_select %p252, %s19, 1
      %p254 = scmp.lt.s32.totalorder %s20, 0
      %s255 = scalar_select %p254, %s20, 0
      %s256 = sadd.s32 %s255, %s253
      %s257 = smul.addr %s256, 4
      %s258 = scalar_lea.vmem %s4, %s257
      %p259 = scmp.lt.s32.totalorder %s19, 1
      %s260 = scalar_select %p259, %s19, 1
      %p261 = scmp.lt.s32.totalorder %s20, 0
      %s262 = scalar_select %p261, %s20, 0
      %s263 = smul.addr %s262, 3
      %s264 = smul.addr %s260, 3
      %s265 = sadd.s32 %s263, %s264
      %s266 = smul.addr %s265, 4
      %s267 = scalar_lea.vmem %s0, %s266
      %p268 = scmp.lt.s32.totalorder %s19, 1
      %s269 = scalar_select %p268, %s19, 1
      %s270 = smul.addr %s269, 3
      %s271 = sadd.s32 1, %s270
      %s272 = smul.addr %s271, 4
      %s273 = scalar_lea.vmem %s1, %s272
      %p274 = scmp.lt.s32.totalorder %s19, 1
      %s275 = scalar_select %p274, %s19, 1
      %s276 = smul.addr %s275, 3
      %s277 = sadd.s32 2, %s276
      %s278 = smul.addr %s277, 4
      %s279 = scalar_lea.vmem %s2, %s278
      %p280 = scmp.lt.s32.totalorder %s19, 1
      %s281 = scalar_select %p280, %s19, 1
      %s282 = scalar_lea.vmem %s3, %s281
      %p283 = scmp.lt.s32.totalorder %s19, 1
      %s284 = scalar_select %p283, %s19, 1
      %p285 = scmp.lt.s32.totalorder %s20, 0
      %s286 = scalar_select %p285, %s20, 0
      %s287 = sadd.s32 %s286, %s284
      %s288 = smul.addr %s287, 4
      %s289 = scalar_lea.vmem %s4, %s288
      %v291 = vld [vmem:[%s282] sm:$0x1]
      %v292 = vld [vmem:[%s267] sm:$0xf]
      %v293 = vld [vmem:[%s273] sm:$0xf]
      %v294 = vld [vmem:[%s279] sm:$0xf]
      %vm295 = vcmask 261120
      %v297 = vsel %vm295, %v292, 0
      %v300 = vsel %vm295, %v293, 0
      %302 = vmatprep.subr.bf16.mxu0 0
      %303 = vmatpush1.bf16.xpose.msra.mxu0 %v300
      %304 = vmatprep.subr.bf16.mxu0 0
      %305 = vmatpush1.bf16.xpose.msra.mxu0 0
      %306 = vmatprep.subr.bf16.mxu0 0
      %307 = vmatpush1.bf16.xpose.msra.mxu0 0
      %308 = vmatprep.subr.bf16.mxu0 0
      %309 = vmatpush1.bf16.xpose.msra.mxu0 0
      %310 = vmatprep.subr.bf16.mxu0 0
      %311 = vmatpush1.bf16.xpose.msra.mxu0 0
      %312 = vmatprep.subr.bf16.mxu0 0
      %313 = vmatpush1.bf16.xpose.msra.mxu0 0
      %314 = vmatprep.subr.bf16.mxu0 0
      %315 = vmatpush1.bf16.xpose.msra.mxu0 0
      %316 = vmatprep.subr.bf16.mxu0 0
      %317 = vmatpush1.bf16.xpose.msra.mxu0 0
      %318 = vmatprep.subr.bf16.mxu0 0
      %319 = vmatpush1.bf16.xpose.msra.mxu0 0
      %320 = vmatprep.subr.bf16.mxu0 0
      %321 = vmatpush1.bf16.xpose.msra.mxu0 0
      %322 = vmatprep.subr.bf16.mxu0 0
      %323 = vmatpush1.bf16.xpose.msra.mxu0 0
      %324 = vmatprep.subr.bf16.mxu0 0
      %325 = vmatpush1.bf16.xpose.msra.mxu0 0
      %326 = vmatprep.subr.bf16.mxu0 0
      %327 = vmatpush1.bf16.xpose.msra.mxu0 0
      %328 = vmatprep.subr.bf16.mxu0 0
      %329 = vmatpush1.bf16.xpose.msra.mxu0 0
      %330 = vmatprep.subr.bf16.mxu0 0
      %331 = vmatpush1.bf16.xpose.msra.mxu0 0
      %332 = vmatprep.subr.bf16.mxu0 0
      %333 = vmatpush1.bf16.xpose.msra.mxu0 0
      %334 = vmatprep.mubr.bf16.mxu0 0
      %335 = vmatmul.mubr.bf16.gmra.mrb[0].mxu0 %v297
      %v336 = vpop.f32.mrb[0].mxu0
      %v337 = vadd.f32 0.0, %v336
      %v338 = vpop.f32.mrb[0].mxu0
      %v339 = vpop.f32.mrb[0].mxu0
      %v340 = vpop.f32.mrb[0].mxu0
      %341 = vdwg.mxu0
      %v342 = vmul.f32 %v337, 0.17677669
      %v344 = vlaneseq
      %v345 = vshrl.u32 %v344, 7
      %v346 = vsub.s32 0, %v345
      %v347 = vrot.slane %v291, %v346
      %v349 = vadd.f32 %v342, %v347
      %vm350 = vcmask 64512
      %v351 = vsel %vm350, %v349, -inf
      %352 = vmax.xlane.f32.xlu0 %v351
      %v353 = vpop.xlane.xlu0 %352
      %v354 = vsub.f32 %v349, %v353
      %v355 = vmul.f32 %v354, 1.442695
      %v356 = vpow.pop %v355
      %v357 = vsel %vm350, %v356, 0.0
      %358 = vadd.xlane.f32.xlu0 %v357
      %v359 = vpop.xlane.xlu0 %358
      %v360 = vrcp.pop %v359
      %v361 = vmul.f32 %v356, %v360
      %v362 = vpack.c.bf16 %v361, %v361
      %v364 = vsel %vm350, %v362, 0
      %vm366 = vcmask 1043456
      %v368 = vsel %vm366, %v294, 0
      %370 = vmatprep.subr.bf16.mxu0 0
      %371 = vmatpush1.bf16.msra.mxu0 %v368
      %372 = vmatprep.subr.bf16.mxu0 0
      %373 = vmatpush1.bf16.msra.mxu0 0
      %374 = vmatprep.subr.bf16.mxu0 0
      %375 = vmatpush1.bf16.msra.mxu0 0
      %376 = vmatprep.subr.bf16.mxu0 0
      %377 = vmatpush1.bf16.msra.mxu0 0
      %378 = vmatprep.subr.bf16.mxu0 0
      %379 = vmatpush1.bf16.msra.mxu0 0
      %380 = vmatprep.subr.bf16.mxu0 0
      %381 = vmatpush1.bf16.msra.mxu0 0
      %382 = vmatprep.subr.bf16.mxu0 0
      %383 = vmatpush1.bf16.msra.mxu0 0
      %384 = vmatprep.subr.bf16.mxu0 0
      %385 = vmatpush1.bf16.msra.mxu0 0
      %386 = vmatprep.subr.bf16.mxu0 0
      %387 = vmatpush1.bf16.msra.mxu0 0
      %388 = vmatprep.subr.bf16.mxu0 0
      %389 = vmatpush1.bf16.msra.mxu0 0
      %390 = vmatprep.subr.bf16.mxu0 0
      %391 = vmatpush1.bf16.msra.mxu0 0
      %392 = vmatprep.subr.bf16.mxu0 0
      %393 = vmatpush1.bf16.msra.mxu0 0
      %394 = vmatprep.subr.bf16.mxu0 0
      %395 = vmatpush1.bf16.msra.mxu0 0
      %396 = vmatprep.subr.bf16.mxu0 0
      %397 = vmatpush1.bf16.msra.mxu0 0
      %398 = vmatprep.subr.bf16.mxu0 0
      %399 = vmatpush1.bf16.msra.mxu0 0
      %400 = vmatprep.subr.bf16.mxu0 0
      %401 = vmatpush1.bf16.msra.mxu0 0
      %402 = vmatprep.mubr.bf16.mxu0 0
      %403 = vmatmul.mubr.bf16.gmra.mrb[0].mxu0 %v364
      %v404 = vpop.f32.mrb[0].mxu0
      %v405 = vadd.f32 0.0, %v404
      %v406 = vpop.f32.mrb[0].mxu0
      %v407 = vpop.f32.mrb[0].mxu0
      %v408 = vpop.f32.mrb[0].mxu0
      %409 = vdwg.mxu0
      %v411 = vunpack.c.l.b16 %v292
      %v412 = vpack.c.b16 %v411, %v411
      %413 = vrot.lane.b32.xlu0 %v412, 96
      %v414 = vpop.permute.xlu0 %413
      %v416 = vunpack.c.l.b16 %v293
      %v417 = vpack.c.b16 %v416, %v416
      %418 = vrot.lane.b32.xlu0 %v417, 96
      %v419 = vpop.permute.xlu0 %418
      %v421 = vsel %vm295, %v414, 0
      %v424 = vsel %vm295, %v419, 0
      %426 = vmatprep.subr.bf16.mxu0 0
      %427 = vmatpush1.bf16.xpose.msra.mxu0 %v424
      %428 = vmatprep.subr.bf16.mxu0 0
      %429 = vmatpush1.bf16.xpose.msra.mxu0 0
      %430 = vmatprep.subr.bf16.mxu0 0
      %431 = vmatpush1.bf16.xpose.msra.mxu0 0
      %432 = vmatprep.subr.bf16.mxu0 0
      %433 = vmatpush1.bf16.xpose.msra.mxu0 0
      %434 = vmatprep.subr.bf16.mxu0 0
      %435 = vmatpush1.bf16.xpose.msra.mxu0 0
      %436 = vmatprep.subr.bf16.mxu0 0
      %437 = vmatpush1.bf16.xpose.msra.mxu0 0
      %438 = vmatprep.subr.bf16.mxu0 0
      %439 = vmatpush1.bf16.xpose.msra.mxu0 0
      %440 = vmatprep.subr.bf16.mxu0 0
      %441 = vmatpush1.bf16.xpose.msra.mxu0 0
      %442 = vmatprep.subr.bf16.mxu0 0
      %443 = vmatpush1.bf16.xpose.msra.mxu0 0
      %444 = vmatprep.subr.bf16.mxu0 0
      %445 = vmatpush1.bf16.xpose.msra.mxu0 0
      %446 = vmatprep.subr.bf16.mxu0 0
      %447 = vmatpush1.bf16.xpose.msra.mxu0 0
      %448 = vmatprep.subr.bf16.mxu0 0
      %449 = vmatpush1.bf16.xpose.msra.mxu0 0
      %450 = vmatprep.subr.bf16.mxu0 0
      %451 = vmatpush1.bf16.xpose.msra.mxu0 0
      %452 = vmatprep.subr.bf16.mxu0 0
      %453 = vmatpush1.bf16.xpose.msra.mxu0 0
      %454 = vmatprep.subr.bf16.mxu0 0
      %455 = vmatpush1.bf16.xpose.msra.mxu0 0
      %456 = vmatprep.subr.bf16.mxu0 0
      %457 = vmatpush1.bf16.xpose.msra.mxu0 0
      %458 = vmatprep.mubr.bf16.mxu0 0
      %459 = vmatmul.mubr.bf16.gmra.mrb[0].mxu0 %v421
      %v460 = vpop.f32.mrb[0].mxu0
      %v461 = vadd.f32 0.0, %v460
      %v462 = vpop.f32.mrb[0].mxu0
      %v463 = vpop.f32.mrb[0].mxu0
      %v464 = vpop.f32.mrb[0].mxu0
      %465 = vdwg.mxu0
      %v466 = vmul.f32 %v461, 0.17677669
      %v467 = vadd.f32 %v466, %v347
      %v468 = vsel %vm350, %v467, -inf
      %469 = vmax.xlane.f32.xlu0 %v468
      %v470 = vpop.xlane.xlu0 %469
      %v471 = vsub.f32 %v467, %v470
      %v472 = vmul.f32 %v471, 1.442695
      %v473 = vpow.pop %v472
      %v474 = vsel %vm350, %v473, 0.0
      %475 = vadd.xlane.f32.xlu0 %v474
      %v476 = vpop.xlane.xlu0 %475
      %v477 = vrcp.pop %v476
      %v478 = vmul.f32 %v473, %v477
      %v479 = vpack.c.bf16 %v478, %v478
      %v481 = vunpack.c.l.b16 %v294
      %v482 = vpack.c.b16 %v481, %v481
      %483 = vrot.lane.b32.xlu0 %v482, 96
      %v484 = vpop.permute.xlu0 %483
      %v486 = vsel %vm350, %v479, 0
      %v489 = vsel %vm366, %v484, 0
      %491 = vmatprep.subr.bf16.mxu0 0
      %492 = vmatpush1.bf16.msra.mxu0 %v489
      %493 = vmatprep.subr.bf16.mxu0 0
      %494 = vmatpush1.bf16.msra.mxu0 0
      %495 = vmatprep.subr.bf16.mxu0 0
      %496 = vmatpush1.bf16.msra.mxu0 0
      %497 = vmatprep.subr.bf16.mxu0 0
      %498 = vmatpush1.bf16.msra.mxu0 0
      %499 = vmatprep.subr.bf16.mxu0 0
      %500 = vmatpush1.bf16.msra.mxu0 0
      %501 = vmatprep.subr.bf16.mxu0 0
      %502 = vmatpush1.bf16.msra.mxu0 0
      %503 = vmatprep.subr.bf16.mxu0 0
      %504 = vmatpush1.bf16.msra.mxu0 0
      %505 = vmatprep.subr.bf16.mxu0 0
      %506 = vmatpush1.bf16.msra.mxu0 0
      %507 = vmatprep.subr.bf16.mxu0 0
      %508 = vmatpush1.bf16.msra.mxu0 0
      %509 = vmatprep.subr.bf16.mxu0 0
      %510 = vmatpush1.bf16.msra.mxu0 0
      %511 = vmatprep.subr.bf16.mxu0 0
      %512 = vmatpush1.bf16.msra.mxu0 0
      %513 = vmatprep.subr.bf16.mxu0 0
      %514 = vmatpush1.bf16.msra.mxu0 0
      %515 = vmatprep.subr.bf16.mxu0 0
      %516 = vmatpush1.bf16.msra.mxu0 0
      %517 = vmatprep.subr.bf16.mxu0 0
      %518 = vmatpush1.bf16.msra.mxu0 0
      %519 = vmatprep.subr.bf16.mxu0 0
      %520 = vmatpush1.bf16.msra.mxu0 0
      %521 = vmatprep.subr.bf16.mxu0 0
      %522 = vmatpush1.bf16.msra.mxu0 0
      %523 = vmatprep.mubr.bf16.mxu0 0
      %524 = vmatmul.mubr.bf16.gmra.mrb[0].mxu0 %v486
      %v525 = vpop.f32.mrb[0].mxu0
      %v526 = vadd.f32 0.0, %v525
      %v527 = vpop.f32.mrb[0].mxu0
      %v528 = vpop.f32.mrb[0].mxu0
      %v529 = vpop.f32.mrb[0].mxu0
      %530 = vdwg.mxu0
      %531 = vrot.lane.b32.xlu0 %v412, 64
      %v532 = vpop.permute.xlu0 %531
      %533 = vrot.lane.b32.xlu0 %v417, 64
      %v534 = vpop.permute.xlu0 %533
      %v536 = vsel %vm295, %v532, 0
      %v539 = vsel %vm295, %v534, 0
      %541 = vmatprep.subr.bf16.mxu0 0
      %542 = vmatpush1.bf16.xpose.msra.mxu0 %v539
      %543 = vmatprep.subr.bf16.mxu0 0
      %544 = vmatpush1.bf16.xpose.msra.mxu0 0
      %545 = vmatprep.subr.bf16.mxu0 0
      %546 = vmatpush1.bf16.xpose.msra.mxu0 0
      %547 = vmatprep.subr.bf16.mxu0 0
      %548 = vmatpush1.bf16.xpose.msra.mxu0 0
      %549 = vmatprep.subr.bf16.mxu0 0
      %550 = vmatpush1.bf16.xpose.msra.mxu0 0
      %551 = vmatprep.subr.bf16.mxu0 0
      %552 = vmatpush1.bf16.xpose.msra.mxu0 0
      %553 = vmatprep.subr.bf16.mxu0 0
      %554 = vmatpush1.bf16.xpose.msra.mxu0 0
      %555 = vmatprep.subr.bf16.mxu0 0
      %556 = vmatpush1.bf16.xpose.msra.mxu0 0
      %557 = vmatprep.subr.bf16.mxu0 0
      %558 = vmatpush1.bf16.xpose.msra.mxu0 0
      %559 = vmatprep.subr.bf16.mxu0 0
      %560 = vmatpush1.bf16.xpose.msra.mxu0 0
      %561 = vmatprep.subr.bf16.mxu0 0
      %562 = vmatpush1.bf16.xpose.msra.mxu0 0
      %563 = vmatprep.subr.bf16.mxu0 0
      %564 = vmatpush1.bf16.xpose.msra.mxu0 0
      %565 = vmatprep.subr.bf16.mxu0 0
      %566 = vmatpush1.bf16.xpose.msra.mxu0 0
      %567 = vmatprep.subr.bf16.mxu0 0
      %568 = vmatpush1.bf16.xpose.msra.mxu0 0
      %569 = vmatprep.subr.bf16.mxu0 0
      %570 = vmatpush1.bf16.xpose.msra.mxu0 0
      %571 = vmatprep.subr.bf16.mxu0 0
      %572 = vmatpush1.bf16.xpose.msra.mxu0 0
      %573 = vmatprep.mubr.bf16.mxu0 0
      %574 = vmatmul.mubr.bf16.gmra.mrb[0].mxu0 %v536
      %v575 = vpop.f32.mrb[0].mxu0
      %v576 = vadd.f32 0.0, %v575
      %v577 = vpop.f32.mrb[0].mxu0
      %v578 = vpop.f32.mrb[0].mxu0
      %v579 = vpop.f32.mrb[0].mxu0
      %580 = vdwg.mxu0
      %v581 = vmul.f32 %v576, 0.17677669
      %v582 = vadd.f32 %v581, %v347
      %v583 = vsel %vm350, %v582, -inf
      %584 = vmax.xlane.f32.xlu0 %v583
      %v585 = vpop.xlane.xlu0 %584
      %v586 = vsub.f32 %v582, %v585
      %v587 = vmul.f32 %v586, 1.442695
      %v588 = vpow.pop %v587
      %v589 = vsel %vm350, %v588, 0.0
      %590 = vadd.xlane.f32.xlu0 %v589
      %v591 = vpop.xlane.xlu0 %590
      %v592 = vrcp.pop %v591
      %v593 = vmul.f32 %v588, %v592
      %v594 = vpack.c.bf16 %v593, %v593
      %595 = vrot.lane.b32.xlu0 %v482, 64
      %v596 = vpop.permute.xlu0 %595
      %v598 = vsel %vm350, %v594, 0
      %v601 = vsel %vm366, %v596, 0
      %603 = vmatprep.subr.bf16.mxu0 0
      %604 = vmatpush1.bf16.msra.mxu0 %v601
      %605 = vmatprep.subr.bf16.mxu0 0
      %606 = vmatpush1.bf16.msra.mxu0 0
      %607 = vmatprep.subr.bf16.mxu0 0
      %608 = vmatpush1.bf16.msra.mxu0 0
      %609 = vmatprep.subr.bf16.mxu0 0
      %610 = vmatpush1.bf16.msra.mxu0 0
      %611 = vmatprep.subr.bf16.mxu0 0
      %612 = vmatpush1.bf16.msra.mxu0 0
      %613 = vmatprep.subr.bf16.mxu0 0
      %614 = vmatpush1.bf16.msra.mxu0 0
      %615 = vmatprep.subr.bf16.mxu0 0
      %616 = vmatpush1.bf16.msra.mxu0 0
      %617 = vmatprep.subr.bf16.mxu0 0
      %618 = vmatpush1.bf16.msra.mxu0 0
      %619 = vmatprep.subr.bf16.mxu0 0
      %620 = vmatpush1.bf16.msra.mxu0 0
      %621 = vmatprep.subr.bf16.mxu0 0
      %622 = vmatpush1.bf16.msra.mxu0 0
      %623 = vmatprep.subr.bf16.mxu0 0
      %624 = vmatpush1.bf16.msra.mxu0 0
      %625 = vmatprep.subr.bf16.mxu0 0
      %626 = vmatpush1.bf16.msra.mxu0 0
      %627 = vmatprep.subr.bf16.mxu0 0
      %628 = vmatpush1.bf16.msra.mxu0 0
      %629 = vmatprep.subr.bf16.mxu0 0
      %630 = vmatpush1.bf16.msra.mxu0 0
      %631 = vmatprep.subr.bf16.mxu0 0
      %632 = vmatpush1.bf16.msra.mxu0 0
      %633 = vmatprep.subr.bf16.mxu0 0
      %634 = vmatpush1.bf16.msra.mxu0 0
      %635 = vmatprep.mubr.bf16.mxu0 0
      %636 = vmatmul.mubr.bf16.gmra.mrb[0].mxu0 %v598
      %v637 = vpop.f32.mrb[0].mxu0
      %v638 = vadd.f32 0.0, %v637
      %v639 = vpop.f32.mrb[0].mxu0
      %v640 = vpop.f32.mrb[0].mxu0
      %v641 = vpop.f32.mrb[0].mxu0
      %642 = vdwg.mxu0
      %643 = vrot.lane.b32.xlu0 %v412, 32
      %v644 = vpop.permute.xlu0 %643
      %645 = vrot.lane.b32.xlu0 %v417, 32
      %v646 = vpop.permute.xlu0 %645
      %v648 = vsel %vm295, %v644, 0
      %v651 = vsel %vm295, %v646, 0
      %653 = vmatprep.subr.bf16.mxu0 0
      %654 = vmatpush1.bf16.xpose.msra.mxu0 %v651
      %655 = vmatprep.subr.bf16.mxu0 0
      %656 = vmatpush1.bf16.xpose.msra.mxu0 0
      %657 = vmatprep.subr.bf16.mxu0 0
      %658 = vmatpush1.bf16.xpose.msra.mxu0 0
      %659 = vmatprep.subr.bf16.mxu0 0
      %660 = vmatpush1.bf16.xpose.msra.mxu0 0
      %661 = vmatprep.subr.bf16.mxu0 0
      %662 = vmatpush1.bf16.xpose.msra.mxu0 0
      %663 = vmatprep.subr.bf16.mxu0 0
      %664 = vmatpush1.bf16.xpose.msra.mxu0 0
      %665 = vmatprep.subr.bf16.mxu0 0
      %666 = vmatpush1.bf16.xpose.msra.mxu0 0
      %667 = vmatprep.subr.bf16.mxu0 0
      %668 = vmatpush1.bf16.xpose.msra.mxu0 0
      %669 = vmatprep.subr.bf16.mxu0 0
      %670 = vmatpush1.bf16.xpose.msra.mxu0 0
      %671 = vmatprep.subr.bf16.mxu0 0
      %672 = vmatpush1.bf16.xpose.msra.mxu0 0
      %673 = vmatprep.subr.bf16.mxu0 0
      %674 = vmatpush1.bf16.xpose.msra.mxu0 0
      %675 = vmatprep.subr.bf16.mxu0 0
      %676 = vmatpush1.bf16.xpose.msra.mxu0 0
      %677 = vmatprep.subr.bf16.mxu0 0
      %678 = vmatpush1.bf16.xpose.msra.mxu0 0
      %679 = vmatprep.subr.bf16.mxu0 0
      %680 = vmatpush1.bf16.xpose.msra.mxu0 0
      %681 = vmatprep.subr.bf16.mxu0 0
      %682 = vmatpush1.bf16.xpose.msra.mxu0 0
      %683 = vmatprep.subr.bf16.mxu0 0
      %684 = vmatpush1.bf16.xpose.msra.mxu0 0
      %685 = vmatprep.mubr.bf16.mxu0 0
      %686 = vmatmul.mubr.bf16.gmra.mrb[0].mxu0 %v648
      %v687 = vpop.f32.mrb[0].mxu0
      %v688 = vadd.f32 0.0, %v687
      %v689 = vpop.f32.mrb[0].mxu0
      %v690 = vpop.f32.mrb[0].mxu0
      %v691 = vpop.f32.mrb[0].mxu0
      %692 = vdwg.mxu0
      %v693 = vmul.f32 %v688, 0.17677669
      %v694 = vadd.f32 %v693, %v347
      %v695 = vsel %vm350, %v694, -inf
      %696 = vmax.xlane.f32.xlu0 %v695
      %v697 = vpop.xlane.xlu0 %696
      %v698 = vsub.f32 %v694, %v697
      %v699 = vmul.f32 %v698, 1.442695
      %v700 = vpow.pop %v699
      %v701 = vsel %vm350, %v700, 0.0
      %702 = vadd.xlane.f32.xlu0 %v701
      %v703 = vpop.xlane.xlu0 %702
      %v704 = vrcp.pop %v703
      %v705 = vmul.f32 %v700, %v704
      %v706 = vpack.c.bf16 %v705, %v705
      %707 = vrot.lane.b32.xlu0 %v482, 32
      %v708 = vpop.permute.xlu0 %707
      %v710 = vsel %vm350, %v706, 0
      %v713 = vsel %vm366, %v708, 0
      %715 = vmatprep.subr.bf16.mxu0 0
      %716 = vmatpush1.bf16.msra.mxu0 %v713
      %717 = vmatprep.subr.bf16.mxu0 0
      %718 = vmatpush1.bf16.msra.mxu0 0
      %719 = vmatprep.subr.bf16.mxu0 0
      %720 = vmatpush1.bf16.msra.mxu0 0
      %721 = vmatprep.subr.bf16.mxu0 0
      %722 = vmatpush1.bf16.msra.mxu0 0
      %723 = vmatprep.subr.bf16.mxu0 0
      %724 = vmatpush1.bf16.msra.mxu0 0
      %725 = vmatprep.subr.bf16.mxu0 0
      %726 = vmatpush1.bf16.msra.mxu0 0
      %727 = vmatprep.subr.bf16.mxu0 0
      %728 = vmatpush1.bf16.msra.mxu0 0
      %729 = vmatprep.subr.bf16.mxu0 0
      %730 = vmatpush1.bf16.msra.mxu0 0
      %731 = vmatprep.subr.bf16.mxu0 0
      %732 = vmatpush1.bf16.msra.mxu0 0
      %733 = vmatprep.subr.bf16.mxu0 0
      %734 = vmatpush1.bf16.msra.mxu0 0
      %735 = vmatprep.subr.bf16.mxu0 0
      %736 = vmatpush1.bf16.msra.mxu0 0
      %737 = vmatprep.subr.bf16.mxu0 0
      %738 = vmatpush1.bf16.msra.mxu0 0
      %739 = vmatprep.subr.bf16.mxu0 0
      %740 = vmatpush1.bf16.msra.mxu0 0
      %741 = vmatprep.subr.bf16.mxu0 0
      %742 = vmatpush1.bf16.msra.mxu0 0
      %743 = vmatprep.subr.bf16.mxu0 0
      %744 = vmatpush1.bf16.msra.mxu0 0
      %745 = vmatprep.subr.bf16.mxu0 0
      %746 = vmatpush1.bf16.msra.mxu0 0
      %747 = vmatprep.mubr.bf16.mxu0 0
      %748 = vmatmul.mubr.bf16.gmra.mrb[0].mxu0 %v710
      %v749 = vpop.f32.mrb[0].mxu0
      %v750 = vadd.f32 0.0, %v749
      %v751 = vpop.f32.mrb[0].mxu0
      %v752 = vpop.f32.mrb[0].mxu0
      %v753 = vpop.f32.mrb[0].mxu0
      %754 = vdwg.mxu0
      %756 = vrot.lane.b32.xlu0 %v526, 32
      %v757 = vpop.permute.xlu0 %756
      %760 = vrot.lane.b32.xlu0 %v638, 64
      %v761 = vpop.permute.xlu0 %760
      %764 = vrot.lane.b32.xlu0 %v750, 96
      %v765 = vpop.permute.xlu0 %764
      %v767 = vsel %vm295, %v405, %v757
      %vm768 = vcmask 523264
      %v769 = vsel %vm768, %v767, %v761
      %vm770 = vcmask 785408
      %v771 = vsel %vm770, %v769, %v765
      %v772 = vpack.c.bf16 %v771, %v771
      %773 = vst [vmem:[%s289] sm:$0xf] %v772
      %p774 = scmp.lt.s32.totalorder %s19, 1
      %s775 = scalar_select %p774, %s19, 1
      %p776 = scmp.lt.s32.totalorder %s20, 0
      %s777 = scalar_select %p776, %s20, 0
      %s778 = sadd.s32 %s777, %s775
      %s779 = smul.addr %s778, 4
      %s780 = scalar_lea.vmem %s4, %s779
      // Predicated region
      $region37: #{_lambda_.26} parent=35 // pred_check
        %p781 = pneg %p153
      $region38: #{_lambda_.26} parent=35 // pred_check_branch
        %783 = sbr.rel (%p781) target = $region40
      $region39: #{_lambda_.26} parent=35 // pred_region
        _
      $region40: #{_lambda_.26} parent=35 // pred_fallthru
        _
    $region36: #{_lambda_.26} parent=5 // pred_fallthru
      _
    %p784 = scmp.le.s32.totalorder 2, %s10
    // Predicated region
    $region41: #{_lambda_.26} parent=5 // pred_check
      %p785 = pneg %p784
    $region42: #{_lambda_.26} parent=5 // pred_check_branch
      %787 = sbr.rel (%p785) target = $region44
    $region43: #{_lambda_.26} parent=5 // pred_region
      %s788 = ssub.s32 %s10, 2
      // Predicated region
      $region45: #{_lambda_.26} parent=43 // pred_check
        %p789 = pneg %p159
      $region46: #{_lambda_.26} parent=43 // pred_check_branch
        %791 = sbr.rel (%p789) target = $region48
      $region47: #{_lambda_.26} parent=43 // pred_region
        %p792 = scmp.lt.s32.totalorder %s21, 1
        %s793 = scalar_select %p792, %s21, 1
        %p794 = scmp.lt.s32.totalorder %s22, 0
        %s795 = scalar_select %p794, %s22, 0
        %s796 = sadd.s32 %s795, %s793
        %s797 = smul.addr %s796, 4
        %s798 = scalar_lea.vmem %s4, %s797
      $region48: #{_lambda_.26} parent=43 // pred_fallthru
        _
    $region44: #{_lambda_.26} parent=5 // pred_fallthru
      _
  $region6: #{_lambda_.26} parent=0 // loop_footer
    %s14 = sadd.s32 1, %s10
  $region7: #{_lambda_.26} parent=0 // loop_footer_branch
    %9 = sbr.rel target = $region3
  $region8: #{_lambda_.26} parent=0 // loop_exit
    _

// kernel: _lambda_.35
$region0: #{_lambda_.35}
  #allocation0 [shape = 'u32[]', space=smem, size = 0x4, offset = 0x4, fixed_abs, tag = 'smem constant byte address 0x4 - core index']
  #allocation1 [shape = 'u32[144,128]{1,0:T(1,128)}', space=vmem, size = 0x12000, scoped, tag = 'internal scratch']
  %s0 = inlined_call_operand.vmem [shape: bf16[16,128], index: 0, kind: input, shape index: {}]
  %s1 = inlined_call_operand.vmem [shape: f32[1,128], index: 1, kind: input, shape index: {}]
  %s2 = inlined_call_operand.vmem [shape: f32[1,128], index: 2, kind: input, shape index: {}]
  %s3 = inlined_call_operand.vmem [shape: f32[16,128], index: 3, kind: output, shape index: {}]
  %s4 = sld [smem:[#allocation0]]
  $region22: #{_lambda_.35} parent=0
    _
  %s6 = ssub.s32 1, %s4
  %s7 = scalar_select 0, %s6, %s4
  // Predicated region
  $region2: #{_lambda_.35} parent=0 // pred_check
    _
  $region3: #{_lambda_.35} parent=0 // pred_check_branch
    %9 = sbr.rel (0) target = $region5
  $region4: #{_lambda_.35} parent=0 // pred_region
    _
  $region5: #{_lambda_.35} parent=0 // pred_fallthru
    _
  // Predicated region
  $region6: #{_lambda_.35} parent=0 // pred_check
    _
  $region7: #{_lambda_.35} parent=0 // pred_check_branch
    %11 = sbr.rel (0) target = $region9
  $region8: #{_lambda_.35} parent=0 // pred_region
    _
  $region9: #{_lambda_.35} parent=0 // pred_fallthru
    _
  // Predicated region
  $region10: #{_lambda_.35} parent=0 // pred_check
    _
  $region11: #{_lambda_.35} parent=0 // pred_check_branch
    %13 = sbr.rel (0) target = $region13
  $region12: #{_lambda_.35} parent=0 // pred_region
    _
  $region13: #{_lambda_.35} parent=0 // pred_fallthru
    _
  %v14 = vld [vmem:[%s0] sm:$0xf]
  %v15 = vld [vmem:[%s0 + $0x4] sm:$0xf]
  %v16 = vunpack.c.l.bf16 %v14
  %v17 = vunpack.c.l.bf16 %v15
  %18 = vadd.xlane.f32.xlu0 %v16
  %v19 = vpop.xlane.xlu0 %18
  %20 = vadd.xlane.f32.xlu0 %v17
  %v21 = vpop.xlane.xlu0 %20
  %v22 = vrcp.pop 128.0
  %v23 = vmul.f32 %v19, %v22
  %v24 = vmul.f32 %v21, %v22
  %v25 = vsub.f32 %v16, %v23
  %v26 = vsub.f32 %v17, %v24
  %v27 = vmul.f32 %v25, %v25
  %v28 = vmul.f32 %v26, %v26
  %29 = vadd.xlane.f32.xlu0 %v27
  %v30 = vpop.xlane.xlu0 %29
  %31 = vadd.xlane.f32.xlu0 %v28
  %v32 = vpop.xlane.xlu0 %31
  %v33 = vmul.f32 %v30, %v22
  %v34 = vmul.f32 %v32, %v22
  %v35 = vadd.f32 %v33, 1e-05
  %v36 = vadd.f32 %v34, 1e-05
  %v37 = vrsqrt.pop %v35
  %v38 = vrsqrt.pop %v36
  %v39 = vmul.f32 %v25, %v37
  %v40 = vmul.f32 %v26, %v38
  %v41 = vld [vmem:[%s1] sm:$0x1]
  %v43 = vlaneseq
  %v44 = vshrl.u32 %v43, 7
  %v45 = vsub.s32 0, %v44
  %v46 = vrot.slane %v41, %v45
  %v48 = vmul.f32 %v39, %v46
  %v49 = vmul.f32 %v40, %v46
  %v50 = vld [vmem:[%s2] sm:$0x1]
  %v52 = vlaneseq
  %v53 = vshrl.u32 %v52, 7
  %v54 = vsub.s32 0, %v53
  %v55 = vrot.slane %v50, %v54
  %v57 = vadd.f32 %v48, %v55
  %v58 = vadd.f32 %v49, %v55
  %59 = vst [vmem:[%s3] sm:$0xff] %v57
  %60 = vst [vmem:[%s3 + $0x8] sm:$0xff] %v58
  // Predicated region
  $region14: #{_lambda_.35} parent=0 // pred_check
    _
  $region15: #{_lambda_.35} parent=0 // pred_check_branch
    %62 = sbr.rel (0) target = $region17
  $region16: #{_lambda_.35} parent=0 // pred_region
    _
  $region17: #{_lambda_.35} parent=0 // pred_fallthru
    _
  // Predicated region
  $region18: #{_lambda_.35} parent=0 // pred_check
    _
  $region19: #{_lambda_.35} parent=0 // pred_check_branch
    %64 = sbr.rel (0) target = $region21
  $region20: #{_lambda_.35} parent=0 // pred_region
    _
  $region21: #{_lambda_.35} parent=0 // pred_fallthru
    _

// kernel: _lambda_.29
$region0: #{_lambda_.29}
  #allocation0 [shape = 'u32[]', space=smem, size = 0x4, offset = 0x4, fixed_abs, tag = 'smem constant byte address 0x4 - core index']
  #allocation1 [shape = 'u32[144,128]{1,0:T(1,128)}', space=vmem, size = 0x12000, scoped, tag = 'internal scratch']
  #allocation2 [shape = 'f32[16,128]{1,0:T(8,128)}', space=vmem, size = 0x2000, scoped, tag = 'scratch operand']
  %s0 = inlined_call_operand.vmem [shape: bf16[16,512], index: 0, kind: input, shape index: {}]
  %s1 = inlined_call_operand.vmem [shape: bf16[512,128], index: 1, kind: input, shape index: {}]
  %s2 = inlined_call_operand.vmem [shape: f32[1,128], index: 2, kind: input, shape index: {}]
  %s3 = inlined_call_operand.vmem [shape: bf16[16,128], index: 3, kind: input, shape index: {}]
  %s4 = inlined_call_operand.vmem [shape: f32[1,128], index: 4, kind: input, shape index: {}]
  %s5 = inlined_call_operand.vmem [shape: f32[1,128], index: 5, kind: input, shape index: {}]
  %s6 = inlined_call_operand.vmem [shape: bf16[16,128], index: 6, kind: output, shape index: {}]
  %s7 = sld [smem:[#allocation0]]
  $region42: #{_lambda_.29} parent=0
    _
  %s9 = ssub.s32 1, %s7
  %s10 = scalar_select 0, %s9, %s7
  // Predicated region
  $region2: #{_lambda_.29} parent=0 // pred_check
    _
  $region3: #{_lambda_.29} parent=0 // pred_check_branch
    %12 = sbr.rel (0) target = $region5
  $region4: #{_lambda_.29} parent=0 // pred_region
    _
  $region5: #{_lambda_.29} parent=0 // pred_fallthru
    _
  // Predicated region
  $region6: #{_lambda_.29} parent=0 // pred_check
    _
  $region7: #{_lambda_.29} parent=0 // pred_check_branch
    %14 = sbr.rel (0) target = $region9
  $region8: #{_lambda_.29} parent=0 // pred_region
    _
  $region9: #{_lambda_.29} parent=0 // pred_fallthru
    _
  // Predicated region
  $region10: #{_lambda_.29} parent=0 // pred_check
    _
  $region11: #{_lambda_.29} parent=0 // pred_check_branch
    %16 = sbr.rel (0) target = $region13
  $region12: #{_lambda_.29} parent=0 // pred_region
    _
  $region13: #{_lambda_.29} parent=0 // pred_fallthru
    _
  // Predicated region
  $region14: #{_lambda_.29} parent=0 // pred_check
    _
  $region15: #{_lambda_.29} parent=0 // pred_check_branch
    %18 = sbr.rel (0) target = $region17
  $region16: #{_lambda_.29} parent=0 // pred_region
    _
  $region17: #{_lambda_.29} parent=0 // pred_fallthru
    _
  // Predicated region
  $region18: #{_lambda_.29} parent=0 // pred_check
    _
  $region19: #{_lambda_.29} parent=0 // pred_check_branch
    %20 = sbr.rel (0) target = $region21
  $region20: #{_lambda_.29} parent=0 // pred_region
    _
  $region21: #{_lambda_.29} parent=0 // pred_fallthru
    _
  // Predicated region
  $region22: #{_lambda_.29} parent=0 // pred_check
    _
  $region23: #{_lambda_.29} parent=0 // pred_check_branch
    %22 = sbr.rel (0) target = $region25
  $region24: #{_lambda_.29} parent=0 // pred_region
    _
  $region25: #{_lambda_.29} parent=0 // pred_fallthru
    _
  %p24 = scmp.eq.s32.totalorder 0, 0
  // Predicated region
  $region26: #{_lambda_.29} parent=0 // pred_check
    %p25 = pneg %p24
  $region27: #{_lambda_.29} parent=0 // pred_check_branch
    %27 = sbr.rel (%p25) target = $region29
  $region28: #{_lambda_.29} parent=0 // pred_region
    %28 = vst [vmem:[#allocation2] sm:$0xff] 0.0
    %29 = vst [vmem:[#allocation2 + $0x8] sm:$0xff] 0.0
  $region29: #{_lambda_.29} parent=0 // pred_fallthru
    _
  %v30 = vld [vmem:[#allocation2] sm:$0xff]
  %v31 = vld [vmem:[#allocation2 + $0x8] sm:$0xff]
  %v32 = vld [vmem:[%s0] sm:$0xff]
  %v33 = vld [vmem:[%s0 + $0x8] sm:$0xff]
  %v34 = vld [vmem:[%s0 + $0x10] sm:$0xff]
  %v35 = vld [vmem:[%s0 + $0x18] sm:$0xff]
  %v36 = vld [vmem:[%s1] sm:$0xf]
  %v37 = vld [vmem:[%s1 + $0x4] sm:$0xf]
  %v38 = vld [vmem:[%s1 + $0x8] sm:$0xf]
  %v39 = vld [vmem:[%s1 + $0xc] sm:$0xf]
  %v40 = vld [vmem:[%s1 + $0x10] sm:$0xf]
  %v41 = vld [vmem:[%s1 + $0x14] sm:$0xf]
  %v42 = vld [vmem:[%s1 + $0x18] sm:$0xf]
  %v43 = vld [vmem:[%s1 + $0x1c] sm:$0xf]
  %v44 = vld [vmem:[%s1 + $0x20] sm:$0xf]
  %v45 = vld [vmem:[%s1 + $0x24] sm:$0xf]
  %v46 = vld [vmem:[%s1 + $0x28] sm:$0xf]
  %v47 = vld [vmem:[%s1 + $0x2c] sm:$0xf]
  %v48 = vld [vmem:[%s1 + $0x30] sm:$0xf]
  %v49 = vld [vmem:[%s1 + $0x34] sm:$0xf]
  %v50 = vld [vmem:[%s1 + $0x38] sm:$0xf]
  %v51 = vld [vmem:[%s1 + $0x3c] sm:$0xf]
  %v52 = vld [vmem:[%s1 + $0x40] sm:$0xf]
  %v53 = vld [vmem:[%s1 + $0x44] sm:$0xf]
  %v54 = vld [vmem:[%s1 + $0x48] sm:$0xf]
  %v55 = vld [vmem:[%s1 + $0x4c] sm:$0xf]
  %v56 = vld [vmem:[%s1 + $0x50] sm:$0xf]
  %v57 = vld [vmem:[%s1 + $0x54] sm:$0xf]
  %v58 = vld [vmem:[%s1 + $0x58] sm:$0xf]
  %v59 = vld [vmem:[%s1 + $0x5c] sm:$0xf]
  %v60 = vld [vmem:[%s1 + $0x60] sm:$0xf]
  %v61 = vld [vmem:[%s1 + $0x64] sm:$0xf]
  %v62 = vld [vmem:[%s1 + $0x68] sm:$0xf]
  %v63 = vld [vmem:[%s1 + $0x6c] sm:$0xf]
  %v64 = vld [vmem:[%s1 + $0x70] sm:$0xf]
  %v65 = vld [vmem:[%s1 + $0x74] sm:$0xf]
  %v66 = vld [vmem:[%s1 + $0x78] sm:$0xf]
  %v67 = vld [vmem:[%s1 + $0x7c] sm:$0xf]
  %v68 = vld [vmem:[%s1 + $0x80] sm:$0xf]
  %v69 = vld [vmem:[%s1 + $0x84] sm:$0xf]
  %v70 = vld [vmem:[%s1 + $0x88] sm:$0xf]
  %v71 = vld [vmem:[%s1 + $0x8c] sm:$0xf]
  %v72 = vld [vmem:[%s1 + $0x90] sm:$0xf]
  %v73 = vld [vmem:[%s1 + $0x94] sm:$0xf]
  %v74 = vld [vmem:[%s1 + $0x98] sm:$0xf]
  %v75 = vld [vmem:[%s1 + $0x9c] sm:$0xf]
  %v76 = vld [vmem:[%s1 + $0xa0] sm:$0xf]
  %v77 = vld [vmem:[%s1 + $0xa4] sm:$0xf]
  %v78 = vld [vmem:[%s1 + $0xa8] sm:$0xf]
  %v79 = vld [vmem:[%s1 + $0xac] sm:$0xf]
  %v80 = vld [vmem:[%s1 + $0xb0] sm:$0xf]
  %v81 = vld [vmem:[%s1 + $0xb4] sm:$0xf]
  %v82 = vld [vmem:[%s1 + $0xb8] sm:$0xf]
  %v83 = vld [vmem:[%s1 + $0xbc] sm:$0xf]
  %v84 = vld [vmem:[%s1 + $0xc0] sm:$0xf]
  %v85 = vld [vmem:[%s1 + $0xc4] sm:$0xf]
  %v86 = vld [vmem:[%s1 + $0xc8] sm:$0xf]
  %v87 = vld [vmem:[%s1 + $0xcc] sm:$0xf]
  %v88 = vld [vmem:[%s1 + $0xd0] sm:$0xf]
  %v89 = vld [vmem:[%s1 + $0xd4] sm:$0xf]
  %v90 = vld [vmem:[%s1 + $0xd8] sm:$0xf]
  %v91 = vld [vmem:[%s1 + $0xdc] sm:$0xf]
  %v92 = vld [vmem:[%s1 + $0xe0] sm:$0xf]
  %v93 = vld [vmem:[%s1 + $0xe4] sm:$0xf]
  %v94 = vld [vmem:[%s1 + $0xe8] sm:$0xf]
  %v95 = vld [vmem:[%s1 + $0xec] sm:$0xf]
  %v96 = vld [vmem:[%s1 + $0xf0] sm:$0xf]
  %v97 = vld [vmem:[%s1 + $0xf4] sm:$0xf]
  %v98 = vld [vmem:[%s1 + $0xf8] sm:$0xf]
  %v99 = vld [vmem:[%s1 + $0xfc] sm:$0xf]
  %v104 = vunpack.c.l.b16 %v32
  %v105 = vunpack.c.h.b16 %v32
  %v106 = vunpack.c.l.b16 %v33
  %v107 = vunpack.c.h.b16 %v33
  %v108 = vunpack.c.l.b16 %v34
  %v109 = vunpack.c.h.b16 %v34
  %v110 = vunpack.c.l.b16 %v35
  %v111 = vunpack.c.h.b16 %v35
  %v112 = vpack.c.b16 %v108, %v104
  %v113 = vpack.c.b16 %v109, %v105
  %v114 = vpack.c.b16 %v110, %v106
  %v115 = vpack.c.b16 %v111, %v107
  %v184 = vunpack.c.l.b16 %v36
  %v185 = vunpack.c.l.b16 %v37
  %v186 = vunpack.c.l.b16 %v38
  %v187 = vunpack.c.l.b16 %v39
  %v188 = vunpack.c.l.b16 %v40
  %v189 = vunpack.c.l.b16 %v41
  %v190 = vunpack.c.l.b16 %v42
  %v191 = vunpack.c.l.b16 %v43
  %v192 = vunpack.c.l.b16 %v44
  %v193 = vunpack.c.l.b16 %v45
  %v194 = vunpack.c.l.b16 %v46
  %v195 = vunpack.c.l.b16 %v47
  %v196 = vunpack.c.l.b16 %v48
  %v197 = vunpack.c.l.b16 %v49
  %v198 = vunpack.c.l.b16 %v50
  %v199 = vunpack.c.l.b16 %v51
  %v200 = vunpack.c.l.b16 %v52
  %v201 = vunpack.c.l.b16 %v53
  %v202 = vunpack.c.l.b16 %v54
  %v203 = vunpack.c.l.b16 %v55
  %v204 = vunpack.c.l.b16 %v56
  %v205 = vunpack.c.l.b16 %v57
  %v206 = vunpack.c.l.b16 %v58
  %v207 = vunpack.c.l.b16 %v59
  %v208 = vunpack.c.l.b16 %v60
  %v209 = vunpack.c.l.b16 %v61
  %v210 = vunpack.c.l.b16 %v62
  %v211 = vunpack.c.l.b16 %v63
  %v212 = vunpack.c.l.b16 %v64
  %v213 = vunpack.c.l.b16 %v65
  %v214 = vunpack.c.l.b16 %v66
  %v215 = vunpack.c.l.b16 %v67
  %v216 = vunpack.c.l.b16 %v68
  %v217 = vunpack.c.l.b16 %v69
  %v218 = vunpack.c.l.b16 %v70
  %v219 = vunpack.c.l.b16 %v71
  %v220 = vunpack.c.l.b16 %v72
  %v221 = vunpack.c.l.b16 %v73
  %v222 = vunpack.c.l.b16 %v74
  %v223 = vunpack.c.l.b16 %v75
  %v224 = vunpack.c.l.b16 %v76
  %v225 = vunpack.c.l.b16 %v77
  %v226 = vunpack.c.l.b16 %v78
  %v227 = vunpack.c.l.b16 %v79
  %v228 = vunpack.c.l.b16 %v80
  %v229 = vunpack.c.l.b16 %v81
  %v230 = vunpack.c.l.b16 %v82
  %v231 = vunpack.c.l.b16 %v83
  %v232 = vunpack.c.l.b16 %v84
  %v233 = vunpack.c.l.b16 %v85
  %v234 = vunpack.c.l.b16 %v86
  %v235 = vunpack.c.l.b16 %v87
  %v236 = vunpack.c.l.b16 %v88
  %v237 = vunpack.c.l.b16 %v89
  %v238 = vunpack.c.l.b16 %v90
  %v239 = vunpack.c.l.b16 %v91
  %v240 = vunpack.c.l.b16 %v92
  %v241 = vunpack.c.l.b16 %v93
  %v242 = vunpack.c.l.b16 %v94
  %v243 = vunpack.c.l.b16 %v95
  %v244 = vunpack.c.l.b16 %v96
  %v245 = vunpack.c.l.b16 %v97
  %v246 = vunpack.c.l.b16 %v98
  %v247 = vunpack.c.l.b16 %v99
  %v248 = vpack.c.b16 %v185, %v184
  %v249 = vpack.c.b16 %v187, %v186
  %v250 = vpack.c.b16 %v189, %v188
  %v251 = vpack.c.b16 %v191, %v190
  %v252 = vpack.c.b16 %v193, %v192
  %v253 = vpack.c.b16 %v195, %v194
  %v254 = vpack.c.b16 %v197, %v196
  %v255 = vpack.c.b16 %v199, %v198
  %v256 = vpack.c.b16 %v201, %v200
  %v257 = vpack.c.b16 %v203, %v202
  %v258 = vpack.c.b16 %v205, %v204
  %v259 = vpack.c.b16 %v207, %v206
  %v260 = vpack.c.b16 %v209, %v208
  %v261 = vpack.c.b16 %v211, %v210
  %v262 = vpack.c.b16 %v213, %v212
  %v263 = vpack.c.b16 %v215, %v214
  %v264 = vpack.c.b16 %v217, %v216
  %v265 = vpack.c.b16 %v219, %v218
  %v266 = vpack.c.b16 %v221, %v220
  %v267 = vpack.c.b16 %v223, %v222
  %v268 = vpack.c.b16 %v225, %v224
  %v269 = vpack.c.b16 %v227, %v226
  %v270 = vpack.c.b16 %v229, %v228
  %v271 = vpack.c.b16 %v231, %v230
  %v272 = vpack.c.b16 %v233, %v232
  %v273 = vpack.c.b16 %v235, %v234
  %v274 = vpack.c.b16 %v237, %v236
  %v275 = vpack.c.b16 %v239, %v238
  %v276 = vpack.c.b16 %v241, %v240
  %v277 = vpack.c.b16 %v243, %v242
  %v278 = vpack.c.b16 %v245, %v244
  %v279 = vpack.c.b16 %v247, %v246
  %312 = vmatprep.subr.bf16.mxu0 0
  %313 = vmatpush1.bf16.msra.mxu0 %v248
  %314 = vmatprep.subr.bf16.mxu0 0
  %315 = vmatpush1.bf16.msra.mxu0 %v249
  %316 = vmatprep.subr.bf16.mxu0 0
  %317 = vmatpush1.bf16.msra.mxu0 %v250
  %318 = vmatprep.subr.bf16.mxu0 0
  %319 = vmatpush1.bf16.msra.mxu0 %v251
  %320 = vmatprep.subr.bf16.mxu0 0
  %321 = vmatpush1.bf16.msra.mxu0 %v252
  %322 = vmatprep.subr.bf16.mxu0 0
  %323 = vmatpush1.bf16.msra.mxu0 %v253
  %324 = vmatprep.subr.bf16.mxu0 0
  %325 = vmatpush1.bf16.msra.mxu0 %v254
  %326 = vmatprep.subr.bf16.mxu0 0
  %327 = vmatpush1.bf16.msra.mxu0 %v255
  %328 = vmatprep.subr.bf16.mxu0 0
  %329 = vmatpush1.bf16.msra.mxu0 %v256
  %330 = vmatprep.subr.bf16.mxu0 0
  %331 = vmatpush1.bf16.msra.mxu0 %v257
  %332 = vmatprep.subr.bf16.mxu0 0
  %333 = vmatpush1.bf16.msra.mxu0 %v258
  %334 = vmatprep.subr.bf16.mxu0 0
  %335 = vmatpush1.bf16.msra.mxu0 %v259
  %336 = vmatprep.subr.bf16.mxu0 0
  %337 = vmatpush1.bf16.msra.mxu0 %v260
  %338 = vmatprep.subr.bf16.mxu0 0
  %339 = vmatpush1.bf16.msra.mxu0 %v261
  %340 = vmatprep.subr.bf16.mxu0 0
  %341 = vmatpush1.bf16.msra.mxu0 %v262
  %342 = vmatprep.subr.bf16.mxu0 0
  %343 = vmatpush1.bf16.msra.mxu0 %v263
  %344 = vmatprep.mubr.bf16.mxu0 %v113
  %345 = vmatmul.mubr.bf16.gmra.mrb[0].mxu0 %v112
  %v346 = vpop.f32.mrb[0].mxu0
  %v347 = vadd.f32 0.0, %v346
  %v348 = vpop.f32.mrb[0].mxu0
  %v349 = vpop.f32.mrb[0].mxu0
  %v350 = vadd.f32 0.0, %v349
  %v351 = vpop.f32.mrb[0].mxu0
  %352 = vdwg.mxu0
  %353 = vmatprep.subr.bf16.mxu0 0
  %354 = vmatpush1.bf16.msra.mxu0 %v264
  %355 = vmatprep.subr.bf16.mxu0 0
  %356 = vmatpush1.bf16.msra.mxu0 %v265
  %357 = vmatprep.subr.bf16.mxu0 0
  %358 = vmatpush1.bf16.msra.mxu0 %v266
  %359 = vmatprep.subr.bf16.mxu0 0
  %360 = vmatpush1.bf16.msra.mxu0 %v267
  %361 = vmatprep.subr.bf16.mxu0 0
  %362 = vmatpush1.bf16.msra.mxu0 %v268
  %363 = vmatprep.subr.bf16.mxu0 0
  %364 = vmatpush1.bf16.msra.mxu0 %v269
  %365 = vmatprep.subr.bf16.mxu0 0
  %366 = vmatpush1.bf16.msra.mxu0 %v270
  %367 = vmatprep.subr.bf16.mxu0 0
  %368 = vmatpush1.bf16.msra.mxu0 %v271
  %369 = vmatprep.subr.bf16.mxu0 0
  %370 = vmatpush1.bf16.msra.mxu0 %v272
  %371 = vmatprep.subr.bf16.mxu0 0
  %372 = vmatpush1.bf16.msra.mxu0 %v273
  %373 = vmatprep.subr.bf16.mxu0 0
  %374 = vmatpush1.bf16.msra.mxu0 %v274
  %375 = vmatprep.subr.bf16.mxu0 0
  %376 = vmatpush1.bf16.msra.mxu0 %v275
  %377 = vmatprep.subr.bf16.mxu0 0
  %378 = vmatpush1.bf16.msra.mxu0 %v276
  %379 = vmatprep.subr.bf16.mxu0 0
  %380 = vmatpush1.bf16.msra.mxu0 %v277
  %381 = vmatprep.subr.bf16.mxu0 0
  %382 = vmatpush1.bf16.msra.mxu0 %v278
  %383 = vmatprep.subr.bf16.mxu0 0
  %384 = vmatpush1.bf16.msra.mxu0 %v279
  %385 = vmatprep.mubr.bf16.mxu0 %v115
  %386 = vmatmul.mubr.bf16.gmra.mrb[0].mxu0 %v114
  %v387 = vpop.f32.mrb[0].mxu0
  %v388 = vadd.f32 %v347, %v387
  %v389 = vpop.f32.mrb[0].mxu0
  %v390 = vpop.f32.mrb[0].mxu0
  %v391 = vadd.f32 %v350, %v390
  %v392 = vpop.f32.mrb[0].mxu0
  %393 = vdwg.mxu0
  %v394 = vadd.f32 %v30, %v388
  %v395 = vadd.f32 %v31, %v391
  %396 = vst [vmem:[#allocation2] sm:$0xff] %v394
  %397 = vst [vmem:[#allocation2 + $0x8] sm:$0xff] %v395
  // Predicated region
  $region30: #{_lambda_.29} parent=0 // pred_check
    %p398 = pneg %p24
  $region31: #{_lambda_.29} parent=0 // pred_check_branch
    %400 = sbr.rel (%p398) target = $region33
  $region32: #{_lambda_.29} parent=0 // pred_region
    %v401 = vld [vmem:[#allocation2] sm:$0xff]
    %v402 = vld [vmem:[#allocation2 + $0x8] sm:$0xff]
    %v403 = vld [vmem:[%s2] sm:$0x1]
    %v405 = vlaneseq
    %v406 = vshrl.u32 %v405, 7
    %v407 = vsub.s32 0, %v406
    %v408 = vrot.slane %v403, %v407
    %v410 = vadd.f32 %v401, %v408
    %v411 = vadd.f32 %v402, %v408
    %v412 = vld [vmem:[%s3] sm:$0xf]
    %v413 = vld [vmem:[%s3 + $0x4] sm:$0xf]
    %v414 = vunpack.c.l.bf16 %v412
    %v415 = vunpack.c.l.bf16 %v413
    %v416 = vadd.f32 %v410, %v414
    %v417 = vadd.f32 %v411, %v415
    %418 = vadd.xlane.f32.xlu0 %v416
    %v419 = vpop.xlane.xlu0 %418
    %420 = vadd.xlane.f32.xlu0 %v417
    %v421 = vpop.xlane.xlu0 %420
    %v422 = vrcp.pop 128.0
    %v423 = vmul.f32 %v419, %v422
    %v424 = vmul.f32 %v421, %v422
    %v425 = vsub.f32 %v416, %v423
    %v426 = vsub.f32 %v417, %v424
    %v427 = vmul.f32 %v425, %v425
    %v428 = vmul.f32 %v426, %v426
    %429 = vadd.xlane.f32.xlu0 %v427
    %v430 = vpop.xlane.xlu0 %429
    %431 = vadd.xlane.f32.xlu0 %v428
    %v432 = vpop.xlane.xlu0 %431
    %v433 = vmul.f32 %v430, %v422
    %v434 = vmul.f32 %v432, %v422
    %v435 = vadd.f32 %v433, 1e-05
    %v436 = vadd.f32 %v434, 1e-05
    %v437 = vrsqrt.pop %v435
    %v438 = vrsqrt.pop %v436
    %v439 = vmul.f32 %v425, %v437
    %v440 = vmul.f32 %v426, %v438
    %v441 = vld [vmem:[%s4] sm:$0x1]
    %v443 = vlaneseq
    %v444 = vshrl.u32 %v443, 7
    %v445 = vsub.s32 0, %v444
    %v446 = vrot.slane %v441, %v445
    %v448 = vmul.f32 %v439, %v446
    %v449 = vmul.f32 %v440, %v446
    %v450 = vld [vmem:[%s5] sm:$0x1]
    %v452 = vlaneseq
    %v453 = vshrl.u32 %v452, 7
    %v454 = vsub.s32 0, %v453
    %v455 = vrot.slane %v450, %v454
    %v457 = vadd.f32 %v448, %v455
    %v458 = vadd.f32 %v449, %v455
    %v459 = vpack.c.bf16 %v458, %v457
    %v461 = vunpack.c.l.b16 %v459
    %v462 = vunpack.c.h.b16 %v459
    %v463 = vpack.c.b16 %v461, %v461
    %v464 = vpack.c.b16 %v462, %v462
    %467 = vst [vmem:[%s6] sm:$0xf] %v463
    %468 = vst [vmem:[%s6 + $0x4] sm:$0xf] %v464
  $region33: #{_lambda_.29} parent=0 // pred_fallthru
    _
  // Predicated region
  $region34: #{_lambda_.29} parent=0 // pred_check
    _
  $region35: #{_lambda_.29} parent=0 // pred_check_branch
    %470 = sbr.rel (0) target = $region37
  $region36: #{_lambda_.29} parent=0 // pred_region
    _
  $region37: #{_lambda_.29} parent=0 // pred_fallthru
    _
  // Predicated region
  $region38: #{_lambda_.29} parent=0 // pred_check
    _
  $region39: #{_lambda_.29} parent=0 // pred_check_branch
    %472 = sbr.rel (0) target = $region41
  $region40: #{_lambda_.29} parent=0 // pred_region
    _
  $region41: #{_lambda_.29} parent=0 // pred_fallthru
    _

// kernel: _lambda_.37
$region0: #{_lambda_.37}
  #allocation0 [shape = 'u32[]', space=smem, size = 0x4, offset = 0x4, fixed_abs, tag = 'smem constant byte address 0x4 - core index']
  #allocation1 [shape = 'u32[144,128]{1,0:T(1,128)}', space=vmem, size = 0x12000, scoped, tag = 'internal scratch']
  #allocation2 [shape = 'f32[16,64]{1,0:T(8,128)}', space=vmem, size = 0x2000, scoped, tag = 'scratch operand']
  %s0 = inlined_call_operand.vmem [shape: f32[16,128], index: 0, kind: input, shape index: {}]
  %s1 = inlined_call_operand.vmem [shape: bf16[128,64], index: 1, kind: input, shape index: {}]
  %s2 = inlined_call_operand.vmem [shape: f32[1,64], index: 2, kind: input, shape index: {}]
  %s3 = inlined_call_operand.vmem [shape: bf16[16,64], index: 3, kind: output, shape index: {}]
  %s4 = sld [smem:[#allocation0]]
  $region30: #{_lambda_.37} parent=0
    _
  %s6 = ssub.s32 1, %s4
  %s7 = scalar_select 0, %s6, %s4
  // Predicated region
  $region2: #{_lambda_.37} parent=0 // pred_check
    _
  $region3: #{_lambda_.37} parent=0 // pred_check_branch
    %9 = sbr.rel (0) target = $region5
  $region4: #{_lambda_.37} parent=0 // pred_region
    _
  $region5: #{_lambda_.37} parent=0 // pred_fallthru
    _
  // Predicated region
  $region6: #{_lambda_.37} parent=0 // pred_check
    _
  $region7: #{_lambda_.37} parent=0 // pred_check_branch
    %11 = sbr.rel (0) target = $region9
  $region8: #{_lambda_.37} parent=0 // pred_region
    _
  $region9: #{_lambda_.37} parent=0 // pred_fallthru
    _
  // Predicated region
  $region10: #{_lambda_.37} parent=0 // pred_check
    _
  $region11: #{_lambda_.37} parent=0 // pred_check_branch
    %13 = sbr.rel (0) target = $region13
  $region12: #{_lambda_.37} parent=0 // pred_region
    _
  $region13: #{_lambda_.37} parent=0 // pred_fallthru
    _
  %p15 = scmp.eq.s32.totalorder 0, 0
  // Predicated region
  $region14: #{_lambda_.37} parent=0 // pred_check
    %p16 = pneg %p15
  $region15: #{_lambda_.37} parent=0 // pred_check_branch
    %18 = sbr.rel (%p16) target = $region17
  $region16: #{_lambda_.37} parent=0 // pred_region
    %vm19 = vcmask 523264
    %20 = vst.msk [vmem:[#allocation2] sm:$0xff] %vm19, 0.0
    %21 = vst.msk [vmem:[#allocation2 + $0x8] sm:$0xff] %vm19, 0.0
  $region17: #{_lambda_.37} parent=0 // pred_fallthru
    _
  %v22 = vld [vmem:[#allocation2] sm:$0xff]
  %v23 = vld [vmem:[#allocation2 + $0x8] sm:$0xff]
  %v24 = vld [vmem:[%s0] sm:$0xff]
  %v25 = vld [vmem:[%s0 + $0x8] sm:$0xff]
  %v26 = vpack.c.bf16 %v25, %v24
  %v27 = vld [vmem:[%s1] sm:$0xf]
  %v28 = vld [vmem:[%s1 + $0x4] sm:$0xf]
  %v29 = vld [vmem:[%s1 + $0x8] sm:$0xf]
  %v30 = vld [vmem:[%s1 + $0xc] sm:$0xf]
  %v31 = vld [vmem:[%s1 + $0x10] sm:$0xf]
  %v32 = vld [vmem:[%s1 + $0x14] sm:$0xf]
  %v33 = vld [vmem:[%s1 + $0x18] sm:$0xf]
  %v34 = vld [vmem:[%s1 + $0x1c] sm:$0xf]
  %v35 = vld [vmem:[%s1 + $0x20] sm:$0xf]
  %v36 = vld [vmem:[%s1 + $0x24] sm:$0xf]
  %v37 = vld [vmem:[%s1 + $0x28] sm:$0xf]
  %v38 = vld [vmem:[%s1 + $0x2c] sm:$0xf]
  %v39 = vld [vmem:[%s1 + $0x30] sm:$0xf]
  %v40 = vld [vmem:[%s1 + $0x34] sm:$0xf]
  %v41 = vld [vmem:[%s1 + $0x38] sm:$0xf]
  %v42 = vld [vmem:[%s1 + $0x3c] sm:$0xf]
  %v59 = vunpack.c.l.b16 %v27
  %v60 = vunpack.c.l.b16 %v28
  %v61 = vunpack.c.l.b16 %v29
  %v62 = vunpack.c.l.b16 %v30
  %v63 = vunpack.c.l.b16 %v31
  %v64 = vunpack.c.l.b16 %v32
  %v65 = vunpack.c.l.b16 %v33
  %v66 = vunpack.c.l.b16 %v34
  %v67 = vunpack.c.l.b16 %v35
  %v68 = vunpack.c.l.b16 %v36
  %v69 = vunpack.c.l.b16 %v37
  %v70 = vunpack.c.l.b16 %v38
  %v71 = vunpack.c.l.b16 %v39
  %v72 = vunpack.c.l.b16 %v40
  %v73 = vunpack.c.l.b16 %v41
  %v74 = vunpack.c.l.b16 %v42
  %v75 = vpack.c.b16 %v60, %v59
  %v76 = vpack.c.b16 %v62, %v61
  %v77 = vpack.c.b16 %v64, %v63
  %v78 = vpack.c.b16 %v66, %v65
  %v79 = vpack.c.b16 %v68, %v67
  %v80 = vpack.c.b16 %v70, %v69
  %v81 = vpack.c.b16 %v72, %v71
  %v82 = vpack.c.b16 %v74, %v73
  %91 = vmatprep.subr.bf16.mxu0 0
  %92 = vmatpush1.bf16.msra.mxu0 %v75
  %93 = vmatprep.subr.bf16.mxu0 0
  %94 = vmatpush1.bf16.msra.mxu0 %v76
  %95 = vmatprep.subr.bf16.mxu0 0
  %96 = vmatpush1.bf16.msra.mxu0 %v77
  %97 = vmatprep.subr.bf16.mxu0 0
  %98 = vmatpush1.bf16.msra.mxu0 %v78
  %99 = vmatprep.subr.bf16.mxu0 0
  %100 = vmatpush1.bf16.msra.mxu0 %v79
  %101 = vmatprep.subr.bf16.mxu0 0
  %102 = vmatpush1.bf16.msra.mxu0 %v80
  %103 = vmatprep.subr.bf16.mxu0 0
  %104 = vmatpush1.bf16.msra.mxu0 %v81
  %105 = vmatprep.subr.bf16.mxu0 0
  %106 = vmatpush1.bf16.msra.mxu0 %v82
  %107 = vmatprep.subr.bf16.mxu0 0
  %108 = vmatpush1.bf16.msra.mxu0 0
  %109 = vmatprep.subr.bf16.mxu0 0
  %110 = vmatpush1.bf16.msra.mxu0 0
  %111 = vmatprep.subr.bf16.mxu0 0
  %112 = vmatpush1.bf16.msra.mxu0 0
  %113 = vmatprep.subr.bf16.mxu0 0
  %114 = vmatpush1.bf16.msra.mxu0 0
  %115 = vmatprep.subr.bf16.mxu0 0
  %116 = vmatpush1.bf16.msra.mxu0 0
  %117 = vmatprep.subr.bf16.mxu0 0
  %118 = vmatpush1.bf16.msra.mxu0 0
  %119 = vmatprep.subr.bf16.mxu0 0
  %120 = vmatpush1.bf16.msra.mxu0 0
  %121 = vmatprep.subr.bf16.mxu0 0
  %122 = vmatpush1.bf16.msra.mxu0 0
  %123 = vmatprep.mubr.bf16.mxu0 0
  %124 = vmatmul.mubr.bf16.gmra.mrb[0].mxu0 %v26
  %v125 = vpop.f32.mrb[0].mxu0
  %v126 = vadd.f32 0.0, %v125
  %v127 = vpop.f32.mrb[0].mxu0
  %v128 = vpop.f32.mrb[0].mxu0
  %v129 = vadd.f32 0.0, %v128
  %v130 = vpop.f32.mrb[0].mxu0
  %131 = vdwg.mxu0
  %v132 = vadd.f32 %v22, %v126
  %v133 = vadd.f32 %v23, %v129
  %vm134 = vcmask 523264
  %135 = vst.msk [vmem:[#allocation2] sm:$0xff] %vm134, %v132
  %136 = vst.msk [vmem:[#allocation2 + $0x8] sm:$0xff] %vm134, %v133
  // Predicated region
  $region18: #{_lambda_.37} parent=0 // pred_check
    %p137 = pneg %p15
  $region19: #{_lambda_.37} parent=0 // pred_check_branch
    %139 = sbr.rel (%p137) target = $region21
  $region20: #{_lambda_.37} parent=0 // pred_region
    %v140 = vld [vmem:[#allocation2] sm:$0xff]
    %v141 = vld [vmem:[#allocation2 + $0x8] sm:$0xff]
    %v142 = vld [vmem:[%s2] sm:$0x1]
    %v144 = vlaneseq
    %v145 = vshrl.u32 %v144, 7
    %v146 = vsub.s32 0, %v145
    %v147 = vrot.slane %v142, %v146
    %v149 = vadd.f32 %v140, %v147
    %v150 = vadd.f32 %v141, %v147
    %v151 = vmax.f32 %v149, 0.0
    %v152 = vmax.f32 %v150, 0.0
    %v153 = vpack.c.bf16 %v152, %v151
    %v155 = vunpack.c.l.b16 %v153
    %v156 = vunpack.c.h.b16 %v153
    %v157 = vpack.c.b16 %v155, %v155
    %v158 = vpack.c.b16 %v156, %v156
    %vm161 = vcmask 519168
    %162 = vst.msk [vmem:[%s3] sm:$0xf] %vm161, %v157
    %163 = vst.msk [vmem:[%s3 + $0x4] sm:$0xf] %vm161, %v158
  $region21: #{_lambda_.37} parent=0 // pred_fallthru
    _
  // Predicated region
  $region22: #{_lambda_.37} parent=0 // pred_check
    _
  $region23: #{_lambda_.37} parent=0 // pred_check_branch
    %165 = sbr.rel (0) target = $region25
  $region24: #{_lambda_.37} parent=0 // pred_region
    _
  $region25: #{_lambda_.37} parent=0 // pred_fallthru
    _
  // Predicated region
  $region26: #{_lambda_.37} parent=0 // pred_check
    _
  $region27: #{_lambda_.37} parent=0 // pred_check_branch
    %167 = sbr.rel (0) target = $region29
  $region28: #{_lambda_.37} parent=0 // pred_region
    _
  $region29: #{_lambda_.37} parent=0 // pred_fallthru
    _

// kernel: _lambda_.38
$region0: #{_lambda_.38}
  #allocation0 [shape = 'u32[]', space=smem, size = 0x4, offset = 0x4, fixed_abs, tag = 'smem constant byte address 0x4 - core index']
  #allocation1 [shape = 'u32[144,128]{1,0:T(1,128)}', space=vmem, size = 0x12000, scoped, tag = 'internal scratch']
  #allocation2 [shape = 'f32[16,5]{1,0:T(8,128)}', space=vmem, size = 0x2000, scoped, tag = 'scratch operand']
  %s0 = inlined_call_operand.vmem [shape: bf16[16,64], index: 0, kind: input, shape index: {}]
  %s1 = inlined_call_operand.vmem [shape: bf16[64,5], index: 1, kind: input, shape index: {}]
  %s2 = inlined_call_operand.vmem [shape: f32[1,5], index: 2, kind: input, shape index: {}]
  %s3 = inlined_call_operand.vmem [shape: f32[16,5], index: 3, kind: output, shape index: {}]
  %s4 = sld [smem:[#allocation0]]
  $region30: #{_lambda_.38} parent=0
    _
  %s6 = ssub.s32 1, %s4
  %s7 = scalar_select 0, %s6, %s4
  // Predicated region
  $region2: #{_lambda_.38} parent=0 // pred_check
    _
  $region3: #{_lambda_.38} parent=0 // pred_check_branch
    %9 = sbr.rel (0) target = $region5
  $region4: #{_lambda_.38} parent=0 // pred_region
    _
  $region5: #{_lambda_.38} parent=0 // pred_fallthru
    _
  // Predicated region
  $region6: #{_lambda_.38} parent=0 // pred_check
    _
  $region7: #{_lambda_.38} parent=0 // pred_check_branch
    %11 = sbr.rel (0) target = $region9
  $region8: #{_lambda_.38} parent=0 // pred_region
    _
  $region9: #{_lambda_.38} parent=0 // pred_fallthru
    _
  // Predicated region
  $region10: #{_lambda_.38} parent=0 // pred_check
    _
  $region11: #{_lambda_.38} parent=0 // pred_check_branch
    %13 = sbr.rel (0) target = $region13
  $region12: #{_lambda_.38} parent=0 // pred_region
    _
  $region13: #{_lambda_.38} parent=0 // pred_fallthru
    _
  %p15 = scmp.eq.s32.totalorder 0, 0
  // Predicated region
  $region14: #{_lambda_.38} parent=0 // pred_check
    %p16 = pneg %p15
  $region15: #{_lambda_.38} parent=0 // pred_check_branch
    %18 = sbr.rel (%p16) target = $region17
  $region16: #{_lambda_.38} parent=0 // pred_region
    %vm19 = vcmask 39936
    %20 = vst.msk [vmem:[#allocation2] sm:$0xff] %vm19, 0.0
    %21 = vst.msk [vmem:[#allocation2 + $0x8] sm:$0xff] %vm19, 0.0
  $region17: #{_lambda_.38} parent=0 // pred_fallthru
    _
  %v22 = vld [vmem:[#allocation2] sm:$0xff]
  %v23 = vld [vmem:[#allocation2 + $0x8] sm:$0xff]
  %v24 = vld [vmem:[%s0] sm:$0xf]
  %v25 = vld [vmem:[%s0 + $0x4] sm:$0xf]
  %v26 = vld [vmem:[%s1] sm:$0xf]
  %v27 = vld [vmem:[%s1 + $0x4] sm:$0xf]
  %v28 = vld [vmem:[%s1 + $0x8] sm:$0xf]
  %v29 = vld [vmem:[%s1 + $0xc] sm:$0xf]
  %v30 = vld [vmem:[%s1 + $0x10] sm:$0xf]
  %v31 = vld [vmem:[%s1 + $0x14] sm:$0xf]
  %v32 = vld [vmem:[%s1 + $0x18] sm:$0xf]
  %v33 = vld [vmem:[%s1 + $0x1c] sm:$0xf]
  %v36 = vunpack.c.l.b16 %v24
  %v37 = vunpack.c.l.b16 %v25
  %v38 = vpack.c.b16 %v37, %v36
  %v47 = vunpack.c.l.b16 %v26
  %v48 = vunpack.c.l.b16 %v27
  %v49 = vunpack.c.l.b16 %v28
  %v50 = vunpack.c.l.b16 %v29
  %v51 = vunpack.c.l.b16 %v30
  %v52 = vunpack.c.l.b16 %v31
  %v53 = vunpack.c.l.b16 %v32
  %v54 = vunpack.c.l.b16 %v33
  %v55 = vpack.c.b16 %v48, %v47
  %v56 = vpack.c.b16 %v50, %v49
  %v57 = vpack.c.b16 %v52, %v51
  %v58 = vpack.c.b16 %v54, %v53
  %vm63 = vcmask 523264
  %v65 = vsel %vm63, %v38, 0
  %67 = vmatprep.subr.bf16.mxu0 0
  %68 = vmatpush1.bf16.msra.mxu0 %v55
  %69 = vmatprep.subr.bf16.mxu0 0
  %70 = vmatpush1.bf16.msra.mxu0 %v56
  %71 = vmatprep.subr.bf16.mxu0 0
  %72 = vmatpush1.bf16.msra.mxu0 %v57
  %73 = vmatprep.subr.bf16.mxu0 0
  %74 = vmatpush1.bf16.msra.mxu0 %v58
  %75 = vmatprep.subr.bf16.mxu0 0
  %76 = vmatpush1.bf16.msra.mxu0 0
  %77 = vmatprep.subr.bf16.mxu0 0
  %78 = vmatpush1.bf16.msra.mxu0 0
  %79 = vmatprep.subr.bf16.mxu0 0
  %80 = vmatpush1.bf16.msra.mxu0 0
  %81 = vmatprep.subr.bf16.mxu0 0
  %82 = vmatpush1.bf16.msra.mxu0 0
  %83 = vmatprep.subr.bf16.mxu0 0
  %84 = vmatpush1.bf16.msra.mxu0 0
  %85 = vmatprep.subr.bf16.mxu0 0
  %86 = vmatpush1.bf16.msra.mxu0 0
  %87 = vmatprep.subr.bf16.mxu0 0
  %88 = vmatpush1.bf16.msra.mxu0 0
  %89 = vmatprep.subr.bf16.mxu0 0
  %90 = vmatpush1.bf16.msra.mxu0 0
  %91 = vmatprep.subr.bf16.mxu0 0
  %92 = vmatpush1.bf16.msra.mxu0 0
  %93 = vmatprep.subr.bf16.mxu0 0
  %94 = vmatpush1.bf16.msra.mxu0 0
  %95 = vmatprep.subr.bf16.mxu0 0
  %96 = vmatpush1.bf16.msra.mxu0 0
  %97 = vmatprep.subr.bf16.mxu0 0
  %98 = vmatpush1.bf16.msra.mxu0 0
  %99 = vmatprep.mubr.bf16.mxu0 0
  %100 = vmatmul.mubr.bf16.gmra.mrb[0].mxu0 %v65
  %v101 = vpop.f32.mrb[0].mxu0
  %v102 = vadd.f32 0.0, %v101
  %v103 = vpop.f32.mrb[0].mxu0
  %v104 = vpop.f32.mrb[0].mxu0
  %v105 = vadd.f32 0.0, %v104
  %v106 = vpop.f32.mrb[0].mxu0
  %107 = vdwg.mxu0
  %v108 = vadd.f32 %v22, %v102
  %v109 = vadd.f32 %v23, %v105
  %vm110 = vcmask 39936
  %111 = vst.msk [vmem:[#allocation2] sm:$0xff] %vm110, %v108
  %112 = vst.msk [vmem:[#allocation2 + $0x8] sm:$0xff] %vm110, %v109
  // Predicated region
  $region18: #{_lambda_.38} parent=0 // pred_check
    %p113 = pneg %p15
  $region19: #{_lambda_.38} parent=0 // pred_check_branch
    %115 = sbr.rel (%p113) target = $region21
  $region20: #{_lambda_.38} parent=0 // pred_region
    %v116 = vld [vmem:[#allocation2] sm:$0xff]
    %v117 = vld [vmem:[#allocation2 + $0x8] sm:$0xff]
    %v118 = vld [vmem:[%s2] sm:$0x1]
    %v120 = vlaneseq
    %v121 = vshrl.u32 %v120, 7
    %v122 = vsub.s32 0, %v121
    %v123 = vrot.slane %v118, %v122
    %v125 = vadd.f32 %v116, %v123
    %v126 = vadd.f32 %v117, %v123
    %127 = vst.msk [vmem:[%s3] sm:$0xff] %vm110, %v125
    %128 = vst.msk [vmem:[%s3 + $0x8] sm:$0xff] %vm110, %v126
  $region21: #{_lambda_.38} parent=0 // pred_fallthru
    _
  // Predicated region
  $region22: #{_lambda_.38} parent=0 // pred_check
    _
  $region23: #{_lambda_.38} parent=0 // pred_check_branch
    %130 = sbr.rel (0) target = $region25
  $region24: #{_lambda_.38} parent=0 // pred_region
    _
  $region25: #{_lambda_.38} parent=0 // pred_fallthru
    _
  // Predicated region
  $region26: #{_lambda_.38} parent=0 // pred_check
    _
  $region27: #{_lambda_.38} parent=0 // pred_check_branch
    %132 = sbr.rel (0) target = $region29
  $region28: #{_lambda_.38} parent=0 // pred_region
    _
  $region29: #{_lambda_.38} parent=0 // pred_fallthru
    _

// kernel: _lambda_.36
$region0: #{_lambda_.36}
  #allocation0 [shape = 'u32[]', space=smem, size = 0x4, offset = 0x4, fixed_abs, tag = 'smem constant byte address 0x4 - core index']
  #allocation1 [shape = 'u32[144,128]{1,0:T(1,128)}', space=vmem, size = 0x12000, scoped, tag = 'internal scratch']
  #allocation2 [shape = 'f32[16,52]{1,0:T(8,128)}', space=vmem, size = 0x2000, scoped, tag = 'scratch operand']
  %s0 = inlined_call_operand.vmem [shape: f32[16,128], index: 0, kind: input, shape index: {}]
  %s1 = inlined_call_operand.vmem [shape: bf16[128,52], index: 1, kind: input, shape index: {}]
  %s2 = inlined_call_operand.vmem [shape: f32[1,52], index: 2, kind: input, shape index: {}]
  %s3 = inlined_call_operand.hbm [shape: f32[16,52], index: 3, kind: output, shape index: {}]
  %s4 = sld [smem:[#allocation0]]
  $region30: #{_lambda_.36} parent=0
    _
  %s6 = ssub.s32 1, %s4
  %s7 = scalar_select 0, %s6, %s4
  $region1: #{_lambda_.36} parent=0
    #allocation3 [shape = 'u8[8192]{0}', space=vmem, size = 0x2000, scoped, tag = 'output window, operand 0, single buffered']
    #allocation4 [shape = 's32[1]{0}', space=sflag, size = 0x4, scoped, tag = 'scoped memory for _lambda_.36']
    %8 = vsyncpa [#allocation4], 0
    // Predicated region
    $region2: #{_lambda_.36} parent=1 // pred_check
      _
    $region3: #{_lambda_.36} parent=1 // pred_check_branch
      %10 = sbr.rel (0) target = $region5
    $region4: #{_lambda_.36} parent=1 // pred_region
      _
    $region5: #{_lambda_.36} parent=1 // pred_fallthru
      _
    // Predicated region
    $region6: #{_lambda_.36} parent=1 // pred_check
      _
    $region7: #{_lambda_.36} parent=1 // pred_check_branch
      %12 = sbr.rel (0) target = $region9
    $region8: #{_lambda_.36} parent=1 // pred_region
      _
    $region9: #{_lambda_.36} parent=1 // pred_fallthru
      _
    // Predicated region
    $region10: #{_lambda_.36} parent=1 // pred_check
      _
    $region11: #{_lambda_.36} parent=1 // pred_check_branch
      %14 = sbr.rel (0) target = $region13
    $region12: #{_lambda_.36} parent=1 // pred_region
      _
    $region13: #{_lambda_.36} parent=1 // pred_fallthru
      _
    %p16 = scmp.eq.s32.totalorder 0, 0
    // Predicated region
    $region14: #{_lambda_.36} parent=1 // pred_check
      %p17 = pneg %p16
    $region15: #{_lambda_.36} parent=1 // pred_check_branch
      %19 = sbr.rel (%p17) target = $region17
    $region16: #{_lambda_.36} parent=1 // pred_region
      %vm20 = vcmask 424960
      %21 = vst.msk [vmem:[#allocation2] sm:$0xff] %vm20, 0.0
      %22 = vst.msk [vmem:[#allocation2 + $0x8] sm:$0xff] %vm20, 0.0
    $region17: #{_lambda_.36} parent=1 // pred_fallthru
      _
    %v23 = vld [vmem:[#allocation2] sm:$0xff]
    %v24 = vld [vmem:[#allocation2 + $0x8] sm:$0xff]
    %v25 = vld [vmem:[%s0] sm:$0xff]
    %v26 = vld [vmem:[%s0 + $0x8] sm:$0xff]
    %v27 = vpack.c.bf16 %v26, %v25
    %v28 = vld [vmem:[%s1] sm:$0xf]
    %v29 = vld [vmem:[%s1 + $0x4] sm:$0xf]
    %v30 = vld [vmem:[%s1 + $0x8] sm:$0xf]
    %v31 = vld [vmem:[%s1 + $0xc] sm:$0xf]
    %v32 = vld [vmem:[%s1 + $0x10] sm:$0xf]
    %v33 = vld [vmem:[%s1 + $0x14] sm:$0xf]
    %v34 = vld [vmem:[%s1 + $0x18] sm:$0xf]
    %v35 = vld [vmem:[%s1 + $0x1c] sm:$0xf]
    %v36 = vld [vmem:[%s1 + $0x20] sm:$0xf]
    %v37 = vld [vmem:[%s1 + $0x24] sm:$0xf]
    %v38 = vld [vmem:[%s1 + $0x28] sm:$0xf]
    %v39 = vld [vmem:[%s1 + $0x2c] sm:$0xf]
    %v40 = vld [vmem:[%s1 + $0x30] sm:$0xf]
    %v41 = vld [vmem:[%s1 + $0x34] sm:$0xf]
    %v42 = vld [vmem:[%s1 + $0x38] sm:$0xf]
    %v43 = vld [vmem:[%s1 + $0x3c] sm:$0xf]
    %v60 = vunpack.c.l.b16 %v28
    %v61 = vunpack.c.l.b16 %v29
    %v62 = vunpack.c.l.b16 %v30
    %v63 = vunpack.c.l.b16 %v31
    %v64 = vunpack.c.l.b16 %v32
    %v65 = vunpack.c.l.b16 %v33
    %v66 = vunpack.c.l.b16 %v34
    %v67 = vunpack.c.l.b16 %v35
    %v68 = vunpack.c.l.b16 %v36
    %v69 = vunpack.c.l.b16 %v37
    %v70 = vunpack.c.l.b16 %v38
    %v71 = vunpack.c.l.b16 %v39
    %v72 = vunpack.c.l.b16 %v40
    %v73 = vunpack.c.l.b16 %v41
    %v74 = vunpack.c.l.b16 %v42
    %v75 = vunpack.c.l.b16 %v43
    %v76 = vpack.c.b16 %v61, %v60
    %v77 = vpack.c.b16 %v63, %v62
    %v78 = vpack.c.b16 %v65, %v64
    %v79 = vpack.c.b16 %v67, %v66
    %v80 = vpack.c.b16 %v69, %v68
    %v81 = vpack.c.b16 %v71, %v70
    %v82 = vpack.c.b16 %v73, %v72
    %v83 = vpack.c.b16 %v75, %v74
    %92 = vmatprep.subr.bf16.mxu0 0
    %93 = vmatpush1.bf16.msra.mxu0 %v76
    %94 = vmatprep.subr.bf16.mxu0 0
    %95 = vmatpush1.bf16.msra.mxu0 %v77
    %96 = vmatprep.subr.bf16.mxu0 0
    %97 = vmatpush1.bf16.msra.mxu0 %v78
    %98 = vmatprep.subr.bf16.mxu0 0
    %99 = vmatpush1.bf16.msra.mxu0 %v79
    %100 = vmatprep.subr.bf16.mxu0 0
    %101 = vmatpush1.bf16.msra.mxu0 %v80
    %102 = vmatprep.subr.bf16.mxu0 0
    %103 = vmatpush1.bf16.msra.mxu0 %v81
    %104 = vmatprep.subr.bf16.mxu0 0
    %105 = vmatpush1.bf16.msra.mxu0 %v82
    %106 = vmatprep.subr.bf16.mxu0 0
    %107 = vmatpush1.bf16.msra.mxu0 %v83
    %108 = vmatprep.subr.bf16.mxu0 0
    %109 = vmatpush1.bf16.msra.mxu0 0
    %110 = vmatprep.subr.bf16.mxu0 0
    %111 = vmatpush1.bf16.msra.mxu0 0
    %112 = vmatprep.subr.bf16.mxu0 0
    %113 = vmatpush1.bf16.msra.mxu0 0
    %114 = vmatprep.subr.bf16.mxu0 0
    %115 = vmatpush1.bf16.msra.mxu0 0
    %116 = vmatprep.subr.bf16.mxu0 0
    %117 = vmatpush1.bf16.msra.mxu0 0
    %118 = vmatprep.subr.bf16.mxu0 0
    %119 = vmatpush1.bf16.msra.mxu0 0
    %120 = vmatprep.subr.bf16.mxu0 0
    %121 = vmatpush1.bf16.msra.mxu0 0
    %122 = vmatprep.subr.bf16.mxu0 0
    %123 = vmatpush1.bf16.msra.mxu0 0
    %124 = vmatprep.mubr.bf16.mxu0 0
    %125 = vmatmul.mubr.bf16.gmra.mrb[0].mxu0 %v27
    %v126 = vpop.f32.mrb[0].mxu0
    %v127 = vadd.f32 0.0, %v126
    %v128 = vpop.f32.mrb[0].mxu0
    %v129 = vpop.f32.mrb[0].mxu0
    %v130 = vadd.f32 0.0, %v129
    %v131 = vpop.f32.mrb[0].mxu0
    %132 = vdwg.mxu0
    %v133 = vadd.f32 %v23, %v127
    %v134 = vadd.f32 %v24, %v130
    %vm135 = vcmask 424960
    %136 = vst.msk [vmem:[#allocation2] sm:$0xff] %vm135, %v133
    %137 = vst.msk [vmem:[#allocation2 + $0x8] sm:$0xff] %vm135, %v134
    // Predicated region
    $region18: #{_lambda_.36} parent=1 // pred_check
      %p138 = pneg %p16
    $region19: #{_lambda_.36} parent=1 // pred_check_branch
      %140 = sbr.rel (%p138) target = $region21
    $region20: #{_lambda_.36} parent=1 // pred_region
      %v141 = vld [vmem:[#allocation2] sm:$0xff]
      %v142 = vld [vmem:[#allocation2 + $0x8] sm:$0xff]
      %v143 = vld [vmem:[%s2] sm:$0x1]
      %v145 = vlaneseq
      %v146 = vshrl.u32 %v145, 7
      %v147 = vsub.s32 0, %v146
      %v148 = vrot.slane %v143, %v147
      %v150 = vadd.f32 %v141, %v148
      %v151 = vadd.f32 %v142, %v148
      %152 = vst.msk [vmem:[#allocation3] sm:$0xff] %vm135, %v150
      %153 = vst.msk [vmem:[#allocation3 + $0x8] sm:$0xff] %vm135, %v151
    $region21: #{_lambda_.36} parent=1 // pred_fallthru
      _
    // Predicated region
    $region22: #{_lambda_.36} parent=1 // pred_check
      _
    $region23: #{_lambda_.36} parent=1 // pred_check_branch
      %155 = sbr.rel (0) target = $region25
    $region24: #{_lambda_.36} parent=1 // pred_region
      %s157 = ssub.s32 256, 256
      %158 = vsyncadd [#allocation4], %s157
      %s159 = sshll.u32 [#allocation3], 4
      %s160 = int_to_ptr.vmem [resolvable:$true] %s159
      %165 = dma.vmem_to_hbm [thread:$0]  %s160, 256, %s3, [#allocation4], 128, 128, 8
    $region25: #{_lambda_.36} parent=1 // pred_fallthru
      _
    // Predicated region
    $region26: #{_lambda_.36} parent=1 // pred_check
      _
    $region27: #{_lambda_.36} parent=1 // pred_check_branch
      %167 = sbr.rel (0) target = $region29
    $region28: #{_lambda_.36} parent=1 // pred_region
      %168 = dma.done [#allocation4], 256
    $region29: #{_lambda_.36} parent=1 // pred_fallthru
      _
    %169 = vsyncpa [#allocation4], 1

// kernel: _lambda_.39
$region0: #{_lambda_.39}
  #allocation0 [shape = 'u32[]', space=smem, size = 0x4, offset = 0x4, fixed_abs, tag = 'smem constant byte address 0x4 - core index']
  #allocation1 [shape = 'u32[144,128]{1,0:T(1,128)}', space=vmem, size = 0x12000, scoped, tag = 'internal scratch']
  #allocation2 [shape = 'f32[16,32]{1,0:T(8,128)}', space=vmem, size = 0x2000, scoped, tag = 'scratch operand']
  %s0 = inlined_call_operand.vmem [shape: f32[16,128], index: 0, kind: input, shape index: {}]
  %s1 = inlined_call_operand.vmem [shape: bf16[128,32], index: 1, kind: input, shape index: {}]
  %s2 = inlined_call_operand.vmem [shape: f32[1,32], index: 2, kind: input, shape index: {}]
  %s3 = inlined_call_operand.hbm [shape: f32[16,32], index: 3, kind: output, shape index: {}]
  %s4 = sld [smem:[#allocation0]]
  $region30: #{_lambda_.39} parent=0
    _
  %s6 = ssub.s32 1, %s4
  %s7 = scalar_select 0, %s6, %s4
  $region1: #{_lambda_.39} parent=0
    #allocation3 [shape = 'u8[8192]{0}', space=vmem, size = 0x2000, scoped, tag = 'output window, operand 0, single buffered']
    #allocation4 [shape = 's32[1]{0}', space=sflag, size = 0x4, scoped, tag = 'scoped memory for _lambda_.39']
    %8 = vsyncpa [#allocation4], 0
    // Predicated region
    $region2: #{_lambda_.39} parent=1 // pred_check
      _
    $region3: #{_lambda_.39} parent=1 // pred_check_branch
      %10 = sbr.rel (0) target = $region5
    $region4: #{_lambda_.39} parent=1 // pred_region
      _
    $region5: #{_lambda_.39} parent=1 // pred_fallthru
      _
    // Predicated region
    $region6: #{_lambda_.39} parent=1 // pred_check
      _
    $region7: #{_lambda_.39} parent=1 // pred_check_branch
      %12 = sbr.rel (0) target = $region9
    $region8: #{_lambda_.39} parent=1 // pred_region
      _
    $region9: #{_lambda_.39} parent=1 // pred_fallthru
      _
    // Predicated region
    $region10: #{_lambda_.39} parent=1 // pred_check
      _
    $region11: #{_lambda_.39} parent=1 // pred_check_branch
      %14 = sbr.rel (0) target = $region13
    $region12: #{_lambda_.39} parent=1 // pred_region
      _
    $region13: #{_lambda_.39} parent=1 // pred_fallthru
      _
    %p16 = scmp.eq.s32.totalorder 0, 0
    // Predicated region
    $region14: #{_lambda_.39} parent=1 // pred_check
      %p17 = pneg %p16
    $region15: #{_lambda_.39} parent=1 // pred_check_branch
      %19 = sbr.rel (%p17) target = $region17
    $region16: #{_lambda_.39} parent=1 // pred_region
      %vm20 = vcmask 261120
      %21 = vst.msk [vmem:[#allocation2] sm:$0xff] %vm20, 0.0
      %22 = vst.msk [vmem:[#allocation2 + $0x8] sm:$0xff] %vm20, 0.0
    $region17: #{_lambda_.39} parent=1 // pred_fallthru
      _
    %v23 = vld [vmem:[#allocation2] sm:$0xff]
    %v24 = vld [vmem:[#allocation2 + $0x8] sm:$0xff]
    %v25 = vld [vmem:[%s0] sm:$0xff]
    %v26 = vld [vmem:[%s0 + $0x8] sm:$0xff]
    %v27 = vpack.c.bf16 %v26, %v25
    %v28 = vld [vmem:[%s1] sm:$0xf]
    %v29 = vld [vmem:[%s1 + $0x4] sm:$0xf]
    %v30 = vld [vmem:[%s1 + $0x8] sm:$0xf]
    %v31 = vld [vmem:[%s1 + $0xc] sm:$0xf]
    %v32 = vld [vmem:[%s1 + $0x10] sm:$0xf]
    %v33 = vld [vmem:[%s1 + $0x14] sm:$0xf]
    %v34 = vld [vmem:[%s1 + $0x18] sm:$0xf]
    %v35 = vld [vmem:[%s1 + $0x1c] sm:$0xf]
    %v36 = vld [vmem:[%s1 + $0x20] sm:$0xf]
    %v37 = vld [vmem:[%s1 + $0x24] sm:$0xf]
    %v38 = vld [vmem:[%s1 + $0x28] sm:$0xf]
    %v39 = vld [vmem:[%s1 + $0x2c] sm:$0xf]
    %v40 = vld [vmem:[%s1 + $0x30] sm:$0xf]
    %v41 = vld [vmem:[%s1 + $0x34] sm:$0xf]
    %v42 = vld [vmem:[%s1 + $0x38] sm:$0xf]
    %v43 = vld [vmem:[%s1 + $0x3c] sm:$0xf]
    %v60 = vunpack.c.l.b16 %v28
    %v61 = vunpack.c.l.b16 %v29
    %v62 = vunpack.c.l.b16 %v30
    %v63 = vunpack.c.l.b16 %v31
    %v64 = vunpack.c.l.b16 %v32
    %v65 = vunpack.c.l.b16 %v33
    %v66 = vunpack.c.l.b16 %v34
    %v67 = vunpack.c.l.b16 %v35
    %v68 = vunpack.c.l.b16 %v36
    %v69 = vunpack.c.l.b16 %v37
    %v70 = vunpack.c.l.b16 %v38
    %v71 = vunpack.c.l.b16 %v39
    %v72 = vunpack.c.l.b16 %v40
    %v73 = vunpack.c.l.b16 %v41
    %v74 = vunpack.c.l.b16 %v42
    %v75 = vunpack.c.l.b16 %v43
    %v76 = vpack.c.b16 %v61, %v60
    %v77 = vpack.c.b16 %v63, %v62
    %v78 = vpack.c.b16 %v65, %v64
    %v79 = vpack.c.b16 %v67, %v66
    %v80 = vpack.c.b16 %v69, %v68
    %v81 = vpack.c.b16 %v71, %v70
    %v82 = vpack.c.b16 %v73, %v72
    %v83 = vpack.c.b16 %v75, %v74
    %92 = vmatprep.subr.bf16.mxu0 0
    %93 = vmatpush1.bf16.msra.mxu0 %v76
    %94 = vmatprep.subr.bf16.mxu0 0
    %95 = vmatpush1.bf16.msra.mxu0 %v77
    %96 = vmatprep.subr.bf16.mxu0 0
    %97 = vmatpush1.bf16.msra.mxu0 %v78
    %98 = vmatprep.subr.bf16.mxu0 0
    %99 = vmatpush1.bf16.msra.mxu0 %v79
    %100 = vmatprep.subr.bf16.mxu0 0
    %101 = vmatpush1.bf16.msra.mxu0 %v80
    %102 = vmatprep.subr.bf16.mxu0 0
    %103 = vmatpush1.bf16.msra.mxu0 %v81
    %104 = vmatprep.subr.bf16.mxu0 0
    %105 = vmatpush1.bf16.msra.mxu0 %v82
    %106 = vmatprep.subr.bf16.mxu0 0
    %107 = vmatpush1.bf16.msra.mxu0 %v83
    %108 = vmatprep.subr.bf16.mxu0 0
    %109 = vmatpush1.bf16.msra.mxu0 0
    %110 = vmatprep.subr.bf16.mxu0 0
    %111 = vmatpush1.bf16.msra.mxu0 0
    %112 = vmatprep.subr.bf16.mxu0 0
    %113 = vmatpush1.bf16.msra.mxu0 0
    %114 = vmatprep.subr.bf16.mxu0 0
    %115 = vmatpush1.bf16.msra.mxu0 0
    %116 = vmatprep.subr.bf16.mxu0 0
    %117 = vmatpush1.bf16.msra.mxu0 0
    %118 = vmatprep.subr.bf16.mxu0 0
    %119 = vmatpush1.bf16.msra.mxu0 0
    %120 = vmatprep.subr.bf16.mxu0 0
    %121 = vmatpush1.bf16.msra.mxu0 0
    %122 = vmatprep.subr.bf16.mxu0 0
    %123 = vmatpush1.bf16.msra.mxu0 0
    %124 = vmatprep.mubr.bf16.mxu0 0
    %125 = vmatmul.mubr.bf16.gmra.mrb[0].mxu0 %v27
    %v126 = vpop.f32.mrb[0].mxu0
    %v127 = vadd.f32 0.0, %v126
    %v128 = vpop.f32.mrb[0].mxu0
    %v129 = vpop.f32.mrb[0].mxu0
    %v130 = vadd.f32 0.0, %v129
    %v131 = vpop.f32.mrb[0].mxu0
    %132 = vdwg.mxu0
    %v133 = vadd.f32 %v23, %v127
    %v134 = vadd.f32 %v24, %v130
    %vm135 = vcmask 261120
    %136 = vst.msk [vmem:[#allocation2] sm:$0xff] %vm135, %v133
    %137 = vst.msk [vmem:[#allocation2 + $0x8] sm:$0xff] %vm135, %v134
    // Predicated region
    $region18: #{_lambda_.39} parent=1 // pred_check
      %p138 = pneg %p16
    $region19: #{_lambda_.39} parent=1 // pred_check_branch
      %140 = sbr.rel (%p138) target = $region21
    $region20: #{_lambda_.39} parent=1 // pred_region
      %v141 = vld [vmem:[#allocation2] sm:$0xff]
      %v142 = vld [vmem:[#allocation2 + $0x8] sm:$0xff]
      %v143 = vld [vmem:[%s2] sm:$0x1]
      %v145 = vlaneseq
      %v146 = vshrl.u32 %v145, 7
      %v147 = vsub.s32 0, %v146
      %v148 = vrot.slane %v143, %v147
      %v150 = vadd.f32 %v141, %v148
      %v151 = vadd.f32 %v142, %v148
      %152 = vst.msk [vmem:[#allocation3] sm:$0xff] %vm135, %v150
      %153 = vst.msk [vmem:[#allocation3 + $0x8] sm:$0xff] %vm135, %v151
    $region21: #{_lambda_.39} parent=1 // pred_fallthru
      _
    // Predicated region
    $region22: #{_lambda_.39} parent=1 // pred_check
      _
    $region23: #{_lambda_.39} parent=1 // pred_check_branch
      %155 = sbr.rel (0) target = $region25
    $region24: #{_lambda_.39} parent=1 // pred_region
      %s157 = ssub.s32 256, 256
      %158 = vsyncadd [#allocation4], %s157
      %s159 = sshll.u32 [#allocation3], 4
      %s160 = int_to_ptr.vmem [resolvable:$true] %s159
      %165 = dma.vmem_to_hbm [thread:$0]  %s160, 256, %s3, [#allocation4], 128, 128, 8
    $region25: #{_lambda_.39} parent=1 // pred_fallthru
      _
    // Predicated region
    $region26: #{_lambda_.39} parent=1 // pred_check
      _
    $region27: #{_lambda_.39} parent=1 // pred_check_branch
      %167 = sbr.rel (0) target = $region29
    $region28: #{_lambda_.39} parent=1 // pred_region
      %168 = dma.done [#allocation4], 256
    $region29: #{_lambda_.39} parent=1 // pred_fallthru
      _
    %169 = vsyncpa [#allocation4], 1

</llo_original>
